<compile_context>
chip_gen: v7x
topology: tpu7x:2x2x1
jax: 0.10.0
libtpu: 0.0.40
codegen_flags: <defaults>
</compile_context>

<pallas_src>
import functools

import jax
import jax.numpy as jnp
from jax import lax
from jax.experimental import pallas as pl
from jax.experimental.pallas import tpu as pltpu

_EPS = 1e-5  # PyTorch GroupNorm default eps


def _round_up(n, m):
    return ((n + m - 1) // m) * m


def _group_broadcast(stat, half):
    """(C, 1) per-channel stat -> (C, 1): each contiguous half (= GroupNorm
    group; channel order is preserved from NCDHW) replaced by its group mean."""
    g0 = jnp.mean(stat[:half, :], axis=0, keepdims=True)      # (1, 1)
    g1 = jnp.mean(stat[half:, :], axis=0, keepdims=True)      # (1, 1)
    return jnp.concatenate([jnp.broadcast_to(g0, (half, 1)),
                            jnp.broadcast_to(g1, (half, 1))], axis=0)


def _gn_relu(acc, mask, bias, gamma, beta, n_valid):
    """GroupNorm(2 groups) + ReLU on the padded-flat conv output.

    acc   : (C, Spad) f32 conv result WITHOUT bias; halo lanes are garbage.
    mask  : (1, Spad) f32, 1.0 on real voxels / 0.0 on the padding halo.
    bias/gamma/beta : (C, 1) f32.
    Two-pass statistics (mean, then centered sum of squares), bias folded
    analytically.  Returns (C, Spad) f32 with the halo forced back to exactly
    zero so it can directly feed the next conv's zero padding.
    """
    C = acc.shape[0]
    half = C // 2
    inv_n = 1.0 / float(n_valid)

    macc = acc * mask                                           # halo -> 0
    m_c = jnp.sum(macc, axis=1, keepdims=True) * inv_n + bias   # E[x] per channel
    mean = _group_broadcast(m_c, half)                          # per-group mean

    d = (macc + (bias - mean)) * mask                           # x - mean (0 on halo)
    ss_c = jnp.sum(d * d, axis=1, keepdims=True) * inv_n        # E[(x-mean)^2] per ch
    var = _group_broadcast(ss_c, half)                          # per-group variance

    scale = gamma * lax.rsqrt(var + _EPS)                       # (C, 1)
    return jnp.maximum(d * scale + beta, 0.0) * mask            # (C, Spad) f32


def _double_conv_kernel(x_ref, mask_ref,
                        w1_ref, b1_ref, g1_ref, be1_ref,
                        w2_ref, b2_ref, g2_ref, be2_ref,
                        o_ref,
                        patch1_ref, patch2_ref, ymid_ref,
                        *, offsets, pad, spad, n_valid):
    """One grid step = one batch sample: conv1+GN+ReLU -> conv2+GN+ReLU.

    x_ref    : (1, Cin, Spadw)  margin-extended padded-flat input (bf16)
    mask_ref : (1, Spad)        interior mask (f32)
    w*_ref   : (C, 27*Cprev)    im2col weights, transposed orientation (bf16)
    b*/g*/be*: (C, 1)           conv bias / GN gamma / GN beta (f32)
    o_ref    : (1, Cout, Spad)  output over the padded-flat volume (f32)
    patch*   : (27*C, Spad)     im2col scratch, one row block per tap (bf16)
    ymid_ref : (Cmid, Spadw)    stage-1 activation, margin-extended (bf16)
    """
    cin = x_ref.shape[1]
    cmid = w1_ref.shape[0]
    mask = mask_ref[...]                                        # (1, Spad) f32

    # ---- stage 1: 27 lane-dense shifted-window copies + ONE MXU matmul ----
    xb = x_ref[0]                                               # (Cin, Spadw) bf16
    for t, off in enumerate(offsets):
        patch1_ref[t * cin:(t + 1) * cin, :] = xb[:, pad + off:pad + off + spad]
    acc1 = jnp.dot(w1_ref[...], patch1_ref[...],
                   preferred_element_type=jnp.float32)          # (Cmid, Spad) f32
    y1 = _gn_relu(acc1, mask, b1_ref[...], g1_ref[...], be1_ref[...], n_valid)

    # ---- stage-1 activation stays in VMEM (bf16, padded-flat, halo == 0) ----
    # Only the two small margin strips are zeroed (they are never written by
    # anything else); done every step since scratch is not zero-initialised.
    ymid_ref[:, :pad] = jnp.zeros((cmid, pad), ymid_ref.dtype)
    ymid_ref[:, pad + spad:] = jnp.zeros((cmid, pad), ymid_ref.dtype)
    ymid_ref[:, pad:pad + spad] = y1.astype(ymid_ref.dtype)

    # ---- stage 2 ----
    yb = ymid_ref[...]                                          # (Cmid, Spadw) bf16
    for t, off in enumerate(offsets):
        patch2_ref[t * cmid:(t + 1) * cmid, :] = yb[:, pad + off:pad + off + spad]
    acc2 = jnp.dot(w2_ref[...], patch2_ref[...],
                   preferred_element_type=jnp.float32)          # (Cout, Spad) f32
    y2 = _gn_relu(acc2, mask, b2_ref[...], g2_ref[...], be2_ref[...], n_valid)

    o_ref[0] = y2.astype(o_ref.dtype)


def double_conv_block_3d(x_ncdhw, w1, b1, gamma1, beta1, w2, b2, gamma2, beta2):
    """Forward of DoubleConvBlock3d (3x3x3 conv, padding=1, stride=1,
    GroupNorm(2), ReLU, twice). x: (B, Cin, D, H, W) -> (B, Cout, D, H, W)."""
    B, Cin, D, H, W = x_ncdhw.shape
    Cmid, Cout = w1.shape[0], w2.shape[0]
    assert w1.shape == (Cmid, Cin, 3, 3, 3), w1.shape
    assert w2.shape == (Cout, Cmid, 3, 3, 3), w2.shape
    assert Cmid % 2 == 0 and Cout % 2 == 0, "GroupNorm(2) needs even channels"

    PD, PH, PW = D + 2, H + 2, W + 2
    spad = PD * PH * PW                      # padded-flat spatial size
    n_valid = D * H * W
    pad = _round_up(PH * PW + PW + 1, 128)   # lane margin >= largest tap offset
    spadw = spad + 2 * pad
    k1, k2 = 27 * Cin, 27 * Cmid

    # Flat offsets of the 27 taps relative to an output voxel (padded coords).
    offsets = tuple((kd - 1) * PH * PW + (kh - 1) * PW + (kw - 1)
                    for kd in range(3) for kh in range(3) for kw in range(3))

    # Input: NCDHW -> zero pad=1 -> flatten spatial -> add lane margins; bf16.
    xb = x_ncdhw.astype(jnp.bfloat16)
    xb = jnp.pad(xb, ((0, 0), (0, 0), (1, 1), (1, 1), (1, 1)))
    xb = jnp.pad(xb.reshape(B, Cin, spad), ((0, 0), (0, 0), (pad, pad)))

    # 1/0 interior mask over the padded-flat volume.
    mask = jnp.pad(jnp.ones((D, H, W), jnp.float32),
                   ((1, 1), (1, 1), (1, 1))).reshape(1, spad)

    def im2col_w(w):
        # OIDHW -> (Cout, kd, kh, kw, Cin) -> (Cout, 27*Cin); bf16 for the MXU.
        co, ci = w.shape[0], w.shape[1]
        return (jnp.transpose(w, (0, 2, 3, 4, 1))
                .reshape(co, 27 * ci).astype(jnp.bfloat16))

    def col(v):
        return v.reshape(-1, 1).astype(jnp.float32)

    # VMEM budget: double-buffered I/O blocks + scratch + f32 epilogue temps.
    vmem_needed = int(
        2 * Cin * spadw * 2 + 2 * spad * 4 +
        2 * (Cmid * k1 + Cout * k2) * 2 +
        2 * Cout * spad * 4 +
        (k1 + k2) * spad * 2 + Cmid * spadw * 2 +
        8 * max(Cmid, Cout) * spad * 4)
    try:  # per-generation cap (v5e/v6e: 128 MiB, v7x: 64 MiB), keep headroom
        vmem_cap = int(pltpu.get_tpu_info().vmem_capacity_bytes)
    except Exception:
        vmem_cap = 0
    if vmem_cap < (48 << 20):
        vmem_cap = 64 << 20
    vmem_limit = int(min(max(vmem_needed, 32 << 20), vmem_cap * 7 // 8))

    kernel = functools.partial(_double_conv_kernel, offsets=offsets,
                               pad=pad, spad=spad, n_valid=n_valid)

    out = pl.pallas_call(
        kernel,
        out_shape=jax.ShapeDtypeStruct((B, Cout, spad), jnp.float32),
        grid=(B,),
        in_specs=[
            pl.BlockSpec((1, Cin, spadw), lambda b: (b, 0, 0)),
            pl.BlockSpec((1, spad), lambda b: (0, 0)),
            pl.BlockSpec((Cmid, k1), lambda b: (0, 0)),
            pl.BlockSpec((Cmid, 1), lambda b: (0, 0)),
            pl.BlockSpec((Cmid, 1), lambda b: (0, 0)),
            pl.BlockSpec((Cmid, 1), lambda b: (0, 0)),
            pl.BlockSpec((Cout, k2), lambda b: (0, 0)),
            pl.BlockSpec((Cout, 1), lambda b: (0, 0)),
            pl.BlockSpec((Cout, 1), lambda b: (0, 0)),
            pl.BlockSpec((Cout, 1), lambda b: (0, 0)),
        ],
        out_specs=pl.BlockSpec((1, Cout, spad), lambda b: (b, 0, 0)),
        scratch_shapes=[
            pltpu.VMEM((k1, spad), jnp.bfloat16),     # im2col patches, stage 1
            pltpu.VMEM((k2, spad), jnp.bfloat16),     # im2col patches, stage 2
            pltpu.VMEM((Cmid, spadw), jnp.bfloat16),  # stage-1 act (+ margins)
        ],
        compiler_params=pltpu.CompilerParams(
            dimension_semantics=("parallel",),
            vmem_limit_bytes=vmem_limit),
    )(xb, mask, im2col_w(w1), col(b1), col(gamma1), col(beta1),
      im2col_w(w2), col(b2), col(gamma2), col(beta2))

    # Drop the padding halo; the result is already NCDHW (no transpose needed).
    out = out.reshape(B, Cout, PD, PH, PW)
    return out[:, :, 1:1 + D, 1:1 + H, 1:1 + W]


# ---------------- pure-JAX reference for the correctness check ----------------
def _ref_forward(x, w1, b1, g1, be1, w2, b2, g2, be2):
    def conv(x, w, b):
        dn = lax.conv_dimension_numbers(x.shape, w.shape,
                                        ('NCDHW', 'OIDHW', 'NCDHW'))
        y = lax.conv_general_dilated(x, w, (1, 1, 1), [(1, 1)] * 3,
                                     dimension_numbers=dn,
                                     precision=lax.Precision.HIGHEST)
        return y + b[None, :, None, None, None]

    def gn(x, gamma, beta, groups=2, eps=_EPS):
        B, C = x.shape[:2]
        xg = x.reshape(B, groups, C // groups, *x.shape[2:])
        mean = xg.mean(axis=(2, 3, 4, 5), keepdims=True)
        var = ((xg - mean) ** 2).mean(axis=(2, 3, 4, 5), keepdims=True)
        xn = ((xg - mean) / jnp.sqrt(var + eps)).reshape(x.shape)
        return (xn * gamma[None, :, None, None, None]
                + beta[None, :, None, None, None])

    y = jnp.maximum(gn(conv(x, w1, b1), g1, be1), 0.0)
    y = jnp.maximum(gn(conv(y, w2, b2), g2, be2), 0.0)
    return y


if __name__ == "__main__":
    key = jax.random.PRNGKey(0)
    B, Cin, Cout, D, H, W = 2, 4, 8, 8, 8, 8
    ks = jax.random.split(key, 5)

    x = jax.random.normal(ks[0], (B, Cin, D, H, W), jnp.float32)
    # Parameter shapes follow DoubleConvBlock3d.__init__ (conv1: C->C, conv2: C->Cout)
    w1 = jax.random.normal(ks[1], (Cin, Cin, 3, 3, 3), jnp.float32) * 0.1
    b1 = jax.random.normal(ks[2], (Cin,), jnp.float32) * 0.1
    w2 = jax.random.normal(ks[3], (Cout, Cin, 3, 3, 3), jnp.float32) * 0.1
    b2 = jax.random.normal(ks[4], (Cout,), jnp.float32) * 0.1
    gamma1, beta1 = jnp.ones((Cin,), jnp.float32), jnp.zeros((Cin,), jnp.float32)
    gamma2, beta2 = jnp.ones((Cout,), jnp.float32), jnp.zeros((Cout,), jnp.float32)

    out = double_conv_block_3d(x, w1, b1, gamma1, beta1, w2, b2, gamma2, beta2)
    out = jax.block_until_ready(out)
    assert out.shape == (B, Cout, D, H, W), out.shape

    ref = _ref_forward(x, w1, b1, gamma1, beta1, w2, b2, gamma2, beta2)
    ref = jax.block_until_ready(ref)
    # Tolerance is loose only because the kernel feeds the MXU bfloat16
    # operands (f32 accumulation + two-pass GN); layout/indexing bugs would be
    # O(1) errors and are still caught.
    if not jnp.allclose(out, ref, atol=5e-2, rtol=5e-2):
        max_err = float(jnp.max(jnp.abs(out - ref)))
        raise AssertionError(f"Pallas result mismatch, max abs err = {max_err}")

    print("KERNEL_OK")
</pallas_src>

<mosaic_0001>
module attributes {stable_mosaic.version = 11 : i64} {
  func.func @_double_conv_kernel(%arg0: i32, %arg1: memref<1x4x1256xbf16, #tpu.memory_space<vmem>>, %arg2: memref<1x1000xf32, #tpu.memory_space<vmem>>, %arg3: memref<4x108xbf16, #tpu.memory_space<vmem>>, %arg4: memref<4x1xf32, #tpu.memory_space<vmem>>, %arg5: memref<4x1xf32, #tpu.memory_space<vmem>>, %arg6: memref<4x1xf32, #tpu.memory_space<vmem>>, %arg7: memref<8x108xbf16, #tpu.memory_space<vmem>>, %arg8: memref<8x1xf32, #tpu.memory_space<vmem>>, %arg9: memref<8x1xf32, #tpu.memory_space<vmem>>, %arg10: memref<8x1xf32, #tpu.memory_space<vmem>>, %arg11: memref<1x8x1000xf32, #tpu.memory_space<vmem>>, %arg12: memref<108x1000xbf16, #tpu.memory_space<vmem>>, %arg13: memref<108x1000xbf16, #tpu.memory_space<vmem>>, %arg14: memref<4x1256xbf16, #tpu.memory_space<vmem>>) attributes {dimension_semantics = [#tpu.dimension_semantics<parallel>], iteration_bounds = array<i64: 2>, scalar_prefetch = 0 : i64, scratch_operands = 3 : i64, tpu.core_type = #tpu.core_type<tc>, window_params = [{transform_indices = @transform_0, window_bounds = array<i64: 1, 4, 1256>}, {pipeline_mode = #tpu.pipeline_mode<synchronous>, transform_indices = @transform_1, window_bounds = array<i64: 1, 1000>}, {pipeline_mode = #tpu.pipeline_mode<synchronous>, transform_indices = @transform_2, window_bounds = array<i64: 4, 108>}, {pipeline_mode = #tpu.pipeline_mode<synchronous>, transform_indices = @transform_3, window_bounds = array<i64: 4, 1>}, {pipeline_mode = #tpu.pipeline_mode<synchronous>, transform_indices = @transform_4, window_bounds = array<i64: 4, 1>}, {pipeline_mode = #tpu.pipeline_mode<synchronous>, transform_indices = @transform_5, window_bounds = array<i64: 4, 1>}, {pipeline_mode = #tpu.pipeline_mode<synchronous>, transform_indices = @transform_6, window_bounds = array<i64: 8, 108>}, {pipeline_mode = #tpu.pipeline_mode<synchronous>, transform_indices = @transform_7, window_bounds = array<i64: 8, 1>}, {pipeline_mode = #tpu.pipeline_mode<synchronous>, transform_indices = @transform_8, window_bounds = array<i64: 8, 1>}, {pipeline_mode = #tpu.pipeline_mode<synchronous>, transform_indices = @transform_9, window_bounds = array<i64: 8, 1>}, {transform_indices = @transform_10, window_bounds = array<i64: 1, 8, 1000>}]} {
    %c0 = arith.constant 0 : index
    %c0_0 = arith.constant 0 : index
    %0 = vector.load %arg2[%c0, %c0_0] : memref<1x1000xf32, #tpu.memory_space<vmem>>, vector<1x1000xf32>
    %c0_1 = arith.constant 0 : index
    %c0_2 = arith.constant 0 : index
    %c0_3 = arith.constant 0 : index
    %1 = vector.load %arg1[%c0_1, %c0_2, %c0_3] : memref<1x4x1256xbf16, #tpu.memory_space<vmem>>, vector<1x4x1256xbf16>
    %2 = vector.shape_cast %1 : vector<1x4x1256xbf16> to vector<4x1256xbf16>
    %3 = vector.extract_strided_slice %2 {offsets = [0, 17], sizes = [4, 1000], strides = [1, 1]} : vector<4x1256xbf16> to vector<4x1000xbf16>
    %c0_4 = arith.constant 0 : index
    %c0_5 = arith.constant 0 : index
    %4 = vector.load %arg12[%c0_4, %c0_5] : memref<108x1000xbf16, #tpu.memory_space<vmem>>, vector<4x1000xbf16>
    tpu.vector_store %arg12[%c0_4, %c0_5], %3 {strides = array<i32>} : memref<108x1000xbf16, #tpu.memory_space<vmem>>, vector<4x1000xbf16>,
    %5 = vector.extract_strided_slice %2 {offsets = [0, 18], sizes = [4, 1000], strides = [1, 1]} : vector<4x1256xbf16> to vector<4x1000xbf16>
    %c4 = arith.constant 4 : index
    %c0_6 = arith.constant 0 : index
    %6 = vector.load %arg12[%c4, %c0_6] : memref<108x1000xbf16, #tpu.memory_space<vmem>>, vector<4x1000xbf16>
    tpu.vector_store %arg12[%c4, %c0_6], %5 {strides = array<i32>} : memref<108x1000xbf16, #tpu.memory_space<vmem>>, vector<4x1000xbf16>,
    %7 = vector.extract_strided_slice %2 {offsets = [0, 19], sizes = [4, 1000], strides = [1, 1]} : vector<4x1256xbf16> to vector<4x1000xbf16>
    %c8 = arith.constant 8 : index
    %c0_7 = arith.constant 0 : index
    %8 = vector.load %arg12[%c8, %c0_7] : memref<108x1000xbf16, #tpu.memory_space<vmem>>, vector<4x1000xbf16>
    tpu.vector_store %arg12[%c8, %c0_7], %7 {strides = array<i32>} : memref<108x1000xbf16, #tpu.memory_space<vmem>>, vector<4x1000xbf16>,
    %9 = vector.extract_strided_slice %2 {offsets = [0, 27], sizes = [4, 1000], strides = [1, 1]} : vector<4x1256xbf16> to vector<4x1000xbf16>
    %c12 = arith.constant 12 : index
    %c0_8 = arith.constant 0 : index
    %10 = vector.load %arg12[%c12, %c0_8] : memref<108x1000xbf16, #tpu.memory_space<vmem>>, vector<4x1000xbf16>
    tpu.vector_store %arg12[%c12, %c0_8], %9 {strides = array<i32>} : memref<108x1000xbf16, #tpu.memory_space<vmem>>, vector<4x1000xbf16>,
    %11 = vector.extract_strided_slice %2 {offsets = [0, 28], sizes = [4, 1000], strides = [1, 1]} : vector<4x1256xbf16> to vector<4x1000xbf16>
    %c16 = arith.constant 16 : index
    %c0_9 = arith.constant 0 : index
    %12 = vector.load %arg12[%c16, %c0_9] : memref<108x1000xbf16, #tpu.memory_space<vmem>>, vector<4x1000xbf16>
    tpu.vector_store %arg12[%c16, %c0_9], %11 {strides = array<i32>} : memref<108x1000xbf16, #tpu.memory_space<vmem>>, vector<4x1000xbf16>,
    %13 = vector.extract_strided_slice %2 {offsets = [0, 29], sizes = [4, 1000], strides = [1, 1]} : vector<4x1256xbf16> to vector<4x1000xbf16>
    %c20 = arith.constant 20 : index
    %c0_10 = arith.constant 0 : index
    %14 = vector.load %arg12[%c20, %c0_10] : memref<108x1000xbf16, #tpu.memory_space<vmem>>, vector<4x1000xbf16>
    tpu.vector_store %arg12[%c20, %c0_10], %13 {strides = array<i32>} : memref<108x1000xbf16, #tpu.memory_space<vmem>>, vector<4x1000xbf16>,
    %15 = vector.extract_strided_slice %2 {offsets = [0, 37], sizes = [4, 1000], strides = [1, 1]} : vector<4x1256xbf16> to vector<4x1000xbf16>
    %c24 = arith.constant 24 : index
    %c0_11 = arith.constant 0 : index
    %16 = vector.load %arg12[%c24, %c0_11] : memref<108x1000xbf16, #tpu.memory_space<vmem>>, vector<4x1000xbf16>
    tpu.vector_store %arg12[%c24, %c0_11], %15 {strides = array<i32>} : memref<108x1000xbf16, #tpu.memory_space<vmem>>, vector<4x1000xbf16>,
    %17 = vector.extract_strided_slice %2 {offsets = [0, 38], sizes = [4, 1000], strides = [1, 1]} : vector<4x1256xbf16> to vector<4x1000xbf16>
    %c28 = arith.constant 28 : index
    %c0_12 = arith.constant 0 : index
    %18 = vector.load %arg12[%c28, %c0_12] : memref<108x1000xbf16, #tpu.memory_space<vmem>>, vector<4x1000xbf16>
    tpu.vector_store %arg12[%c28, %c0_12], %17 {strides = array<i32>} : memref<108x1000xbf16, #tpu.memory_space<vmem>>, vector<4x1000xbf16>,
    %19 = vector.extract_strided_slice %2 {offsets = [0, 39], sizes = [4, 1000], strides = [1, 1]} : vector<4x1256xbf16> to vector<4x1000xbf16>
    %c32 = arith.constant 32 : index
    %c0_13 = arith.constant 0 : index
    %20 = vector.load %arg12[%c32, %c0_13] : memref<108x1000xbf16, #tpu.memory_space<vmem>>, vector<4x1000xbf16>
    tpu.vector_store %arg12[%c32, %c0_13], %19 {strides = array<i32>} : memref<108x1000xbf16, #tpu.memory_space<vmem>>, vector<4x1000xbf16>,
    %21 = vector.extract_strided_slice %2 {offsets = [0, 117], sizes = [4, 1000], strides = [1, 1]} : vector<4x1256xbf16> to vector<4x1000xbf16>
    %c36 = arith.constant 36 : index
    %c0_14 = arith.constant 0 : index
    %22 = vector.load %arg12[%c36, %c0_14] : memref<108x1000xbf16, #tpu.memory_space<vmem>>, vector<4x1000xbf16>
    tpu.vector_store %arg12[%c36, %c0_14], %21 {strides = array<i32>} : memref<108x1000xbf16, #tpu.memory_space<vmem>>, vector<4x1000xbf16>,
    %23 = vector.extract_strided_slice %2 {offsets = [0, 118], sizes = [4, 1000], strides = [1, 1]} : vector<4x1256xbf16> to vector<4x1000xbf16>
    %c40 = arith.constant 40 : index
    %c0_15 = arith.constant 0 : index
    %24 = vector.load %arg12[%c40, %c0_15] : memref<108x1000xbf16, #tpu.memory_space<vmem>>, vector<4x1000xbf16>
    tpu.vector_store %arg12[%c40, %c0_15], %23 {strides = array<i32>} : memref<108x1000xbf16, #tpu.memory_space<vmem>>, vector<4x1000xbf16>,
    %25 = vector.extract_strided_slice %2 {offsets = [0, 119], sizes = [4, 1000], strides = [1, 1]} : vector<4x1256xbf16> to vector<4x1000xbf16>
    %c44 = arith.constant 44 : index
    %c0_16 = arith.constant 0 : index
    %26 = vector.load %arg12[%c44, %c0_16] : memref<108x1000xbf16, #tpu.memory_space<vmem>>, vector<4x1000xbf16>
    tpu.vector_store %arg12[%c44, %c0_16], %25 {strides = array<i32>} : memref<108x1000xbf16, #tpu.memory_space<vmem>>, vector<4x1000xbf16>,
    %27 = vector.extract_strided_slice %2 {offsets = [0, 127], sizes = [4, 1000], strides = [1, 1]} : vector<4x1256xbf16> to vector<4x1000xbf16>
    %c48 = arith.constant 48 : index
    %c0_17 = arith.constant 0 : index
    %28 = vector.load %arg12[%c48, %c0_17] : memref<108x1000xbf16, #tpu.memory_space<vmem>>, vector<4x1000xbf16>
    tpu.vector_store %arg12[%c48, %c0_17], %27 {strides = array<i32>} : memref<108x1000xbf16, #tpu.memory_space<vmem>>, vector<4x1000xbf16>,
    %29 = vector.extract_strided_slice %2 {offsets = [0, 128], sizes = [4, 1000], strides = [1, 1]} : vector<4x1256xbf16> to vector<4x1000xbf16>
    %c52 = arith.constant 52 : index
    %c0_18 = arith.constant 0 : index
    %30 = vector.load %arg12[%c52, %c0_18] : memref<108x1000xbf16, #tpu.memory_space<vmem>>, vector<4x1000xbf16>
    tpu.vector_store %arg12[%c52, %c0_18], %29 {strides = array<i32>} : memref<108x1000xbf16, #tpu.memory_space<vmem>>, vector<4x1000xbf16>,
    %31 = vector.extract_strided_slice %2 {offsets = [0, 129], sizes = [4, 1000], strides = [1, 1]} : vector<4x1256xbf16> to vector<4x1000xbf16>
    %c56 = arith.constant 56 : index
    %c0_19 = arith.constant 0 : index
    %32 = vector.load %arg12[%c56, %c0_19] : memref<108x1000xbf16, #tpu.memory_space<vmem>>, vector<4x1000xbf16>
    tpu.vector_store %arg12[%c56, %c0_19], %31 {strides = array<i32>} : memref<108x1000xbf16, #tpu.memory_space<vmem>>, vector<4x1000xbf16>,
    %33 = vector.extract_strided_slice %2 {offsets = [0, 137], sizes = [4, 1000], strides = [1, 1]} : vector<4x1256xbf16> to vector<4x1000xbf16>
    %c60 = arith.constant 60 : index
    %c0_20 = arith.constant 0 : index
    %34 = vector.load %arg12[%c60, %c0_20] : memref<108x1000xbf16, #tpu.memory_space<vmem>>, vector<4x1000xbf16>
    tpu.vector_store %arg12[%c60, %c0_20], %33 {strides = array<i32>} : memref<108x1000xbf16, #tpu.memory_space<vmem>>, vector<4x1000xbf16>,
    %35 = vector.extract_strided_slice %2 {offsets = [0, 138], sizes = [4, 1000], strides = [1, 1]} : vector<4x1256xbf16> to vector<4x1000xbf16>
    %c64 = arith.constant 64 : index
    %c0_21 = arith.constant 0 : index
    %36 = vector.load %arg12[%c64, %c0_21] : memref<108x1000xbf16, #tpu.memory_space<vmem>>, vector<4x1000xbf16>
    tpu.vector_store %arg12[%c64, %c0_21], %35 {strides = array<i32>} : memref<108x1000xbf16, #tpu.memory_space<vmem>>, vector<4x1000xbf16>,
    %37 = vector.extract_strided_slice %2 {offsets = [0, 139], sizes = [4, 1000], strides = [1, 1]} : vector<4x1256xbf16> to vector<4x1000xbf16>
    %c68 = arith.constant 68 : index
    %c0_22 = arith.constant 0 : index
    %38 = vector.load %arg12[%c68, %c0_22] : memref<108x1000xbf16, #tpu.memory_space<vmem>>, vector<4x1000xbf16>
    tpu.vector_store %arg12[%c68, %c0_22], %37 {strides = array<i32>} : memref<108x1000xbf16, #tpu.memory_space<vmem>>, vector<4x1000xbf16>,
    %39 = vector.extract_strided_slice %2 {offsets = [0, 217], sizes = [4, 1000], strides = [1, 1]} : vector<4x1256xbf16> to vector<4x1000xbf16>
    %c72 = arith.constant 72 : index
    %c0_23 = arith.constant 0 : index
    %40 = vector.load %arg12[%c72, %c0_23] : memref<108x1000xbf16, #tpu.memory_space<vmem>>, vector<4x1000xbf16>
    tpu.vector_store %arg12[%c72, %c0_23], %39 {strides = array<i32>} : memref<108x1000xbf16, #tpu.memory_space<vmem>>, vector<4x1000xbf16>,
    %41 = vector.extract_strided_slice %2 {offsets = [0, 218], sizes = [4, 1000], strides = [1, 1]} : vector<4x1256xbf16> to vector<4x1000xbf16>
    %c76 = arith.constant 76 : index
    %c0_24 = arith.constant 0 : index
    %42 = vector.load %arg12[%c76, %c0_24] : memref<108x1000xbf16, #tpu.memory_space<vmem>>, vector<4x1000xbf16>
    tpu.vector_store %arg12[%c76, %c0_24], %41 {strides = array<i32>} : memref<108x1000xbf16, #tpu.memory_space<vmem>>, vector<4x1000xbf16>,
    %43 = vector.extract_strided_slice %2 {offsets = [0, 219], sizes = [4, 1000], strides = [1, 1]} : vector<4x1256xbf16> to vector<4x1000xbf16>
    %c80 = arith.constant 80 : index
    %c0_25 = arith.constant 0 : index
    %44 = vector.load %arg12[%c80, %c0_25] : memref<108x1000xbf16, #tpu.memory_space<vmem>>, vector<4x1000xbf16>
    tpu.vector_store %arg12[%c80, %c0_25], %43 {strides = array<i32>} : memref<108x1000xbf16, #tpu.memory_space<vmem>>, vector<4x1000xbf16>,
    %45 = vector.extract_strided_slice %2 {offsets = [0, 227], sizes = [4, 1000], strides = [1, 1]} : vector<4x1256xbf16> to vector<4x1000xbf16>
    %c84 = arith.constant 84 : index
    %c0_26 = arith.constant 0 : index
    %46 = vector.load %arg12[%c84, %c0_26] : memref<108x1000xbf16, #tpu.memory_space<vmem>>, vector<4x1000xbf16>
    tpu.vector_store %arg12[%c84, %c0_26], %45 {strides = array<i32>} : memref<108x1000xbf16, #tpu.memory_space<vmem>>, vector<4x1000xbf16>,
    %47 = vector.extract_strided_slice %2 {offsets = [0, 228], sizes = [4, 1000], strides = [1, 1]} : vector<4x1256xbf16> to vector<4x1000xbf16>
    %c88 = arith.constant 88 : index
    %c0_27 = arith.constant 0 : index
    %48 = vector.load %arg12[%c88, %c0_27] : memref<108x1000xbf16, #tpu.memory_space<vmem>>, vector<4x1000xbf16>
    tpu.vector_store %arg12[%c88, %c0_27], %47 {strides = array<i32>} : memref<108x1000xbf16, #tpu.memory_space<vmem>>, vector<4x1000xbf16>,
    %49 = vector.extract_strided_slice %2 {offsets = [0, 229], sizes = [4, 1000], strides = [1, 1]} : vector<4x1256xbf16> to vector<4x1000xbf16>
    %c92 = arith.constant 92 : index
    %c0_28 = arith.constant 0 : index
    %50 = vector.load %arg12[%c92, %c0_28] : memref<108x1000xbf16, #tpu.memory_space<vmem>>, vector<4x1000xbf16>
    tpu.vector_store %arg12[%c92, %c0_28], %49 {strides = array<i32>} : memref<108x1000xbf16, #tpu.memory_space<vmem>>, vector<4x1000xbf16>,
    %51 = vector.extract_strided_slice %2 {offsets = [0, 237], sizes = [4, 1000], strides = [1, 1]} : vector<4x1256xbf16> to vector<4x1000xbf16>
    %c96 = arith.constant 96 : index
    %c0_29 = arith.constant 0 : index
    %52 = vector.load %arg12[%c96, %c0_29] : memref<108x1000xbf16, #tpu.memory_space<vmem>>, vector<4x1000xbf16>
    tpu.vector_store %arg12[%c96, %c0_29], %51 {strides = array<i32>} : memref<108x1000xbf16, #tpu.memory_space<vmem>>, vector<4x1000xbf16>,
    %53 = vector.extract_strided_slice %2 {offsets = [0, 238], sizes = [4, 1000], strides = [1, 1]} : vector<4x1256xbf16> to vector<4x1000xbf16>
    %c100 = arith.constant 100 : index
    %c0_30 = arith.constant 0 : index
    %54 = vector.load %arg12[%c100, %c0_30] : memref<108x1000xbf16, #tpu.memory_space<vmem>>, vector<4x1000xbf16>
    tpu.vector_store %arg12[%c100, %c0_30], %53 {strides = array<i32>} : memref<108x1000xbf16, #tpu.memory_space<vmem>>, vector<4x1000xbf16>,
    %55 = vector.extract_strided_slice %2 {offsets = [0, 239], sizes = [4, 1000], strides = [1, 1]} : vector<4x1256xbf16> to vector<4x1000xbf16>
    %c104 = arith.constant 104 : index
    %c0_31 = arith.constant 0 : index
    %56 = vector.load %arg12[%c104, %c0_31] : memref<108x1000xbf16, #tpu.memory_space<vmem>>, vector<4x1000xbf16>
    tpu.vector_store %arg12[%c104, %c0_31], %55 {strides = array<i32>} : memref<108x1000xbf16, #tpu.memory_space<vmem>>, vector<4x1000xbf16>,
    %c0_32 = arith.constant 0 : index
    %c0_33 = arith.constant 0 : index
    %57 = vector.load %arg3[%c0_32, %c0_33] : memref<4x108xbf16, #tpu.memory_space<vmem>>, vector<4x108xbf16>
    %c0_34 = arith.constant 0 : index
    %c0_35 = arith.constant 0 : index
    %58 = vector.load %arg12[%c0_34, %c0_35] : memref<108x1000xbf16, #tpu.memory_space<vmem>>, vector<108x1000xbf16>
    %cst = arith.constant dense<0.000000e+00> : vector<4x1000xf32>
    %59 = tpu.matmul %57, %58, %cst {dimension_numbers = #tpu.dot_dimension_numbers<[1], [0], [0], [1], [0, 0, 1, 1], [], []>} : vector<4x108xbf16>, vector<108x1000xbf16>, vector<4x1000xf32> -> vector<4x1000xf32>
    %c0_36 = arith.constant 0 : index
    %c0_37 = arith.constant 0 : index
    %60 = vector.load %arg4[%c0_36, %c0_37] : memref<4x1xf32, #tpu.memory_space<vmem>>, vector<4x1xf32>
    %c0_38 = arith.constant 0 : index
    %c0_39 = arith.constant 0 : index
    %61 = vector.load %arg5[%c0_38, %c0_39] : memref<4x1xf32, #tpu.memory_space<vmem>>, vector<4x1xf32>
    %c0_40 = arith.constant 0 : index
    %c0_41 = arith.constant 0 : index
    %62 = vector.load %arg6[%c0_40, %c0_41] : memref<4x1xf32, #tpu.memory_space<vmem>>, vector<4x1xf32>
    %63 = vector.broadcast %0 : vector<1x1000xf32> to vector<4x1000xf32>
    %64 = arith.mulf %59, %63 : vector<4x1000xf32>
    %cst_42 = arith.constant dense<0.000000e+00> : vector<4xf32>
    %65 = vector.multi_reduction <add>, %64, %cst_42 [1] : vector<4x1000xf32> to vector<4xf32>
    %66 = vector.shape_cast %65 : vector<4xf32> to vector<4x1xf32>
    %cst_43 = arith.constant 0.001953125 : f32
    %67 = vector.broadcast %cst_43 : f32 to vector<4x1xf32>
    %68 = arith.mulf %66, %67 : vector<4x1xf32>
    %69 = arith.addf %68, %60 : vector<4x1xf32>
    %70 = vector.extract_strided_slice %69 {offsets = [0, 0], sizes = [2, 1], strides = [1, 1]} : vector<4x1xf32> to vector<2x1xf32>
    %cst_44 = arith.constant dense<0.000000e+00> : vector<1xf32>
    %71 = vector.multi_reduction <add>, %70, %cst_44 [0] : vector<2x1xf32> to vector<1xf32>
    %72 = vector.shape_cast %71 : vector<1xf32> to vector<1x1xf32>
    %cst_45 = arith.constant 2.000000e+00 : f32
    %73 = vector.broadcast %cst_45 : f32 to vector<1x1xf32>
    %74 = arith.divf %72, %73 : vector<1x1xf32>
    %75 = vector.extract_strided_slice %69 {offsets = [2, 0], sizes = [2, 1], strides = [1, 1]} : vector<4x1xf32> to vector<2x1xf32>
    %cst_46 = arith.constant dense<0.000000e+00> : vector<1xf32>
    %76 = vector.multi_reduction <add>, %75, %cst_46 [0] : vector<2x1xf32> to vector<1xf32>
    %77 = vector.shape_cast %76 : vector<1xf32> to vector<1x1xf32>
    %cst_47 = arith.constant 2.000000e+00 : f32
    %78 = vector.broadcast %cst_47 : f32 to vector<1x1xf32>
    %79 = arith.divf %77, %78 : vector<1x1xf32>
    %80 = vector.shape_cast %74 : vector<1x1xf32> to vector<1x1xf32>
    %81 = vector.broadcast %80 : vector<1x1xf32> to vector<2x1xf32>
    %82 = vector.shape_cast %79 : vector<1x1xf32> to vector<1x1xf32>
    %83 = vector.broadcast %82 : vector<1x1xf32> to vector<2x1xf32>
    %84 = tpu.concatenate %81, %83 in 0 : vector<2x1xf32>, vector<2x1xf32> -> vector<4x1xf32>
    %85 = arith.subf %60, %84 : vector<4x1xf32>
    %86 = vector.broadcast %85 : vector<4x1xf32> to vector<4x1000xf32>
    %87 = arith.addf %64, %86 : vector<4x1000xf32>
    %88 = vector.broadcast %0 : vector<1x1000xf32> to vector<4x1000xf32>
    %89 = arith.mulf %87, %88 : vector<4x1000xf32>
    %90 = arith.mulf %89, %89 : vector<4x1000xf32>
    %cst_48 = arith.constant dense<0.000000e+00> : vector<4xf32>
    %91 = vector.multi_reduction <add>, %90, %cst_48 [1] : vector<4x1000xf32> to vector<4xf32>
    %92 = vector.shape_cast %91 : vector<4xf32> to vector<4x1xf32>
    %cst_49 = arith.constant 0.001953125 : f32
    %93 = vector.broadcast %cst_49 : f32 to vector<4x1xf32>
    %94 = arith.mulf %92, %93 : vector<4x1xf32>
    %95 = vector.extract_strided_slice %94 {offsets = [0, 0], sizes = [2, 1], strides = [1, 1]} : vector<4x1xf32> to vector<2x1xf32>
    %cst_50 = arith.constant dense<0.000000e+00> : vector<1xf32>
    %96 = vector.multi_reduction <add>, %95, %cst_50 [0] : vector<2x1xf32> to vector<1xf32>
    %97 = vector.shape_cast %96 : vector<1xf32> to vector<1x1xf32>
    %cst_51 = arith.constant 2.000000e+00 : f32
    %98 = vector.broadcast %cst_51 : f32 to vector<1x1xf32>
    %99 = arith.divf %97, %98 : vector<1x1xf32>
    %100 = vector.extract_strided_slice %94 {offsets = [2, 0], sizes = [2, 1], strides = [1, 1]} : vector<4x1xf32> to vector<2x1xf32>
    %cst_52 = arith.constant dense<0.000000e+00> : vector<1xf32>
    %101 = vector.multi_reduction <add>, %100, %cst_52 [0] : vector<2x1xf32> to vector<1xf32>
    %102 = vector.shape_cast %101 : vector<1xf32> to vector<1x1xf32>
    %cst_53 = arith.constant 2.000000e+00 : f32
    %103 = vector.broadcast %cst_53 : f32 to vector<1x1xf32>
    %104 = arith.divf %102, %103 : vector<1x1xf32>
    %105 = vector.shape_cast %99 : vector<1x1xf32> to vector<1x1xf32>
    %106 = vector.broadcast %105 : vector<1x1xf32> to vector<2x1xf32>
    %107 = vector.shape_cast %104 : vector<1x1xf32> to vector<1x1xf32>
    %108 = vector.broadcast %107 : vector<1x1xf32> to vector<2x1xf32>
    %109 = tpu.concatenate %106, %108 in 0 : vector<2x1xf32>, vector<2x1xf32> -> vector<4x1xf32>
    %cst_54 = arith.constant 9.99999974E-6 : f32
    %110 = vector.broadcast %cst_54 : f32 to vector<4x1xf32>
    %111 = arith.addf %109, %110 : vector<4x1xf32>
    %112 = math.rsqrt %111 : vector<4x1xf32>
    %113 = arith.mulf %61, %112 : vector<4x1xf32>
    %114 = vector.broadcast %113 : vector<4x1xf32> to vector<4x1000xf32>
    %115 = arith.mulf %89, %114 : vector<4x1000xf32>
    %116 = vector.broadcast %62 : vector<4x1xf32> to vector<4x1000xf32>
    %117 = arith.addf %115, %116 : vector<4x1000xf32>
    %cst_55 = arith.constant 0.000000e+00 : f32
    %118 = vector.broadcast %cst_55 : f32 to vector<4x1000xf32>
    %119 = arith.maximumf %117, %118 : vector<4x1000xf32>
    %120 = vector.broadcast %0 : vector<1x1000xf32> to vector<4x1000xf32>
    %121 = arith.mulf %119, %120 : vector<4x1000xf32>
    %cst_56 = arith.constant 0.000000e+00 : bf16
    %122 = vector.broadcast %cst_56 : bf16 to vector<4x128xbf16>
    %c0_57 = arith.constant 0 : index
    %c0_58 = arith.constant 0 : index
    %123 = vector.load %arg14[%c0_57, %c0_58] : memref<4x1256xbf16, #tpu.memory_space<vmem>>, vector<4x128xbf16>
    tpu.vector_store %arg14[%c0_57, %c0_58], %122 {strides = array<i32>} : memref<4x1256xbf16, #tpu.memory_space<vmem>>, vector<4x128xbf16>,
    %cst_59 = arith.constant 0.000000e+00 : bf16
    %124 = vector.broadcast %cst_59 : bf16 to vector<4x128xbf16>
    %c0_60 = arith.constant 0 : index
    %c1128 = arith.constant 1128 : index
    %125 = vector.load %arg14[%c0_60, %c1128] : memref<4x1256xbf16, #tpu.memory_space<vmem>>, vector<4x128xbf16>
    tpu.vector_store %arg14[%c0_60, %c1128], %124 {strides = array<i32>} : memref<4x1256xbf16, #tpu.memory_space<vmem>>, vector<4x128xbf16>,
    %126 = arith.truncf %121 : vector<4x1000xf32> to vector<4x1000xbf16>
    %c0_61 = arith.constant 0 : index
    %c128 = arith.constant 128 : index
    %127 = vector.load %arg14[%c0_61, %c128] : memref<4x1256xbf16, #tpu.memory_space<vmem>>, vector<4x1000xbf16>
    tpu.vector_store %arg14[%c0_61, %c128], %126 {strides = array<i32>} : memref<4x1256xbf16, #tpu.memory_space<vmem>>, vector<4x1000xbf16>,
    %c0_62 = arith.constant 0 : index
    %c0_63 = arith.constant 0 : index
    %128 = vector.load %arg14[%c0_62, %c0_63] : memref<4x1256xbf16, #tpu.memory_space<vmem>>, vector<4x1256xbf16>
    %129 = vector.extract_strided_slice %128 {offsets = [0, 17], sizes = [4, 1000], strides = [1, 1]} : vector<4x1256xbf16> to vector<4x1000xbf16>
    %c0_64 = arith.constant 0 : index
    %c0_65 = arith.constant 0 : index
    %130 = vector.load %arg13[%c0_64, %c0_65] : memref<108x1000xbf16, #tpu.memory_space<vmem>>, vector<4x1000xbf16>
    tpu.vector_store %arg13[%c0_64, %c0_65], %129 {strides = array<i32>} : memref<108x1000xbf16, #tpu.memory_space<vmem>>, vector<4x1000xbf16>,
    %131 = vector.extract_strided_slice %128 {offsets = [0, 18], sizes = [4, 1000], strides = [1, 1]} : vector<4x1256xbf16> to vector<4x1000xbf16>
    %c4_66 = arith.constant 4 : index
    %c0_67 = arith.constant 0 : index
    %132 = vector.load %arg13[%c4_66, %c0_67] : memref<108x1000xbf16, #tpu.memory_space<vmem>>, vector<4x1000xbf16>
    tpu.vector_store %arg13[%c4_66, %c0_67], %131 {strides = array<i32>} : memref<108x1000xbf16, #tpu.memory_space<vmem>>, vector<4x1000xbf16>,
    %133 = vector.extract_strided_slice %128 {offsets = [0, 19], sizes = [4, 1000], strides = [1, 1]} : vector<4x1256xbf16> to vector<4x1000xbf16>
    %c8_68 = arith.constant 8 : index
    %c0_69 = arith.constant 0 : index
    %134 = vector.load %arg13[%c8_68, %c0_69] : memref<108x1000xbf16, #tpu.memory_space<vmem>>, vector<4x1000xbf16>
    tpu.vector_store %arg13[%c8_68, %c0_69], %133 {strides = array<i32>} : memref<108x1000xbf16, #tpu.memory_space<vmem>>, vector<4x1000xbf16>,
    %135 = vector.extract_strided_slice %128 {offsets = [0, 27], sizes = [4, 1000], strides = [1, 1]} : vector<4x1256xbf16> to vector<4x1000xbf16>
    %c12_70 = arith.constant 12 : index
    %c0_71 = arith.constant 0 : index
    %136 = vector.load %arg13[%c12_70, %c0_71] : memref<108x1000xbf16, #tpu.memory_space<vmem>>, vector<4x1000xbf16>
    tpu.vector_store %arg13[%c12_70, %c0_71], %135 {strides = array<i32>} : memref<108x1000xbf16, #tpu.memory_space<vmem>>, vector<4x1000xbf16>,
    %137 = vector.extract_strided_slice %128 {offsets = [0, 28], sizes = [4, 1000], strides = [1, 1]} : vector<4x1256xbf16> to vector<4x1000xbf16>
    %c16_72 = arith.constant 16 : index
    %c0_73 = arith.constant 0 : index
    %138 = vector.load %arg13[%c16_72, %c0_73] : memref<108x1000xbf16, #tpu.memory_space<vmem>>, vector<4x1000xbf16>
    tpu.vector_store %arg13[%c16_72, %c0_73], %137 {strides = array<i32>} : memref<108x1000xbf16, #tpu.memory_space<vmem>>, vector<4x1000xbf16>,
    %139 = vector.extract_strided_slice %128 {offsets = [0, 29], sizes = [4, 1000], strides = [1, 1]} : vector<4x1256xbf16> to vector<4x1000xbf16>
    %c20_74 = arith.constant 20 : index
    %c0_75 = arith.constant 0 : index
    %140 = vector.load %arg13[%c20_74, %c0_75] : memref<108x1000xbf16, #tpu.memory_space<vmem>>, vector<4x1000xbf16>
    tpu.vector_store %arg13[%c20_74, %c0_75], %139 {strides = array<i32>} : memref<108x1000xbf16, #tpu.memory_space<vmem>>, vector<4x1000xbf16>,
    %141 = vector.extract_strided_slice %128 {offsets = [0, 37], sizes = [4, 1000], strides = [1, 1]} : vector<4x1256xbf16> to vector<4x1000xbf16>
    %c24_76 = arith.constant 24 : index
    %c0_77 = arith.constant 0 : index
    %142 = vector.load %arg13[%c24_76, %c0_77] : memref<108x1000xbf16, #tpu.memory_space<vmem>>, vector<4x1000xbf16>
    tpu.vector_store %arg13[%c24_76, %c0_77], %141 {strides = array<i32>} : memref<108x1000xbf16, #tpu.memory_space<vmem>>, vector<4x1000xbf16>,
    %143 = vector.extract_strided_slice %128 {offsets = [0, 38], sizes = [4, 1000], strides = [1, 1]} : vector<4x1256xbf16> to vector<4x1000xbf16>
    %c28_78 = arith.constant 28 : index
    %c0_79 = arith.constant 0 : index
    %144 = vector.load %arg13[%c28_78, %c0_79] : memref<108x1000xbf16, #tpu.memory_space<vmem>>, vector<4x1000xbf16>
    tpu.vector_store %arg13[%c28_78, %c0_79], %143 {strides = array<i32>} : memref<108x1000xbf16, #tpu.memory_space<vmem>>, vector<4x1000xbf16>,
    %145 = vector.extract_strided_slice %128 {offsets = [0, 39], sizes = [4, 1000], strides = [1, 1]} : vector<4x1256xbf16> to vector<4x1000xbf16>
    %c32_80 = arith.constant 32 : index
    %c0_81 = arith.constant 0 : index
    %146 = vector.load %arg13[%c32_80, %c0_81] : memref<108x1000xbf16, #tpu.memory_space<vmem>>, vector<4x1000xbf16>
    tpu.vector_store %arg13[%c32_80, %c0_81], %145 {strides = array<i32>} : memref<108x1000xbf16, #tpu.memory_space<vmem>>, vector<4x1000xbf16>,
    %147 = vector.extract_strided_slice %128 {offsets = [0, 117], sizes = [4, 1000], strides = [1, 1]} : vector<4x1256xbf16> to vector<4x1000xbf16>
    %c36_82 = arith.constant 36 : index
    %c0_83 = arith.constant 0 : index
    %148 = vector.load %arg13[%c36_82, %c0_83] : memref<108x1000xbf16, #tpu.memory_space<vmem>>, vector<4x1000xbf16>
    tpu.vector_store %arg13[%c36_82, %c0_83], %147 {strides = array<i32>} : memref<108x1000xbf16, #tpu.memory_space<vmem>>, vector<4x1000xbf16>,
    %149 = vector.extract_strided_slice %128 {offsets = [0, 118], sizes = [4, 1000], strides = [1, 1]} : vector<4x1256xbf16> to vector<4x1000xbf16>
    %c40_84 = arith.constant 40 : index
    %c0_85 = arith.constant 0 : index
    %150 = vector.load %arg13[%c40_84, %c0_85] : memref<108x1000xbf16, #tpu.memory_space<vmem>>, vector<4x1000xbf16>
    tpu.vector_store %arg13[%c40_84, %c0_85], %149 {strides = array<i32>} : memref<108x1000xbf16, #tpu.memory_space<vmem>>, vector<4x1000xbf16>,
    %151 = vector.extract_strided_slice %128 {offsets = [0, 119], sizes = [4, 1000], strides = [1, 1]} : vector<4x1256xbf16> to vector<4x1000xbf16>
    %c44_86 = arith.constant 44 : index
    %c0_87 = arith.constant 0 : index
    %152 = vector.load %arg13[%c44_86, %c0_87] : memref<108x1000xbf16, #tpu.memory_space<vmem>>, vector<4x1000xbf16>
    tpu.vector_store %arg13[%c44_86, %c0_87], %151 {strides = array<i32>} : memref<108x1000xbf16, #tpu.memory_space<vmem>>, vector<4x1000xbf16>,
    %153 = vector.extract_strided_slice %128 {offsets = [0, 127], sizes = [4, 1000], strides = [1, 1]} : vector<4x1256xbf16> to vector<4x1000xbf16>
    %c48_88 = arith.constant 48 : index
    %c0_89 = arith.constant 0 : index
    %154 = vector.load %arg13[%c48_88, %c0_89] : memref<108x1000xbf16, #tpu.memory_space<vmem>>, vector<4x1000xbf16>
    tpu.vector_store %arg13[%c48_88, %c0_89], %153 {strides = array<i32>} : memref<108x1000xbf16, #tpu.memory_space<vmem>>, vector<4x1000xbf16>,
    %155 = vector.extract_strided_slice %128 {offsets = [0, 128], sizes = [4, 1000], strides = [1, 1]} : vector<4x1256xbf16> to vector<4x1000xbf16>
    %c52_90 = arith.constant 52 : index
    %c0_91 = arith.constant 0 : index
    %156 = vector.load %arg13[%c52_90, %c0_91] : memref<108x1000xbf16, #tpu.memory_space<vmem>>, vector<4x1000xbf16>
    tpu.vector_store %arg13[%c52_90, %c0_91], %155 {strides = array<i32>} : memref<108x1000xbf16, #tpu.memory_space<vmem>>, vector<4x1000xbf16>,
    %157 = vector.extract_strided_slice %128 {offsets = [0, 129], sizes = [4, 1000], strides = [1, 1]} : vector<4x1256xbf16> to vector<4x1000xbf16>
    %c56_92 = arith.constant 56 : index
    %c0_93 = arith.constant 0 : index
    %158 = vector.load %arg13[%c56_92, %c0_93] : memref<108x1000xbf16, #tpu.memory_space<vmem>>, vector<4x1000xbf16>
    tpu.vector_store %arg13[%c56_92, %c0_93], %157 {strides = array<i32>} : memref<108x1000xbf16, #tpu.memory_space<vmem>>, vector<4x1000xbf16>,
    %159 = vector.extract_strided_slice %128 {offsets = [0, 137], sizes = [4, 1000], strides = [1, 1]} : vector<4x1256xbf16> to vector<4x1000xbf16>
    %c60_94 = arith.constant 60 : index
    %c0_95 = arith.constant 0 : index
    %160 = vector.load %arg13[%c60_94, %c0_95] : memref<108x1000xbf16, #tpu.memory_space<vmem>>, vector<4x1000xbf16>
    tpu.vector_store %arg13[%c60_94, %c0_95], %159 {strides = array<i32>} : memref<108x1000xbf16, #tpu.memory_space<vmem>>, vector<4x1000xbf16>,
    %161 = vector.extract_strided_slice %128 {offsets = [0, 138], sizes = [4, 1000], strides = [1, 1]} : vector<4x1256xbf16> to vector<4x1000xbf16>
    %c64_96 = arith.constant 64 : index
    %c0_97 = arith.constant 0 : index
    %162 = vector.load %arg13[%c64_96, %c0_97] : memref<108x1000xbf16, #tpu.memory_space<vmem>>, vector<4x1000xbf16>
    tpu.vector_store %arg13[%c64_96, %c0_97], %161 {strides = array<i32>} : memref<108x1000xbf16, #tpu.memory_space<vmem>>, vector<4x1000xbf16>,
    %163 = vector.extract_strided_slice %128 {offsets = [0, 139], sizes = [4, 1000], strides = [1, 1]} : vector<4x1256xbf16> to vector<4x1000xbf16>
    %c68_98 = arith.constant 68 : index
    %c0_99 = arith.constant 0 : index
    %164 = vector.load %arg13[%c68_98, %c0_99] : memref<108x1000xbf16, #tpu.memory_space<vmem>>, vector<4x1000xbf16>
    tpu.vector_store %arg13[%c68_98, %c0_99], %163 {strides = array<i32>} : memref<108x1000xbf16, #tpu.memory_space<vmem>>, vector<4x1000xbf16>,
    %165 = vector.extract_strided_slice %128 {offsets = [0, 217], sizes = [4, 1000], strides = [1, 1]} : vector<4x1256xbf16> to vector<4x1000xbf16>
    %c72_100 = arith.constant 72 : index
    %c0_101 = arith.constant 0 : index
    %166 = vector.load %arg13[%c72_100, %c0_101] : memref<108x1000xbf16, #tpu.memory_space<vmem>>, vector<4x1000xbf16>
    tpu.vector_store %arg13[%c72_100, %c0_101], %165 {strides = array<i32>} : memref<108x1000xbf16, #tpu.memory_space<vmem>>, vector<4x1000xbf16>,
    %167 = vector.extract_strided_slice %128 {offsets = [0, 218], sizes = [4, 1000], strides = [1, 1]} : vector<4x1256xbf16> to vector<4x1000xbf16>
    %c76_102 = arith.constant 76 : index
    %c0_103 = arith.constant 0 : index
    %168 = vector.load %arg13[%c76_102, %c0_103] : memref<108x1000xbf16, #tpu.memory_space<vmem>>, vector<4x1000xbf16>
    tpu.vector_store %arg13[%c76_102, %c0_103], %167 {strides = array<i32>} : memref<108x1000xbf16, #tpu.memory_space<vmem>>, vector<4x1000xbf16>,
    %169 = vector.extract_strided_slice %128 {offsets = [0, 219], sizes = [4, 1000], strides = [1, 1]} : vector<4x1256xbf16> to vector<4x1000xbf16>
    %c80_104 = arith.constant 80 : index
    %c0_105 = arith.constant 0 : index
    %170 = vector.load %arg13[%c80_104, %c0_105] : memref<108x1000xbf16, #tpu.memory_space<vmem>>, vector<4x1000xbf16>
    tpu.vector_store %arg13[%c80_104, %c0_105], %169 {strides = array<i32>} : memref<108x1000xbf16, #tpu.memory_space<vmem>>, vector<4x1000xbf16>,
    %171 = vector.extract_strided_slice %128 {offsets = [0, 227], sizes = [4, 1000], strides = [1, 1]} : vector<4x1256xbf16> to vector<4x1000xbf16>
    %c84_106 = arith.constant 84 : index
    %c0_107 = arith.constant 0 : index
    %172 = vector.load %arg13[%c84_106, %c0_107] : memref<108x1000xbf16, #tpu.memory_space<vmem>>, vector<4x1000xbf16>
    tpu.vector_store %arg13[%c84_106, %c0_107], %171 {strides = array<i32>} : memref<108x1000xbf16, #tpu.memory_space<vmem>>, vector<4x1000xbf16>,
    %173 = vector.extract_strided_slice %128 {offsets = [0, 228], sizes = [4, 1000], strides = [1, 1]} : vector<4x1256xbf16> to vector<4x1000xbf16>
    %c88_108 = arith.constant 88 : index
    %c0_109 = arith.constant 0 : index
    %174 = vector.load %arg13[%c88_108, %c0_109] : memref<108x1000xbf16, #tpu.memory_space<vmem>>, vector<4x1000xbf16>
    tpu.vector_store %arg13[%c88_108, %c0_109], %173 {strides = array<i32>} : memref<108x1000xbf16, #tpu.memory_space<vmem>>, vector<4x1000xbf16>,
    %175 = vector.extract_strided_slice %128 {offsets = [0, 229], sizes = [4, 1000], strides = [1, 1]} : vector<4x1256xbf16> to vector<4x1000xbf16>
    %c92_110 = arith.constant 92 : index
    %c0_111 = arith.constant 0 : index
    %176 = vector.load %arg13[%c92_110, %c0_111] : memref<108x1000xbf16, #tpu.memory_space<vmem>>, vector<4x1000xbf16>
    tpu.vector_store %arg13[%c92_110, %c0_111], %175 {strides = array<i32>} : memref<108x1000xbf16, #tpu.memory_space<vmem>>, vector<4x1000xbf16>,
    %177 = vector.extract_strided_slice %128 {offsets = [0, 237], sizes = [4, 1000], strides = [1, 1]} : vector<4x1256xbf16> to vector<4x1000xbf16>
    %c96_112 = arith.constant 96 : index
    %c0_113 = arith.constant 0 : index
    %178 = vector.load %arg13[%c96_112, %c0_113] : memref<108x1000xbf16, #tpu.memory_space<vmem>>, vector<4x1000xbf16>
    tpu.vector_store %arg13[%c96_112, %c0_113], %177 {strides = array<i32>} : memref<108x1000xbf16, #tpu.memory_space<vmem>>, vector<4x1000xbf16>,
    %179 = vector.extract_strided_slice %128 {offsets = [0, 238], sizes = [4, 1000], strides = [1, 1]} : vector<4x1256xbf16> to vector<4x1000xbf16>
    %c100_114 = arith.constant 100 : index
    %c0_115 = arith.constant 0 : index
    %180 = vector.load %arg13[%c100_114, %c0_115] : memref<108x1000xbf16, #tpu.memory_space<vmem>>, vector<4x1000xbf16>
    tpu.vector_store %arg13[%c100_114, %c0_115], %179 {strides = array<i32>} : memref<108x1000xbf16, #tpu.memory_space<vmem>>, vector<4x1000xbf16>,
    %181 = vector.extract_strided_slice %128 {offsets = [0, 239], sizes = [4, 1000], strides = [1, 1]} : vector<4x1256xbf16> to vector<4x1000xbf16>
    %c104_116 = arith.constant 104 : index
    %c0_117 = arith.constant 0 : index
    %182 = vector.load %arg13[%c104_116, %c0_117] : memref<108x1000xbf16, #tpu.memory_space<vmem>>, vector<4x1000xbf16>
    tpu.vector_store %arg13[%c104_116, %c0_117], %181 {strides = array<i32>} : memref<108x1000xbf16, #tpu.memory_space<vmem>>, vector<4x1000xbf16>,
    %c0_118 = arith.constant 0 : index
    %c0_119 = arith.constant 0 : index
    %183 = vector.load %arg7[%c0_118, %c0_119] : memref<8x108xbf16, #tpu.memory_space<vmem>>, vector<8x108xbf16>
    %c0_120 = arith.constant 0 : index
    %c0_121 = arith.constant 0 : index
    %184 = vector.load %arg13[%c0_120, %c0_121] : memref<108x1000xbf16, #tpu.memory_space<vmem>>, vector<108x1000xbf16>
    %cst_122 = arith.constant dense<0.000000e+00> : vector<8x1000xf32>
    %185 = tpu.matmul %183, %184, %cst_122 {dimension_numbers = #tpu.dot_dimension_numbers<[1], [0], [0], [1], [0, 0, 1, 1], [], []>} : vector<8x108xbf16>, vector<108x1000xbf16>, vector<8x1000xf32> -> vector<8x1000xf32>
    %c0_123 = arith.constant 0 : index
    %c0_124 = arith.constant 0 : index
    %186 = vector.load %arg8[%c0_123, %c0_124] : memref<8x1xf32, #tpu.memory_space<vmem>>, vector<8x1xf32>
    %c0_125 = arith.constant 0 : index
    %c0_126 = arith.constant 0 : index
    %187 = vector.load %arg9[%c0_125, %c0_126] : memref<8x1xf32, #tpu.memory_space<vmem>>, vector<8x1xf32>
    %c0_127 = arith.constant 0 : index
    %c0_128 = arith.constant 0 : index
    %188 = vector.load %arg10[%c0_127, %c0_128] : memref<8x1xf32, #tpu.memory_space<vmem>>, vector<8x1xf32>
    %189 = vector.broadcast %0 : vector<1x1000xf32> to vector<8x1000xf32>
    %190 = arith.mulf %185, %189 : vector<8x1000xf32>
    %cst_129 = arith.constant dense<0.000000e+00> : vector<8xf32>
    %191 = vector.multi_reduction <add>, %190, %cst_129 [1] : vector<8x1000xf32> to vector<8xf32>
    %192 = vector.shape_cast %191 : vector<8xf32> to vector<8x1xf32>
    %cst_130 = arith.constant 0.001953125 : f32
    %193 = vector.broadcast %cst_130 : f32 to vector<8x1xf32>
    %194 = arith.mulf %192, %193 : vector<8x1xf32>
    %195 = arith.addf %194, %186 : vector<8x1xf32>
    %196 = vector.extract_strided_slice %195 {offsets = [0, 0], sizes = [4, 1], strides = [1, 1]} : vector<8x1xf32> to vector<4x1xf32>
    %cst_131 = arith.constant dense<0.000000e+00> : vector<1xf32>
    %197 = vector.multi_reduction <add>, %196, %cst_131 [0] : vector<4x1xf32> to vector<1xf32>
    %198 = vector.shape_cast %197 : vector<1xf32> to vector<1x1xf32>
    %cst_132 = arith.constant 4.000000e+00 : f32
    %199 = vector.broadcast %cst_132 : f32 to vector<1x1xf32>
    %200 = arith.divf %198, %199 : vector<1x1xf32>
    %201 = vector.extract_strided_slice %195 {offsets = [4, 0], sizes = [4, 1], strides = [1, 1]} : vector<8x1xf32> to vector<4x1xf32>
    %cst_133 = arith.constant dense<0.000000e+00> : vector<1xf32>
    %202 = vector.multi_reduction <add>, %201, %cst_133 [0] : vector<4x1xf32> to vector<1xf32>
    %203 = vector.shape_cast %202 : vector<1xf32> to vector<1x1xf32>
    %cst_134 = arith.constant 4.000000e+00 : f32
    %204 = vector.broadcast %cst_134 : f32 to vector<1x1xf32>
    %205 = arith.divf %203, %204 : vector<1x1xf32>
    %206 = vector.shape_cast %200 : vector<1x1xf32> to vector<1x1xf32>
    %207 = vector.broadcast %206 : vector<1x1xf32> to vector<4x1xf32>
    %208 = vector.shape_cast %205 : vector<1x1xf32> to vector<1x1xf32>
    %209 = vector.broadcast %208 : vector<1x1xf32> to vector<4x1xf32>
    %210 = tpu.concatenate %207, %209 in 0 : vector<4x1xf32>, vector<4x1xf32> -> vector<8x1xf32>
    %211 = arith.subf %186, %210 : vector<8x1xf32>
    %212 = vector.broadcast %211 : vector<8x1xf32> to vector<8x1000xf32>
    %213 = arith.addf %190, %212 : vector<8x1000xf32>
    %214 = vector.broadcast %0 : vector<1x1000xf32> to vector<8x1000xf32>
    %215 = arith.mulf %213, %214 : vector<8x1000xf32>
    %216 = arith.mulf %215, %215 : vector<8x1000xf32>
    %cst_135 = arith.constant dense<0.000000e+00> : vector<8xf32>
    %217 = vector.multi_reduction <add>, %216, %cst_135 [1] : vector<8x1000xf32> to vector<8xf32>
    %218 = vector.shape_cast %217 : vector<8xf32> to vector<8x1xf32>
    %cst_136 = arith.constant 0.001953125 : f32
    %219 = vector.broadcast %cst_136 : f32 to vector<8x1xf32>
    %220 = arith.mulf %218, %219 : vector<8x1xf32>
    %221 = vector.extract_strided_slice %220 {offsets = [0, 0], sizes = [4, 1], strides = [1, 1]} : vector<8x1xf32> to vector<4x1xf32>
    %cst_137 = arith.constant dense<0.000000e+00> : vector<1xf32>
    %222 = vector.multi_reduction <add>, %221, %cst_137 [0] : vector<4x1xf32> to vector<1xf32>
    %223 = vector.shape_cast %222 : vector<1xf32> to vector<1x1xf32>
    %cst_138 = arith.constant 4.000000e+00 : f32
    %224 = vector.broadcast %cst_138 : f32 to vector<1x1xf32>
    %225 = arith.divf %223, %224 : vector<1x1xf32>
    %226 = vector.extract_strided_slice %220 {offsets = [4, 0], sizes = [4, 1], strides = [1, 1]} : vector<8x1xf32> to vector<4x1xf32>
    %cst_139 = arith.constant dense<0.000000e+00> : vector<1xf32>
    %227 = vector.multi_reduction <add>, %226, %cst_139 [0] : vector<4x1xf32> to vector<1xf32>
    %228 = vector.shape_cast %227 : vector<1xf32> to vector<1x1xf32>
    %cst_140 = arith.constant 4.000000e+00 : f32
    %229 = vector.broadcast %cst_140 : f32 to vector<1x1xf32>
    %230 = arith.divf %228, %229 : vector<1x1xf32>
    %231 = vector.shape_cast %225 : vector<1x1xf32> to vector<1x1xf32>
    %232 = vector.broadcast %231 : vector<1x1xf32> to vector<4x1xf32>
    %233 = vector.shape_cast %230 : vector<1x1xf32> to vector<1x1xf32>
    %234 = vector.broadcast %233 : vector<1x1xf32> to vector<4x1xf32>
    %235 = tpu.concatenate %232, %234 in 0 : vector<4x1xf32>, vector<4x1xf32> -> vector<8x1xf32>
    %cst_141 = arith.constant 9.99999974E-6 : f32
    %236 = vector.broadcast %cst_141 : f32 to vector<8x1xf32>
    %237 = arith.addf %235, %236 : vector<8x1xf32>
    %238 = math.rsqrt %237 : vector<8x1xf32>
    %239 = arith.mulf %187, %238 : vector<8x1xf32>
    %240 = vector.broadcast %239 : vector<8x1xf32> to vector<8x1000xf32>
    %241 = arith.mulf %215, %240 : vector<8x1000xf32>
    %242 = vector.broadcast %188 : vector<8x1xf32> to vector<8x1000xf32>
    %243 = arith.addf %241, %242 : vector<8x1000xf32>
    %cst_142 = arith.constant 0.000000e+00 : f32
    %244 = vector.broadcast %cst_142 : f32 to vector<8x1000xf32>
    %245 = arith.maximumf %243, %244 : vector<8x1000xf32>
    %246 = vector.broadcast %0 : vector<1x1000xf32> to vector<8x1000xf32>
    %247 = arith.mulf %245, %246 : vector<8x1000xf32>
    %c0_143 = arith.constant 0 : index
    %c0_144 = arith.constant 0 : index
    %c0_145 = arith.constant 0 : index
    %248 = vector.load %arg11[%c0_143, %c0_144, %c0_145] : memref<1x8x1000xf32, #tpu.memory_space<vmem>>, vector<1x8x1000xf32>
    %249 = vector.shape_cast %248 : vector<1x8x1000xf32> to vector<8x1000xf32>
    %250 = vector.shape_cast %247 : vector<8x1000xf32> to vector<1x8x1000xf32>
    tpu.vector_store %arg11[%c0_143, %c0_144, %c0_145], %250 {strides = array<i32>} : memref<1x8x1000xf32, #tpu.memory_space<vmem>>, vector<1x8x1000xf32>,
    return
  }
  func.func @transform_0(%arg0: i32) -> (i32, i32, i32) {
    %c0_i32 = arith.constant 0 : i32
    %c0_i32_0 = arith.constant 0 : i32
    %c0_i32_1 = arith.constant 0 : i32
    return %arg0, %c0_i32, %c0_i32_0 : i32, i32, i32
  }
  func.func @transform_1(%arg0: i32) -> (i32, i32) {
    %c0_i32 = arith.constant 0 : i32
    %c0_i32_0 = arith.constant 0 : i32
    %c0_i32_1 = arith.constant 0 : i32
    return %c0_i32, %c0_i32_0 : i32, i32
  }
  func.func @transform_2(%arg0: i32) -> (i32, i32) {
    %c0_i32 = arith.constant 0 : i32
    %c0_i32_0 = arith.constant 0 : i32
    %c0_i32_1 = arith.constant 0 : i32
    return %c0_i32, %c0_i32_0 : i32, i32
  }
  func.func @transform_3(%arg0: i32) -> (i32, i32) {
    %c0_i32 = arith.constant 0 : i32
    %c0_i32_0 = arith.constant 0 : i32
    %c0_i32_1 = arith.constant 0 : i32
    return %c0_i32, %c0_i32_0 : i32, i32
  }
  func.func @transform_4(%arg0: i32) -> (i32, i32) {
    %c0_i32 = arith.constant 0 : i32
    %c0_i32_0 = arith.constant 0 : i32
    %c0_i32_1 = arith.constant 0 : i32
    return %c0_i32, %c0_i32_0 : i32, i32
  }
  func.func @transform_5(%arg0: i32) -> (i32, i32) {
    %c0_i32 = arith.constant 0 : i32
    %c0_i32_0 = arith.constant 0 : i32
    %c0_i32_1 = arith.constant 0 : i32
    return %c0_i32, %c0_i32_0 : i32, i32
  }
  func.func @transform_6(%arg0: i32) -> (i32, i32) {
    %c0_i32 = arith.constant 0 : i32
    %c0_i32_0 = arith.constant 0 : i32
    %c0_i32_1 = arith.constant 0 : i32
    return %c0_i32, %c0_i32_0 : i32, i32
  }
  func.func @transform_7(%arg0: i32) -> (i32, i32) {
    %c0_i32 = arith.constant 0 : i32
    %c0_i32_0 = arith.constant 0 : i32
    %c0_i32_1 = arith.constant 0 : i32
    return %c0_i32, %c0_i32_0 : i32, i32
  }
  func.func @transform_8(%arg0: i32) -> (i32, i32) {
    %c0_i32 = arith.constant 0 : i32
    %c0_i32_0 = arith.constant 0 : i32
    %c0_i32_1 = arith.constant 0 : i32
    return %c0_i32, %c0_i32_0 : i32, i32
  }
  func.func @transform_9(%arg0: i32) -> (i32, i32) {
    %c0_i32 = arith.constant 0 : i32
    %c0_i32_0 = arith.constant 0 : i32
    %c0_i32_1 = arith.constant 0 : i32
    return %c0_i32, %c0_i32_0 : i32, i32
  }
  func.func @transform_10(%arg0: i32) -> (i32, i32, i32) {
    %c0_i32 = arith.constant 0 : i32
    %c0_i32_0 = arith.constant 0 : i32
    %c0_i32_1 = arith.constant 0 : i32
    return %arg0, %c0_i32, %c0_i32_0 : i32, i32, i32
  }
}

</mosaic_0001>

<llo_original>
// kernel: tpu_custom_call.1
$region0: #{tpu_custom_call.1}
  #allocation0 [shape = 'u32[]', space=smem, size = 0x4, offset = 0x4, fixed_abs, tag = 'smem constant byte address 0x4 - core index']
  #allocation1 [shape = 'u32[144,128]{1,0:T(1,128)}', space=vmem, size = 0x12000, scoped, tag = 'internal scratch']
  #allocation2 [shape = 'bf16[108,1000]{1,0:T(8,128)(2,1)}', space=vmem, size = 0x38000, scoped, tag = 'scratch operand']
  #allocation3 [shape = 'bf16[108,1000]{1,0:T(8,128)(2,1)}', space=vmem, size = 0x38000, scoped, tag = 'scratch operand']
  #allocation4 [shape = 'bf16[4,1256]{1,0:T(4,128)(2,1)}', space=vmem, size = 0x2800, scoped, tag = 'scratch operand']
  %s0 = inlined_call_operand.vmem [shape: bf16[2,4,1256], index: 0, kind: input, shape index: {}]
  %s1 = inlined_call_operand.hbm [shape: f32[1,1000], index: 1, kind: input, shape index: {}]
  %s2 = inlined_call_operand.vmem [shape: bf16[4,108], index: 2, kind: input, shape index: {}]
  %s3 = inlined_call_operand.vmem [shape: f32[4,1], index: 3, kind: input, shape index: {}]
  %s4 = inlined_call_operand.vmem [shape: f32[4,1], index: 4, kind: input, shape index: {}]
  %s5 = inlined_call_operand.vmem [shape: f32[4,1], index: 5, kind: input, shape index: {}]
  %s6 = inlined_call_operand.vmem [shape: bf16[8,108], index: 6, kind: input, shape index: {}]
  %s7 = inlined_call_operand.vmem [shape: f32[8,1], index: 7, kind: input, shape index: {}]
  %s8 = inlined_call_operand.vmem [shape: f32[8,1], index: 8, kind: input, shape index: {}]
  %s9 = inlined_call_operand.vmem [shape: f32[8,1], index: 9, kind: input, shape index: {}]
  %s10 = inlined_call_operand.hbm [shape: f32[2,8,1000], index: 10, kind: output, shape index: {}]
  %s11 = sld [smem:[#allocation0]]
  $region77: #{tpu_custom_call.1} parent=0
    _
  %s13 = ssub.s32 1, %s11
  %s14 = scalar_select 0, %s13, %s11
  $region1: #{tpu_custom_call.1} parent=0
    #allocation5 [shape = 'u8[4096]{0}', space=vmem, size = 0x1000, scoped, tag = 'input window, operand 1, single buffered']
    #allocation6 [shape = 's32[2]{0}', space=sflag, size = 0x8, scoped, tag = 'scoped memory for tpu_custom_call.1']
    #allocation7 [shape = 's32[2]{0}', space=sflag, size = 0x8, scoped, tag = 'scoped memory for tpu_custom_call.1']
    #allocation8 [shape = 'u8[65536]{0}', space=vmem, size = 0x10000, scoped, tag = 'output window, operand 0']
    %15 = vsyncpa [#allocation6], 0
    %16 = vsyncpa [#allocation7], 0
    %s17 = scalar_lea.sflag [#allocation7], 1
    %18 = vsyncpa %s17, 0
    loop: start=0, step=1, limit=4
    $region2: #{tpu_custom_call.1} parent=1 // loop_pre_header
      _
    $region3: #{tpu_custom_call.1} parent=1 // loop_header
      %s20 = sphi 0, %s24
      %p21 = scmp.ge.s32.totalorder %s20, 4
      %s30 = sphi 0, %s32
      %s33 = sphi 0, %s30
      %s34 = sphi 0, %s33
      %s50 = sphi 0, %s34
      %s54 = sphi 0, %s54
      %s56 = sphi 0, %s54
      %s57 = sphi 0, %s56
      %s71 = sphi 0, %s57
      %s75 = sphi 0, %s75
      %s77 = sphi 0, %s75
      %s78 = sphi 0, %s77
      %s92 = sphi 0, %s78
      %s96 = sphi 0, %s96
      %s98 = sphi 0, %s96
      %s99 = sphi 0, %s98
      %s113 = sphi 0, %s99
      %s117 = sphi 0, %s117
      %s119 = sphi 0, %s117
      %s120 = sphi 0, %s119
      %s134 = sphi 0, %s120
      %s138 = sphi 0, %s138
      %s140 = sphi 0, %s138
      %s141 = sphi 0, %s140
      %s155 = sphi 0, %s141
      %s159 = sphi 0, %s159
      %s161 = sphi 0, %s159
      %s162 = sphi 0, %s161
      %s176 = sphi 0, %s162
      %s180 = sphi 0, %s180
      %s182 = sphi 0, %s180
      %s183 = sphi 0, %s182
      %s197 = sphi 0, %s183
      %s201 = sphi 0, %s201
      %s203 = sphi 0, %s201
      %s204 = sphi 0, %s203
      %s218 = sphi 0, %s204
      %s222 = sphi 0, %s222
      %s224 = sphi 0, %s222
      %s225 = sphi 0, %s224
      %s239 = sphi 0, %s225
      %s245 = sphi 0, %s247
      %s248 = sphi 0, %s245
      %s249 = sphi 0, %s248
      %s265 = sphi 0, %s249
    $region4: #{tpu_custom_call.1} parent=1 // loop_header_branch
      %23 = sbr.rel (%p21) target = $region8
    $region5: #{tpu_custom_call.1} parent=1 // loop_body
      %s25 = ssub.s32 %s20, 1
      %s26 = ssub.s32 %s20, 2
      %s27 = sadd.s32 %s20, 1
      %s28 = ssub.s32 %s20, %s27
      %p29 = scmp.eq.s32.totalorder %s28, 0
      %s31 = sadd.s32 %s30, 1
      %s32 = scalar_select %p29, %s30, %s31
      %p35 = pneg %p29
      %p36 = scmp.eq.s32.totalorder %s20, 1
      %p37 = por %p35, %p36
      %p38 = scmp.ne.s32.totalorder %s30, %s33
      %p39 = scmp.eq.s32.totalorder %s20, 0
      %p40 = por %p38, %p39
      %p41 = scmp.ne.s32.totalorder %s30, %s33
      %p42 = scmp.eq.s32.totalorder %s25, 1
      %p43 = por %p41, %p42
      %p44 = scmp.ne.s32.totalorder %s33, %s34
      %p45 = scmp.eq.s32.totalorder %s25, 0
      %p46 = por %p44, %p45
      %p47 = scmp.ne.s32.totalorder %s33, %s34
      %p48 = scmp.eq.s32.totalorder %s26, 1
      %p49 = por %p47, %p48
      %p51 = scmp.ne.s32.totalorder %s34, %s50
      %p52 = scmp.eq.s32.totalorder %s26, 0
      %p53 = por %p51, %p52
      %s55 = sadd.s32 %s54, 1
      %p58 = scmp.eq.s32.totalorder %s20, 1
      %p59 = scmp.ne.s32.totalorder %s54, %s56
      %p60 = scmp.eq.s32.totalorder %s20, 0
      %p61 = por %p59, %p60
      %p62 = scmp.ne.s32.totalorder %s54, %s56
      %p63 = scmp.eq.s32.totalorder %s25, 1
      %p64 = por %p62, %p63
      %p65 = scmp.ne.s32.totalorder %s56, %s57
      %p66 = scmp.eq.s32.totalorder %s25, 0
      %p67 = por %p65, %p66
      %p68 = scmp.ne.s32.totalorder %s56, %s57
      %p69 = scmp.eq.s32.totalorder %s26, 1
      %p70 = por %p68, %p69
      %p72 = scmp.ne.s32.totalorder %s57, %s71
      %p73 = scmp.eq.s32.totalorder %s26, 0
      %p74 = por %p72, %p73
      %s76 = sadd.s32 %s75, 1
      %p79 = scmp.eq.s32.totalorder %s20, 1
      %p80 = scmp.ne.s32.totalorder %s75, %s77
      %p81 = scmp.eq.s32.totalorder %s20, 0
      %p82 = por %p80, %p81
      %p83 = scmp.ne.s32.totalorder %s75, %s77
      %p84 = scmp.eq.s32.totalorder %s25, 1
      %p85 = por %p83, %p84
      %p86 = scmp.ne.s32.totalorder %s77, %s78
      %p87 = scmp.eq.s32.totalorder %s25, 0
      %p88 = por %p86, %p87
      %p89 = scmp.ne.s32.totalorder %s77, %s78
      %p90 = scmp.eq.s32.totalorder %s26, 1
      %p91 = por %p89, %p90
      %p93 = scmp.ne.s32.totalorder %s78, %s92
      %p94 = scmp.eq.s32.totalorder %s26, 0
      %p95 = por %p93, %p94
      %s97 = sadd.s32 %s96, 1
      %p100 = scmp.eq.s32.totalorder %s20, 1
      %p101 = scmp.ne.s32.totalorder %s96, %s98
      %p102 = scmp.eq.s32.totalorder %s20, 0
      %p103 = por %p101, %p102
      %p104 = scmp.ne.s32.totalorder %s96, %s98
      %p105 = scmp.eq.s32.totalorder %s25, 1
      %p106 = por %p104, %p105
      %p107 = scmp.ne.s32.totalorder %s98, %s99
      %p108 = scmp.eq.s32.totalorder %s25, 0
      %p109 = por %p107, %p108
      %p110 = scmp.ne.s32.totalorder %s98, %s99
      %p111 = scmp.eq.s32.totalorder %s26, 1
      %p112 = por %p110, %p111
      %p114 = scmp.ne.s32.totalorder %s99, %s113
      %p115 = scmp.eq.s32.totalorder %s26, 0
      %p116 = por %p114, %p115
      %s118 = sadd.s32 %s117, 1
      %p121 = scmp.eq.s32.totalorder %s20, 1
      %p122 = scmp.ne.s32.totalorder %s117, %s119
      %p123 = scmp.eq.s32.totalorder %s20, 0
      %p124 = por %p122, %p123
      %p125 = scmp.ne.s32.totalorder %s117, %s119
      %p126 = scmp.eq.s32.totalorder %s25, 1
      %p127 = por %p125, %p126
      %p128 = scmp.ne.s32.totalorder %s119, %s120
      %p129 = scmp.eq.s32.totalorder %s25, 0
      %p130 = por %p128, %p129
      %p131 = scmp.ne.s32.totalorder %s119, %s120
      %p132 = scmp.eq.s32.totalorder %s26, 1
      %p133 = por %p131, %p132
      %p135 = scmp.ne.s32.totalorder %s120, %s134
      %p136 = scmp.eq.s32.totalorder %s26, 0
      %p137 = por %p135, %p136
      %s139 = sadd.s32 %s138, 1
      %p142 = scmp.eq.s32.totalorder %s20, 1
      %p143 = scmp.ne.s32.totalorder %s138, %s140
      %p144 = scmp.eq.s32.totalorder %s20, 0
      %p145 = por %p143, %p144
      %p146 = scmp.ne.s32.totalorder %s138, %s140
      %p147 = scmp.eq.s32.totalorder %s25, 1
      %p148 = por %p146, %p147
      %p149 = scmp.ne.s32.totalorder %s140, %s141
      %p150 = scmp.eq.s32.totalorder %s25, 0
      %p151 = por %p149, %p150
      %p152 = scmp.ne.s32.totalorder %s140, %s141
      %p153 = scmp.eq.s32.totalorder %s26, 1
      %p154 = por %p152, %p153
      %p156 = scmp.ne.s32.totalorder %s141, %s155
      %p157 = scmp.eq.s32.totalorder %s26, 0
      %p158 = por %p156, %p157
      %s160 = sadd.s32 %s159, 1
      %p163 = scmp.eq.s32.totalorder %s20, 1
      %p164 = scmp.ne.s32.totalorder %s159, %s161
      %p165 = scmp.eq.s32.totalorder %s20, 0
      %p166 = por %p164, %p165
      %p167 = scmp.ne.s32.totalorder %s159, %s161
      %p168 = scmp.eq.s32.totalorder %s25, 1
      %p169 = por %p167, %p168
      %p170 = scmp.ne.s32.totalorder %s161, %s162
      %p171 = scmp.eq.s32.totalorder %s25, 0
      %p172 = por %p170, %p171
      %p173 = scmp.ne.s32.totalorder %s161, %s162
      %p174 = scmp.eq.s32.totalorder %s26, 1
      %p175 = por %p173, %p174
      %p177 = scmp.ne.s32.totalorder %s162, %s176
      %p178 = scmp.eq.s32.totalorder %s26, 0
      %p179 = por %p177, %p178
      %s181 = sadd.s32 %s180, 1
      %p184 = scmp.eq.s32.totalorder %s20, 1
      %p185 = scmp.ne.s32.totalorder %s180, %s182
      %p186 = scmp.eq.s32.totalorder %s20, 0
      %p187 = por %p185, %p186
      %p188 = scmp.ne.s32.totalorder %s180, %s182
      %p189 = scmp.eq.s32.totalorder %s25, 1
      %p190 = por %p188, %p189
      %p191 = scmp.ne.s32.totalorder %s182, %s183
      %p192 = scmp.eq.s32.totalorder %s25, 0
      %p193 = por %p191, %p192
      %p194 = scmp.ne.s32.totalorder %s182, %s183
      %p195 = scmp.eq.s32.totalorder %s26, 1
      %p196 = por %p194, %p195
      %p198 = scmp.ne.s32.totalorder %s183, %s197
      %p199 = scmp.eq.s32.totalorder %s26, 0
      %p200 = por %p198, %p199
      %s202 = sadd.s32 %s201, 1
      %p205 = scmp.eq.s32.totalorder %s20, 1
      %p206 = scmp.ne.s32.totalorder %s201, %s203
      %p207 = scmp.eq.s32.totalorder %s20, 0
      %p208 = por %p206, %p207
      %p209 = scmp.ne.s32.totalorder %s201, %s203
      %p210 = scmp.eq.s32.totalorder %s25, 1
      %p211 = por %p209, %p210
      %p212 = scmp.ne.s32.totalorder %s203, %s204
      %p213 = scmp.eq.s32.totalorder %s25, 0
      %p214 = por %p212, %p213
      %p215 = scmp.ne.s32.totalorder %s203, %s204
      %p216 = scmp.eq.s32.totalorder %s26, 1
      %p217 = por %p215, %p216
      %p219 = scmp.ne.s32.totalorder %s204, %s218
      %p220 = scmp.eq.s32.totalorder %s26, 0
      %p221 = por %p219, %p220
      %s223 = sadd.s32 %s222, 1
      %p226 = scmp.eq.s32.totalorder %s20, 1
      %p227 = scmp.ne.s32.totalorder %s222, %s224
      %p228 = scmp.eq.s32.totalorder %s20, 0
      %p229 = por %p227, %p228
      %p230 = scmp.ne.s32.totalorder %s222, %s224
      %p231 = scmp.eq.s32.totalorder %s25, 1
      %p232 = por %p230, %p231
      %p233 = scmp.ne.s32.totalorder %s224, %s225
      %p234 = scmp.eq.s32.totalorder %s25, 0
      %p235 = por %p233, %p234
      %p236 = scmp.ne.s32.totalorder %s224, %s225
      %p237 = scmp.eq.s32.totalorder %s26, 1
      %p238 = por %p236, %p237
      %p240 = scmp.ne.s32.totalorder %s225, %s239
      %p241 = scmp.eq.s32.totalorder %s26, 0
      %p242 = por %p240, %p241
      %s243 = ssub.s32 %s20, %s27
      %p244 = scmp.eq.s32.totalorder %s243, 0
      %s246 = sadd.s32 %s245, 1
      %s247 = scalar_select %p244, %s245, %s246
      %p250 = pneg %p244
      %p251 = scmp.eq.s32.totalorder %s20, 1
      %p252 = por %p250, %p251
      %p253 = scmp.ne.s32.totalorder %s245, %s248
      %p254 = scmp.eq.s32.totalorder %s20, 0
      %p255 = por %p253, %p254
      %p256 = scmp.ne.s32.totalorder %s245, %s248
      %p257 = scmp.eq.s32.totalorder %s25, 1
      %p258 = por %p256, %p257
      %p259 = scmp.ne.s32.totalorder %s248, %s249
      %p260 = scmp.eq.s32.totalorder %s25, 0
      %p261 = por %p259, %p260
      %p262 = scmp.ne.s32.totalorder %s248, %s249
      %p263 = scmp.eq.s32.totalorder %s26, 1
      %p264 = por %p262, %p263
      %p266 = scmp.ne.s32.totalorder %s249, %s265
      %p267 = scmp.eq.s32.totalorder %s26, 0
      %p268 = por %p266, %p267
      %p269 = scmp.le.s32.totalorder 1, %s20
      %p270 = scmp.lt.s32.totalorder %s20, 3
      %p271 = pnand %p269, %p270
      %p272 = pneg %p271
      // Predicated region
      $region9: #{tpu_custom_call.1} parent=5 // pred_check
        _
      $region10: #{tpu_custom_call.1} parent=5 // pred_check_branch
        %274 = sbr.rel (%p271) target = $region12
      $region11: #{tpu_custom_call.1} parent=5 // pred_region
        %s275 = ssub.s32 %s20, 1
        // Predicated region
        $region13: #{tpu_custom_call.1} parent=11 // pred_check
          %p276 = pneg %p67
        $region14: #{tpu_custom_call.1} parent=11 // pred_check_branch
          %278 = sbr.rel (%p276) target = $region16
        $region15: #{tpu_custom_call.1} parent=11 // pred_region
          %s280 = ssub.s32 128, 128
          %281 = vsyncadd [#allocation6], %s280
          %s283 = sshll.u32 [#allocation5], 4
          %s284 = int_to_ptr.vmem [resolvable:$true] %s283
          %286 = dma.hbm_to_vmem [thread:$0]  %s1, 128, %s284, [#allocation6]
        $region16: #{tpu_custom_call.1} parent=11 // pred_fallthru
          _
        // Predicated region
        $region17: #{tpu_custom_call.1} parent=11 // pred_check
          %p287 = pneg %p88
        $region18: #{tpu_custom_call.1} parent=11 // pred_check_branch
          %289 = sbr.rel (%p287) target = $region20
        $region19: #{tpu_custom_call.1} parent=11 // pred_region
          _
        $region20: #{tpu_custom_call.1} parent=11 // pred_fallthru
          _
        // Predicated region
        $region21: #{tpu_custom_call.1} parent=11 // pred_check
          %p290 = pneg %p109
        $region22: #{tpu_custom_call.1} parent=11 // pred_check_branch
          %292 = sbr.rel (%p290) target = $region24
        $region23: #{tpu_custom_call.1} parent=11 // pred_region
          _
        $region24: #{tpu_custom_call.1} parent=11 // pred_fallthru
          _
        // Predicated region
        $region25: #{tpu_custom_call.1} parent=11 // pred_check
          %p293 = pneg %p130
        $region26: #{tpu_custom_call.1} parent=11 // pred_check_branch
          %295 = sbr.rel (%p293) target = $region28
        $region27: #{tpu_custom_call.1} parent=11 // pred_region
          _
        $region28: #{tpu_custom_call.1} parent=11 // pred_fallthru
          _
        // Predicated region
        $region29: #{tpu_custom_call.1} parent=11 // pred_check
          %p296 = pneg %p151
        $region30: #{tpu_custom_call.1} parent=11 // pred_check_branch
          %298 = sbr.rel (%p296) target = $region32
        $region31: #{tpu_custom_call.1} parent=11 // pred_region
          _
        $region32: #{tpu_custom_call.1} parent=11 // pred_fallthru
          _
        // Predicated region
        $region33: #{tpu_custom_call.1} parent=11 // pred_check
          %p299 = pneg %p172
        $region34: #{tpu_custom_call.1} parent=11 // pred_check_branch
          %301 = sbr.rel (%p299) target = $region36
        $region35: #{tpu_custom_call.1} parent=11 // pred_region
          _
        $region36: #{tpu_custom_call.1} parent=11 // pred_fallthru
          _
        // Predicated region
        $region37: #{tpu_custom_call.1} parent=11 // pred_check
          %p302 = pneg %p193
        $region38: #{tpu_custom_call.1} parent=11 // pred_check_branch
          %304 = sbr.rel (%p302) target = $region40
        $region39: #{tpu_custom_call.1} parent=11 // pred_region
          _
        $region40: #{tpu_custom_call.1} parent=11 // pred_fallthru
          _
        // Predicated region
        $region41: #{tpu_custom_call.1} parent=11 // pred_check
          %p305 = pneg %p214
        $region42: #{tpu_custom_call.1} parent=11 // pred_check_branch
          %307 = sbr.rel (%p305) target = $region44
        $region43: #{tpu_custom_call.1} parent=11 // pred_region
          _
        $region44: #{tpu_custom_call.1} parent=11 // pred_fallthru
          _
        // Predicated region
        $region45: #{tpu_custom_call.1} parent=11 // pred_check
          %p308 = pneg %p235
        $region46: #{tpu_custom_call.1} parent=11 // pred_check_branch
          %310 = sbr.rel (%p308) target = $region48
        $region47: #{tpu_custom_call.1} parent=11 // pred_region
          _
        $region48: #{tpu_custom_call.1} parent=11 // pred_fallthru
          _
      $region12: #{tpu_custom_call.1} parent=5 // pred_fallthru
        _
      %p311 = scmp.lt.s32.totalorder %s20, 2
      // Predicated region
      $region49: #{tpu_custom_call.1} parent=5 // pred_check
        %p312 = pneg %p311
      $region50: #{tpu_custom_call.1} parent=5 // pred_check_branch
        %314 = sbr.rel (%p312) target = $region52
      $region51: #{tpu_custom_call.1} parent=5 // pred_region
        // Predicated region
        $region53: #{tpu_custom_call.1} parent=51 // pred_check
          %p315 = pneg %p40
        $region54: #{tpu_custom_call.1} parent=51 // pred_check_branch
          %317 = sbr.rel (%p315) target = $region56
        $region55: #{tpu_custom_call.1} parent=51 // pred_region
          %p318 = scmp.lt.s32.totalorder %s20, 1
          %s319 = scalar_select %p318, %s20, 1
          %s320 = smul.addr %s319, 10
          %s321 = smul.addr %s320, 2
          %s322 = scalar_lea.vmem %s0, %s321
        $region56: #{tpu_custom_call.1} parent=51 // pred_fallthru
          _
      $region52: #{tpu_custom_call.1} parent=5 // pred_fallthru
        _
      %p323 = scmp.le.s32.totalorder 1, %s20
      %p324 = scmp.lt.s32.totalorder %s20, 3
      %p325 = pnand %p323, %p324
      %p326 = pneg %p325
      // Predicated region
      $region57: #{tpu_custom_call.1} parent=5 // pred_check
        _
      $region58: #{tpu_custom_call.1} parent=5 // pred_check_branch
        %328 = sbr.rel (%p325) target = $region60
      $region59: #{tpu_custom_call.1} parent=5 // pred_region
        %s329 = ssub.s32 %s20, 1
        // Predicated region
        $region61: #{tpu_custom_call.1} parent=59 // pred_check
          %p330 = pneg %p67
        $region62: #{tpu_custom_call.1} parent=59 // pred_check_branch
          %332 = sbr.rel (%p330) target = $region64
        $region63: #{tpu_custom_call.1} parent=59 // pred_region
          %333 = dma.done [#allocation6], 128
        $region64: #{tpu_custom_call.1} parent=59 // pred_fallthru
          _
        %p334 = scmp.lt.s32.totalorder %s25, 1
        %s335 = scalar_select %p334, %s25, 1
        %s336 = smul.addr %s335, 10
        %s337 = smul.addr %s336, 2
        %s338 = scalar_lea.vmem %s0, %s337
        %p339 = pneg %p46
        %p340 = pneg %p43
        %p341 = pneg %p67
        %p342 = pneg %p64
        %p343 = pneg %p88
        %p344 = pneg %p85
        %p345 = pneg %p109
        %p346 = pneg %p106
        %p347 = pneg %p130
        %p348 = pneg %p127
        %p349 = pneg %p151
        %p350 = pneg %p148
        %p351 = pneg %p172
        %p352 = pneg %p169
        %p353 = pneg %p193
        %p354 = pneg %p190
        %p355 = pneg %p214
        %p356 = pneg %p211
        %p357 = pneg %p235
        %p358 = pneg %p232
        %p359 = pneg %p261
        %p360 = pneg %p258
        %s361 = sand.u32 %s248, 1
        %s362 = scalar_lea.sflag [#allocation7], %s361
        %s363 = sand.u32 %s248, 1
        %s364 = smul.addr %s363, 64
        %s365 = scalar_lea.vmem [#allocation8], %s364
        %p366 = scmp.lt.s32.totalorder %s25, 1
        %s367 = scalar_select %p366, %s25, 1
        %s368 = smul.addr %s367, 10
        %s369 = smul.addr %s368, 2
        %s370 = scalar_lea.vmem %s0, %s369
        %v372 = vld [vmem:[#allocation5] sm:$0xff]
        %v373 = vld [vmem:[%s370] sm:$0xff]
        %v374 = vld [vmem:[%s370 + $0x8] sm:$0xff]
        %v375 = vld [vmem:[%s370 + $0x10] sm:$0xf]
        %v378 = vcombine.high %v373, %v373
        %v380 = vunpack.c.l.s4 1983009808
        %v381 = vunpack.c.0.s8 %v380
        %v382 = vlaneseq
        %v383 = vshrl.u32 %v382, 7
        %v384 = vsub.s32 %v381, %v383
        %v385 = vrot.slane %v373, %v384
        %v387 = vunpack.c.l.s4 1983009808
        %v388 = vunpack.c.0.s8 %v387
        %v389 = vlaneseq
        %v390 = vshrl.u32 %v389, 7
        %v391 = vsub.s32 %v388, %v390
        %v392 = vrot.slane %v378, %v391
        %v393 = vcombine.high %v374, %v374
        %v395 = vunpack.c.l.s4 1983009808
        %v396 = vunpack.c.0.s8 %v395
        %v397 = vlaneseq
        %v398 = vshrl.u32 %v397, 7
        %v399 = vsub.s32 %v396, %v398
        %v400 = vrot.slane %v374, %v399
        %v402 = vunpack.c.l.s4 1983009808
        %v403 = vunpack.c.0.s8 %v402
        %v404 = vlaneseq
        %v405 = vshrl.u32 %v404, 7
        %v406 = vsub.s32 %v403, %v405
        %v407 = vrot.slane %v393, %v406
        %408 = vrot.lane.b32.xlu0 %v385, 111
        %v409 = vpop.permute.xlu0 %408
        %410 = vrot.lane.b32.xlu0 %v392, 111
        %v411 = vpop.permute.xlu0 %410
        %412 = vrot.lane.b32.xlu0 %v400, 111
        %v413 = vpop.permute.xlu0 %412
        %414 = vrot.lane.b32.xlu0 %v407, 111
        %v415 = vpop.permute.xlu0 %414
        %v416 = vrot.slane %v409, 4
        %v417 = vrot.slane %v411, 4
        %v418 = vrot.slane %v413, 4
        %v419 = vrot.slane %v415, 4
        %vm420 = vcmask 1043456
        %v421 = vsel %vm420, %v416, %v417
        %vm422 = vcmask 908288
        %v423 = vsel %vm422, %v409, %v421
        %v424 = vsel %vm420, %v417, %v418
        %v425 = vsel %vm422, %v411, %v424
        %v426 = vsel %vm420, %v418, %v419
        %v427 = vsel %vm422, %v413, %v426
        %v428 = vsel %vm422, %v415, %v419
        %433 = vst [vmem:[#allocation2] sm:$0x33] %v423
        %434 = vst [vmem:[#allocation2 + $0x8] sm:$0x33] %v425
        %435 = vst [vmem:[#allocation2 + $0x10] sm:$0x33] %v427
        %vm436 = vcmask 1041408
        %vm437 = vcmask 848900
        %vm438 = vmor %vm437, %vm436
        %439 = vst.msk [vmem:[#allocation2 + $0x18] sm:$0x33] %vm438, %v428
        %v440 = vcombine.low %v373, %v373
        %v442 = vunpack.c.l.s4 1983009808
        %v443 = vunpack.c.0.s8 %v442
        %v444 = vlaneseq
        %v445 = vshrl.u32 %v444, 7
        %v446 = vsub.s32 %v443, %v445
        %v447 = vrot.slane %v440, %v446
        %v448 = vcombine.low %v374, %v374
        %v450 = vunpack.c.l.s4 1983009808
        %v451 = vunpack.c.0.s8 %v450
        %v452 = vlaneseq
        %v453 = vshrl.u32 %v452, 7
        %v454 = vsub.s32 %v451, %v453
        %v455 = vrot.slane %v448, %v454
        %456 = vrot.lane.b32.xlu0 %v447, 110
        %v457 = vpop.permute.xlu0 %456
        %458 = vrot.lane.b32.xlu0 %v385, 110
        %v459 = vpop.permute.xlu0 %458
        %460 = vrot.lane.b32.xlu0 %v455, 110
        %v461 = vpop.permute.xlu0 %460
        %462 = vrot.lane.b32.xlu0 %v400, 110
        %v463 = vpop.permute.xlu0 %462
        %v464 = vrot.slane %v457, 4
        %v465 = vrot.slane %v459, 4
        %v466 = vrot.slane %v461, 4
        %v467 = vrot.slane %v463, 4
        %v468 = vsel %vm420, %v464, %v465
        %vm469 = vcmask 900096
        %v470 = vsel %vm469, %v457, %v468
        %v471 = vsel %vm420, %v465, %v466
        %v472 = vsel %vm469, %v459, %v471
        %v473 = vsel %vm420, %v466, %v467
        %v474 = vsel %vm469, %v461, %v473
        %v475 = vsel %vm469, %v463, %v467
        %480 = vst [vmem:[#allocation2] sm:$0xcc] %v470
        %481 = vst [vmem:[#allocation2 + $0x8] sm:$0xcc] %v472
        %482 = vst [vmem:[#allocation2 + $0x10] sm:$0xcc] %v474
        %vm483 = vcmask 1043458
        %vm484 = vcmask 850950
        %vm485 = vmor %vm484, %vm483
        %486 = vst.msk [vmem:[#allocation2 + $0x18] sm:$0xcc] %vm485, %v475
        %487 = vrot.lane.b32.xlu0 %v385, 109
        %v488 = vpop.permute.xlu0 %487
        %489 = vrot.lane.b32.xlu0 %v392, 109
        %v490 = vpop.permute.xlu0 %489
        %491 = vrot.lane.b32.xlu0 %v400, 109
        %v492 = vpop.permute.xlu0 %491
        %493 = vrot.lane.b32.xlu0 %v407, 109
        %v494 = vpop.permute.xlu0 %493
        %v495 = vrot.slane %v488, 4
        %v496 = vrot.slane %v490, 4
        %v497 = vrot.slane %v492, 4
        %v498 = vrot.slane %v494, 4
        %v499 = vsel %vm420, %v495, %v496
        %vm500 = vcmask 891904
        %v501 = vsel %vm500, %v488, %v499
        %v502 = vsel %vm420, %v496, %v497
        %v503 = vsel %vm500, %v490, %v502
        %v504 = vsel %vm420, %v497, %v498
        %v505 = vsel %vm500, %v492, %v504
        %v506 = vsel %vm500, %v494, %v498
        %511 = vst [vmem:[#allocation2 + $0x20] sm:$0x33] %v501
        %512 = vst [vmem:[#allocation2 + $0x28] sm:$0x33] %v503
        %513 = vst [vmem:[#allocation2 + $0x30] sm:$0x33] %v505
        %514 = vst.msk [vmem:[#allocation2 + $0x38] sm:$0x33] %vm438, %v506
        %v516 = vcombine.low %v375, %v375
        %v518 = vunpack.c.l.s4 1983009808
        %v519 = vunpack.c.0.s8 %v518
        %v520 = vlaneseq
        %v521 = vshrl.u32 %v520, 7
        %v522 = vsub.s32 %v519, %v521
        %v523 = vrot.slane %v516, %v522
        %524 = vrot.lane.b32.xlu0 %v447, 101
        %v525 = vpop.permute.xlu0 %524
        %526 = vrot.lane.b32.xlu0 %v385, 101
        %v527 = vpop.permute.xlu0 %526
        %528 = vrot.lane.b32.xlu0 %v455, 101
        %v529 = vpop.permute.xlu0 %528
        %530 = vrot.lane.b32.xlu0 %v400, 101
        %v531 = vpop.permute.xlu0 %530
        %532 = vrot.lane.b32.xlu0 %v523, 101
        %v533 = vpop.permute.xlu0 %532
        %v534 = vrot.slane %v525, 4
        %v535 = vrot.slane %v527, 4
        %v536 = vrot.slane %v529, 4
        %v537 = vrot.slane %v531, 4
        %v538 = vrot.slane %v533, 4
        %v539 = vsel %vm420, %v534, %v535
        %vm540 = vcmask 826368
        %v541 = vsel %vm540, %v525, %v539
        %v542 = vsel %vm420, %v535, %v536
        %v543 = vsel %vm540, %v527, %v542
        %v544 = vsel %vm420, %v536, %v537
        %v545 = vsel %vm540, %v529, %v544
        %v546 = vsel %vm420, %v537, %v538
        %v547 = vsel %vm540, %v531, %v546
        %552 = vst [vmem:[#allocation2 + $0x20] sm:$0xcc] %v541
        %553 = vst [vmem:[#allocation2 + $0x28] sm:$0xcc] %v543
        %554 = vst [vmem:[#allocation2 + $0x30] sm:$0xcc] %v545
        %555 = vst.msk [vmem:[#allocation2 + $0x38] sm:$0xcc] %vm485, %v547
        %v557 = vunpack.c.l.s4 1983009808
        %v558 = vunpack.c.0.s8 %v557
        %v559 = vlaneseq
        %v560 = vshrl.u32 %v559, 7
        %v561 = vsub.s32 %v558, %v560
        %v562 = vrot.slane %v375, %v561
        %563 = vrot.lane.b32.xlu0 %v385, 100
        %v564 = vpop.permute.xlu0 %563
        %565 = vrot.lane.b32.xlu0 %v392, 100
        %v566 = vpop.permute.xlu0 %565
        %567 = vrot.lane.b32.xlu0 %v400, 100
        %v568 = vpop.permute.xlu0 %567
        %569 = vrot.lane.b32.xlu0 %v407, 100
        %v570 = vpop.permute.xlu0 %569
        %571 = vrot.lane.b32.xlu0 %v562, 100
        %v572 = vpop.permute.xlu0 %571
        %v573 = vrot.slane %v564, 4
        %v574 = vrot.slane %v566, 4
        %v575 = vrot.slane %v568, 4
        %v576 = vrot.slane %v570, 4
        %v577 = vrot.slane %v572, 4
        %v578 = vsel %vm420, %v573, %v574
        %vm579 = vcmask 818176
        %v580 = vsel %vm579, %v564, %v578
        %v581 = vsel %vm420, %v574, %v575
        %v582 = vsel %vm579, %v566, %v581
        %v583 = vsel %vm420, %v575, %v576
        %v584 = vsel %vm579, %v568, %v583
        %v585 = vsel %vm420, %v576, %v577
        %v586 = vsel %vm579, %v570, %v585
        %591 = vst [vmem:[#allocation2 + $0x40] sm:$0x33] %v580
        %592 = vst [vmem:[#allocation2 + $0x48] sm:$0x33] %v582
        %593 = vst [vmem:[#allocation2 + $0x50] sm:$0x33] %v584
        %594 = vst.msk [vmem:[#allocation2 + $0x58] sm:$0x33] %vm438, %v586
        %595 = vrot.lane.b32.xlu0 %v447, 99
        %v596 = vpop.permute.xlu0 %595
        %597 = vrot.lane.b32.xlu0 %v385, 99
        %v598 = vpop.permute.xlu0 %597
        %599 = vrot.lane.b32.xlu0 %v455, 99
        %v600 = vpop.permute.xlu0 %599
        %601 = vrot.lane.b32.xlu0 %v400, 99
        %v602 = vpop.permute.xlu0 %601
        %603 = vrot.lane.b32.xlu0 %v523, 99
        %v604 = vpop.permute.xlu0 %603
        %v605 = vrot.slane %v596, 4
        %v606 = vrot.slane %v598, 4
        %v607 = vrot.slane %v600, 4
        %v608 = vrot.slane %v602, 4
        %v609 = vrot.slane %v604, 4
        %v610 = vsel %vm420, %v605, %v606
        %vm611 = vcmask 809984
        %v612 = vsel %vm611, %v596, %v610
        %v613 = vsel %vm420, %v606, %v607
        %v614 = vsel %vm611, %v598, %v613
        %v615 = vsel %vm420, %v607, %v608
        %v616 = vsel %vm611, %v600, %v615
        %v617 = vsel %vm420, %v608, %v609
        %v618 = vsel %vm611, %v602, %v617
        %623 = vst [vmem:[#allocation2 + $0x40] sm:$0xcc] %v612
        %624 = vst [vmem:[#allocation2 + $0x48] sm:$0xcc] %v614
        %625 = vst [vmem:[#allocation2 + $0x50] sm:$0xcc] %v616
        %626 = vst.msk [vmem:[#allocation2 + $0x58] sm:$0xcc] %vm485, %v618
        %627 = vrot.lane.b32.xlu0 %v385, 91
        %v628 = vpop.permute.xlu0 %627
        %629 = vrot.lane.b32.xlu0 %v392, 91
        %v630 = vpop.permute.xlu0 %629
        %631 = vrot.lane.b32.xlu0 %v400, 91
        %v632 = vpop.permute.xlu0 %631
        %633 = vrot.lane.b32.xlu0 %v407, 91
        %v634 = vpop.permute.xlu0 %633
        %635 = vrot.lane.b32.xlu0 %v562, 91
        %v636 = vpop.permute.xlu0 %635
        %v637 = vrot.slane %v628, 4
        %v638 = vrot.slane %v630, 4
        %v639 = vrot.slane %v632, 4
        %v640 = vrot.slane %v634, 4
        %v641 = vrot.slane %v636, 4
        %v642 = vsel %vm420, %v637, %v638
        %vm643 = vcmask 744448
        %v644 = vsel %vm643, %v628, %v642
        %v645 = vsel %vm420, %v638, %v639
        %v646 = vsel %vm643, %v630, %v645
        %v647 = vsel %vm420, %v639, %v640
        %v648 = vsel %vm643, %v632, %v647
        %v649 = vsel %vm420, %v640, %v641
        %v650 = vsel %vm643, %v634, %v649
        %655 = vst [vmem:[#allocation2 + $0x60] sm:$0x33] %v644
        %656 = vst [vmem:[#allocation2 + $0x68] sm:$0x33] %v646
        %657 = vst [vmem:[#allocation2 + $0x70] sm:$0x33] %v648
        %658 = vst.msk [vmem:[#allocation2 + $0x78] sm:$0x33] %vm438, %v650
        %659 = vrot.lane.b32.xlu0 %v447, 90
        %v660 = vpop.permute.xlu0 %659
        %661 = vrot.lane.b32.xlu0 %v385, 90
        %v662 = vpop.permute.xlu0 %661
        %663 = vrot.lane.b32.xlu0 %v455, 90
        %v664 = vpop.permute.xlu0 %663
        %665 = vrot.lane.b32.xlu0 %v400, 90
        %v666 = vpop.permute.xlu0 %665
        %667 = vrot.lane.b32.xlu0 %v523, 90
        %v668 = vpop.permute.xlu0 %667
        %v669 = vrot.slane %v660, 4
        %v670 = vrot.slane %v662, 4
        %v671 = vrot.slane %v664, 4
        %v672 = vrot.slane %v666, 4
        %v673 = vrot.slane %v668, 4
        %v674 = vsel %vm420, %v669, %v670
        %vm675 = vcmask 736256
        %v676 = vsel %vm675, %v660, %v674
        %v677 = vsel %vm420, %v670, %v671
        %v678 = vsel %vm675, %v662, %v677
        %v679 = vsel %vm420, %v671, %v672
        %v680 = vsel %vm675, %v664, %v679
        %v681 = vsel %vm420, %v672, %v673
        %v682 = vsel %vm675, %v666, %v681
        %687 = vst [vmem:[#allocation2 + $0x60] sm:$0xcc] %v676
        %688 = vst [vmem:[#allocation2 + $0x68] sm:$0xcc] %v678
        %689 = vst [vmem:[#allocation2 + $0x70] sm:$0xcc] %v680
        %690 = vst.msk [vmem:[#allocation2 + $0x78] sm:$0xcc] %vm485, %v682
        %691 = vrot.lane.b32.xlu0 %v385, 89
        %v692 = vpop.permute.xlu0 %691
        %693 = vrot.lane.b32.xlu0 %v392, 89
        %v694 = vpop.permute.xlu0 %693
        %695 = vrot.lane.b32.xlu0 %v400, 89
        %v696 = vpop.permute.xlu0 %695
        %697 = vrot.lane.b32.xlu0 %v407, 89
        %v698 = vpop.permute.xlu0 %697
        %699 = vrot.lane.b32.xlu0 %v562, 89
        %v700 = vpop.permute.xlu0 %699
        %v701 = vrot.slane %v692, 4
        %v702 = vrot.slane %v694, 4
        %v703 = vrot.slane %v696, 4
        %v704 = vrot.slane %v698, 4
        %v705 = vrot.slane %v700, 4
        %v706 = vsel %vm420, %v701, %v702
        %vm707 = vcmask 728064
        %v708 = vsel %vm707, %v692, %v706
        %v709 = vsel %vm420, %v702, %v703
        %v710 = vsel %vm707, %v694, %v709
        %v711 = vsel %vm420, %v703, %v704
        %v712 = vsel %vm707, %v696, %v711
        %v713 = vsel %vm420, %v704, %v705
        %v714 = vsel %vm707, %v698, %v713
        %719 = vst [vmem:[#allocation2 + $0x80] sm:$0x33] %v708
        %720 = vst [vmem:[#allocation2 + $0x88] sm:$0x33] %v710
        %721 = vst [vmem:[#allocation2 + $0x90] sm:$0x33] %v712
        %722 = vst.msk [vmem:[#allocation2 + $0x98] sm:$0x33] %vm438, %v714
        %723 = vrot.lane.b32.xlu0 %v447, 11
        %v724 = vpop.permute.xlu0 %723
        %725 = vrot.lane.b32.xlu0 %v385, 11
        %v726 = vpop.permute.xlu0 %725
        %727 = vrot.lane.b32.xlu0 %v455, 11
        %v728 = vpop.permute.xlu0 %727
        %729 = vrot.lane.b32.xlu0 %v400, 11
        %v730 = vpop.permute.xlu0 %729
        %731 = vrot.lane.b32.xlu0 %v523, 11
        %v732 = vpop.permute.xlu0 %731
        %v733 = vrot.slane %v724, 4
        %v734 = vrot.slane %v726, 4
        %v735 = vrot.slane %v728, 4
        %v736 = vrot.slane %v730, 4
        %v737 = vrot.slane %v732, 4
        %v738 = vsel %vm420, %v733, %v734
        %vm739 = vcmask 89088
        %v740 = vsel %vm739, %v724, %v738
        %v741 = vsel %vm420, %v734, %v735
        %v742 = vsel %vm739, %v726, %v741
        %v743 = vsel %vm420, %v735, %v736
        %v744 = vsel %vm739, %v728, %v743
        %v745 = vsel %vm420, %v736, %v737
        %v746 = vsel %vm739, %v730, %v745
        %751 = vst [vmem:[#allocation2 + $0x80] sm:$0xcc] %v740
        %752 = vst [vmem:[#allocation2 + $0x88] sm:$0xcc] %v742
        %753 = vst [vmem:[#allocation2 + $0x90] sm:$0xcc] %v744
        %754 = vst.msk [vmem:[#allocation2 + $0x98] sm:$0xcc] %vm485, %v746
        %755 = vrot.lane.b32.xlu0 %v385, 10
        %v756 = vpop.permute.xlu0 %755
        %757 = vrot.lane.b32.xlu0 %v392, 10
        %v758 = vpop.permute.xlu0 %757
        %759 = vrot.lane.b32.xlu0 %v400, 10
        %v760 = vpop.permute.xlu0 %759
        %761 = vrot.lane.b32.xlu0 %v407, 10
        %v762 = vpop.permute.xlu0 %761
        %763 = vrot.lane.b32.xlu0 %v562, 10
        %v764 = vpop.permute.xlu0 %763
        %v765 = vrot.slane %v756, 4
        %v766 = vrot.slane %v758, 4
        %v767 = vrot.slane %v760, 4
        %v768 = vrot.slane %v762, 4
        %v769 = vrot.slane %v764, 4
        %v770 = vsel %vm420, %v765, %v766
        %vm771 = vcmask 80896
        %v772 = vsel %vm771, %v756, %v770
        %v773 = vsel %vm420, %v766, %v767
        %v774 = vsel %vm771, %v758, %v773
        %v775 = vsel %vm420, %v767, %v768
        %v776 = vsel %vm771, %v760, %v775
        %v777 = vsel %vm420, %v768, %v769
        %v778 = vsel %vm771, %v762, %v777
        %783 = vst [vmem:[#allocation2 + $0xa0] sm:$0x33] %v772
        %784 = vst [vmem:[#allocation2 + $0xa8] sm:$0x33] %v774
        %785 = vst [vmem:[#allocation2 + $0xb0] sm:$0x33] %v776
        %786 = vst.msk [vmem:[#allocation2 + $0xb8] sm:$0x33] %vm438, %v778
        %787 = vrot.lane.b32.xlu0 %v447, 9
        %v788 = vpop.permute.xlu0 %787
        %789 = vrot.lane.b32.xlu0 %v385, 9
        %v790 = vpop.permute.xlu0 %789
        %791 = vrot.lane.b32.xlu0 %v455, 9
        %v792 = vpop.permute.xlu0 %791
        %793 = vrot.lane.b32.xlu0 %v400, 9
        %v794 = vpop.permute.xlu0 %793
        %795 = vrot.lane.b32.xlu0 %v523, 9
        %v796 = vpop.permute.xlu0 %795
        %v797 = vrot.slane %v788, 4
        %v798 = vrot.slane %v790, 4
        %v799 = vrot.slane %v792, 4
        %v800 = vrot.slane %v794, 4
        %v801 = vrot.slane %v796, 4
        %v802 = vsel %vm420, %v797, %v798
        %vm803 = vcmask 72704
        %v804 = vsel %vm803, %v788, %v802
        %v805 = vsel %vm420, %v798, %v799
        %v806 = vsel %vm803, %v790, %v805
        %v807 = vsel %vm420, %v799, %v800
        %v808 = vsel %vm803, %v792, %v807
        %v809 = vsel %vm420, %v800, %v801
        %v810 = vsel %vm803, %v794, %v809
        %815 = vst [vmem:[#allocation2 + $0xa0] sm:$0xcc] %v804
        %816 = vst [vmem:[#allocation2 + $0xa8] sm:$0xcc] %v806
        %817 = vst [vmem:[#allocation2 + $0xb0] sm:$0xcc] %v808
        %818 = vst.msk [vmem:[#allocation2 + $0xb8] sm:$0xcc] %vm485, %v810
        %819 = vrot.lane.b32.xlu0 %v385, 1
        %v820 = vpop.permute.xlu0 %819
        %821 = vrot.lane.b32.xlu0 %v392, 1
        %v822 = vpop.permute.xlu0 %821
        %823 = vrot.lane.b32.xlu0 %v400, 1
        %v824 = vpop.permute.xlu0 %823
        %825 = vrot.lane.b32.xlu0 %v407, 1
        %v826 = vpop.permute.xlu0 %825
        %827 = vrot.lane.b32.xlu0 %v562, 1
        %v828 = vpop.permute.xlu0 %827
        %v829 = vrot.slane %v820, 4
        %v830 = vrot.slane %v822, 4
        %v831 = vrot.slane %v824, 4
        %v832 = vrot.slane %v826, 4
        %v833 = vrot.slane %v828, 4
        %v834 = vsel %vm420, %v829, %v830
        %vm835 = vcmask 7168
        %v836 = vsel %vm835, %v820, %v834
        %v837 = vsel %vm420, %v830, %v831
        %v838 = vsel %vm835, %v822, %v837
        %v839 = vsel %vm420, %v831, %v832
        %v840 = vsel %vm835, %v824, %v839
        %v841 = vsel %vm420, %v832, %v833
        %v842 = vsel %vm835, %v826, %v841
        %847 = vst [vmem:[#allocation2 + $0xc0] sm:$0x33] %v836
        %848 = vst [vmem:[#allocation2 + $0xc8] sm:$0x33] %v838
        %849 = vst [vmem:[#allocation2 + $0xd0] sm:$0x33] %v840
        %850 = vst.msk [vmem:[#allocation2 + $0xd8] sm:$0x33] %vm438, %v842
        %v851 = vrot.slane %v447, 4
        %v852 = vrot.slane %v385, 4
        %v853 = vrot.slane %v455, 4
        %v854 = vrot.slane %v400, 4
        %v855 = vrot.slane %v523, 4
        %v856 = vsel %vm420, %v851, %v852
        %v857 = vsel %vm420, %v852, %v853
        %v858 = vsel %vm420, %v853, %v854
        %v859 = vsel %vm420, %v854, %v855
        %864 = vst [vmem:[#allocation2 + $0xc0] sm:$0xcc] %v856
        %865 = vst [vmem:[#allocation2 + $0xc8] sm:$0xcc] %v857
        %866 = vst [vmem:[#allocation2 + $0xd0] sm:$0xcc] %v858
        %867 = vst.msk [vmem:[#allocation2 + $0xd8] sm:$0xcc] %vm485, %v859
        %868 = vrot.lane.b32.xlu0 %v385, 127
        %v869 = vpop.permute.xlu0 %868
        %870 = vrot.lane.b32.xlu0 %v392, 127
        %v871 = vpop.permute.xlu0 %870
        %872 = vrot.lane.b32.xlu0 %v400, 127
        %v873 = vpop.permute.xlu0 %872
        %874 = vrot.lane.b32.xlu0 %v407, 127
        %v875 = vpop.permute.xlu0 %874
        %876 = vrot.lane.b32.xlu0 %v562, 127
        %v877 = vpop.permute.xlu0 %876
        %v878 = vrot.slane %v869, 4
        %v879 = vrot.slane %v871, 4
        %v880 = vrot.slane %v873, 4
        %v881 = vrot.slane %v875, 4
        %v882 = vrot.slane %v877, 4
        %v883 = vsel %vm420, %v878, %v879
        %vm884 = vcmask 1039360
        %v885 = vsel %vm884, %v883, %v871
        %v886 = vsel %vm420, %v879, %v880
        %v887 = vsel %vm884, %v886, %v873
        %v888 = vsel %vm420, %v880, %v881
        %v889 = vsel %vm884, %v888, %v875
        %v890 = vsel %vm420, %v881, %v882
        %v891 = vsel %vm884, %v890, %v877
        %896 = vst [vmem:[#allocation2 + $0xe0] sm:$0x33] %v885
        %897 = vst [vmem:[#allocation2 + $0xe8] sm:$0x33] %v887
        %898 = vst [vmem:[#allocation2 + $0xf0] sm:$0x33] %v889
        %899 = vst.msk [vmem:[#allocation2 + $0xf8] sm:$0x33] %vm438, %v891
        %900 = vrot.lane.b32.xlu0 %v447, 119
        %v901 = vpop.permute.xlu0 %900
        %902 = vrot.lane.b32.xlu0 %v385, 119
        %v903 = vpop.permute.xlu0 %902
        %904 = vrot.lane.b32.xlu0 %v455, 119
        %v905 = vpop.permute.xlu0 %904
        %906 = vrot.lane.b32.xlu0 %v400, 119
        %v907 = vpop.permute.xlu0 %906
        %908 = vrot.lane.b32.xlu0 %v523, 119
        %v909 = vpop.permute.xlu0 %908
        %v910 = vrot.slane %v901, 4
        %v911 = vrot.slane %v903, 4
        %v912 = vrot.slane %v905, 4
        %v913 = vrot.slane %v907, 4
        %v914 = vrot.slane %v909, 4
        %v915 = vsel %vm420, %v910, %v911
        %vm916 = vcmask 973824
        %v917 = vsel %vm916, %v915, %v903
        %v918 = vsel %vm420, %v911, %v912
        %v919 = vsel %vm916, %v918, %v905
        %v920 = vsel %vm420, %v912, %v913
        %v921 = vsel %vm916, %v920, %v907
        %v922 = vsel %vm420, %v913, %v914
        %v923 = vsel %vm916, %v922, %v909
        %928 = vst [vmem:[#allocation2 + $0xe0] sm:$0xcc] %v917
        %929 = vst [vmem:[#allocation2 + $0xe8] sm:$0xcc] %v919
        %930 = vst [vmem:[#allocation2 + $0xf0] sm:$0xcc] %v921
        %931 = vst.msk [vmem:[#allocation2 + $0xf8] sm:$0xcc] %vm485, %v923
        %932 = vrot.lane.b32.xlu0 %v385, 118
        %v933 = vpop.permute.xlu0 %932
        %934 = vrot.lane.b32.xlu0 %v392, 118
        %v935 = vpop.permute.xlu0 %934
        %936 = vrot.lane.b32.xlu0 %v400, 118
        %v937 = vpop.permute.xlu0 %936
        %938 = vrot.lane.b32.xlu0 %v407, 118
        %v939 = vpop.permute.xlu0 %938
        %940 = vrot.lane.b32.xlu0 %v562, 118
        %v941 = vpop.permute.xlu0 %940
        %v942 = vrot.slane %v933, 4
        %v943 = vrot.slane %v935, 4
        %v944 = vrot.slane %v937, 4
        %v945 = vrot.slane %v939, 4
        %v946 = vrot.slane %v941, 4
        %v947 = vsel %vm420, %v942, %v943
        %vm948 = vcmask 965632
        %v949 = vsel %vm948, %v947, %v935
        %v950 = vsel %vm420, %v943, %v944
        %v951 = vsel %vm948, %v950, %v937
        %v952 = vsel %vm420, %v944, %v945
        %v953 = vsel %vm948, %v952, %v939
        %v954 = vsel %vm420, %v945, %v946
        %v955 = vsel %vm948, %v954, %v941
        %960 = vst [vmem:[#allocation2 + $0x100] sm:$0x33] %v949
        %961 = vst [vmem:[#allocation2 + $0x108] sm:$0x33] %v951
        %962 = vst [vmem:[#allocation2 + $0x110] sm:$0x33] %v953
        %963 = vst.msk [vmem:[#allocation2 + $0x118] sm:$0x33] %vm438, %v955
        %964 = vrot.lane.b32.xlu0 %v447, 117
        %v965 = vpop.permute.xlu0 %964
        %966 = vrot.lane.b32.xlu0 %v385, 117
        %v967 = vpop.permute.xlu0 %966
        %968 = vrot.lane.b32.xlu0 %v455, 117
        %v969 = vpop.permute.xlu0 %968
        %970 = vrot.lane.b32.xlu0 %v400, 117
        %v971 = vpop.permute.xlu0 %970
        %972 = vrot.lane.b32.xlu0 %v523, 117
        %v973 = vpop.permute.xlu0 %972
        %v974 = vrot.slane %v965, 4
        %v975 = vrot.slane %v967, 4
        %v976 = vrot.slane %v969, 4
        %v977 = vrot.slane %v971, 4
        %v978 = vrot.slane %v973, 4
        %v979 = vsel %vm420, %v974, %v975
        %vm980 = vcmask 957440
        %v981 = vsel %vm980, %v979, %v967
        %v982 = vsel %vm420, %v975, %v976
        %v983 = vsel %vm980, %v982, %v969
        %v984 = vsel %vm420, %v976, %v977
        %v985 = vsel %vm980, %v984, %v971
        %v986 = vsel %vm420, %v977, %v978
        %v987 = vsel %vm980, %v986, %v973
        %992 = vst [vmem:[#allocation2 + $0x100] sm:$0xcc] %v981
        %993 = vst [vmem:[#allocation2 + $0x108] sm:$0xcc] %v983
        %994 = vst [vmem:[#allocation2 + $0x110] sm:$0xcc] %v985
        %995 = vst.msk [vmem:[#allocation2 + $0x118] sm:$0xcc] %vm485, %v987
        %996 = vrot.lane.b32.xlu0 %v385, 39
        %v997 = vpop.permute.xlu0 %996
        %998 = vrot.lane.b32.xlu0 %v392, 39
        %v999 = vpop.permute.xlu0 %998
        %1000 = vrot.lane.b32.xlu0 %v400, 39
        %v1001 = vpop.permute.xlu0 %1000
        %1002 = vrot.lane.b32.xlu0 %v407, 39
        %v1003 = vpop.permute.xlu0 %1002
        %1004 = vrot.lane.b32.xlu0 %v562, 39
        %v1005 = vpop.permute.xlu0 %1004
        %v1006 = vrot.slane %v997, 4
        %v1007 = vrot.slane %v999, 4
        %v1008 = vrot.slane %v1001, 4
        %v1009 = vrot.slane %v1003, 4
        %v1010 = vrot.slane %v1005, 4
        %v1011 = vsel %vm420, %v1006, %v1007
        %vm1012 = vcmask 318464
        %v1013 = vsel %vm1012, %v1011, %v999
        %v1014 = vsel %vm420, %v1007, %v1008
        %v1015 = vsel %vm1012, %v1014, %v1001
        %v1016 = vsel %vm420, %v1008, %v1009
        %v1017 = vsel %vm1012, %v1016, %v1003
        %v1018 = vsel %vm420, %v1009, %v1010
        %v1019 = vsel %vm1012, %v1018, %v1005
        %1024 = vst [vmem:[#allocation2 + $0x120] sm:$0x33] %v1013
        %1025 = vst [vmem:[#allocation2 + $0x128] sm:$0x33] %v1015
        %1026 = vst [vmem:[#allocation2 + $0x130] sm:$0x33] %v1017
        %1027 = vst.msk [vmem:[#allocation2 + $0x138] sm:$0x33] %vm438, %v1019
        %1028 = vrot.lane.b32.xlu0 %v447, 38
        %v1029 = vpop.permute.xlu0 %1028
        %1030 = vrot.lane.b32.xlu0 %v385, 38
        %v1031 = vpop.permute.xlu0 %1030
        %1032 = vrot.lane.b32.xlu0 %v455, 38
        %v1033 = vpop.permute.xlu0 %1032
        %1034 = vrot.lane.b32.xlu0 %v400, 38
        %v1035 = vpop.permute.xlu0 %1034
        %1036 = vrot.lane.b32.xlu0 %v523, 38
        %v1037 = vpop.permute.xlu0 %1036
        %v1038 = vrot.slane %v1029, 4
        %v1039 = vrot.slane %v1031, 4
        %v1040 = vrot.slane %v1033, 4
        %v1041 = vrot.slane %v1035, 4
        %v1042 = vrot.slane %v1037, 4
        %v1043 = vsel %vm420, %v1038, %v1039
        %vm1044 = vcmask 310272
        %v1045 = vsel %vm1044, %v1043, %v1031
        %v1046 = vsel %vm420, %v1039, %v1040
        %v1047 = vsel %vm1044, %v1046, %v1033
        %v1048 = vsel %vm420, %v1040, %v1041
        %v1049 = vsel %vm1044, %v1048, %v1035
        %v1050 = vsel %vm420, %v1041, %v1042
        %v1051 = vsel %vm1044, %v1050, %v1037
        %1056 = vst [vmem:[#allocation2 + $0x120] sm:$0xcc] %v1045
        %1057 = vst [vmem:[#allocation2 + $0x128] sm:$0xcc] %v1047
        %1058 = vst [vmem:[#allocation2 + $0x130] sm:$0xcc] %v1049
        %1059 = vst.msk [vmem:[#allocation2 + $0x138] sm:$0xcc] %vm485, %v1051
        %1060 = vrot.lane.b32.xlu0 %v385, 37
        %v1061 = vpop.permute.xlu0 %1060
        %1062 = vrot.lane.b32.xlu0 %v392, 37
        %v1063 = vpop.permute.xlu0 %1062
        %1064 = vrot.lane.b32.xlu0 %v400, 37
        %v1065 = vpop.permute.xlu0 %1064
        %1066 = vrot.lane.b32.xlu0 %v407, 37
        %v1067 = vpop.permute.xlu0 %1066
        %1068 = vrot.lane.b32.xlu0 %v562, 37
        %v1069 = vpop.permute.xlu0 %1068
        %v1070 = vrot.slane %v1061, 4
        %v1071 = vrot.slane %v1063, 4
        %v1072 = vrot.slane %v1065, 4
        %v1073 = vrot.slane %v1067, 4
        %v1074 = vrot.slane %v1069, 4
        %v1075 = vsel %vm420, %v1070, %v1071
        %vm1076 = vcmask 302080
        %v1077 = vsel %vm1076, %v1075, %v1063
        %v1078 = vsel %vm420, %v1071, %v1072
        %v1079 = vsel %vm1076, %v1078, %v1065
        %v1080 = vsel %vm420, %v1072, %v1073
        %v1081 = vsel %vm1076, %v1080, %v1067
        %v1082 = vsel %vm420, %v1073, %v1074
        %v1083 = vsel %vm1076, %v1082, %v1069
        %1088 = vst [vmem:[#allocation2 + $0x140] sm:$0x33] %v1077
        %1089 = vst [vmem:[#allocation2 + $0x148] sm:$0x33] %v1079
        %1090 = vst [vmem:[#allocation2 + $0x150] sm:$0x33] %v1081
        %1091 = vst.msk [vmem:[#allocation2 + $0x158] sm:$0x33] %vm438, %v1083
        %1092 = vrot.lane.b32.xlu0 %v447, 29
        %v1093 = vpop.permute.xlu0 %1092
        %1094 = vrot.lane.b32.xlu0 %v385, 29
        %v1095 = vpop.permute.xlu0 %1094
        %1096 = vrot.lane.b32.xlu0 %v455, 29
        %v1097 = vpop.permute.xlu0 %1096
        %1098 = vrot.lane.b32.xlu0 %v400, 29
        %v1099 = vpop.permute.xlu0 %1098
        %1100 = vrot.lane.b32.xlu0 %v523, 29
        %v1101 = vpop.permute.xlu0 %1100
        %v1102 = vrot.slane %v1093, 4
        %v1103 = vrot.slane %v1095, 4
        %v1104 = vrot.slane %v1097, 4
        %v1105 = vrot.slane %v1099, 4
        %v1106 = vrot.slane %v1101, 4
        %v1107 = vsel %vm420, %v1102, %v1103
        %vm1108 = vcmask 236544
        %v1109 = vsel %vm1108, %v1107, %v1095
        %v1110 = vsel %vm420, %v1103, %v1104
        %v1111 = vsel %vm1108, %v1110, %v1097
        %v1112 = vsel %vm420, %v1104, %v1105
        %v1113 = vsel %vm1108, %v1112, %v1099
        %v1114 = vsel %vm420, %v1105, %v1106
        %v1115 = vsel %vm1108, %v1114, %v1101
        %1120 = vst [vmem:[#allocation2 + $0x140] sm:$0xcc] %v1109
        %1121 = vst [vmem:[#allocation2 + $0x148] sm:$0xcc] %v1111
        %1122 = vst [vmem:[#allocation2 + $0x150] sm:$0xcc] %v1113
        %1123 = vst.msk [vmem:[#allocation2 + $0x158] sm:$0xcc] %vm485, %v1115
        %1124 = vrot.lane.b32.xlu0 %v385, 28
        %v1125 = vpop.permute.xlu0 %1124
        %1126 = vrot.lane.b32.xlu0 %v392, 28
        %v1127 = vpop.permute.xlu0 %1126
        %1128 = vrot.lane.b32.xlu0 %v400, 28
        %v1129 = vpop.permute.xlu0 %1128
        %1130 = vrot.lane.b32.xlu0 %v407, 28
        %v1131 = vpop.permute.xlu0 %1130
        %1132 = vrot.lane.b32.xlu0 %v562, 28
        %v1133 = vpop.permute.xlu0 %1132
        %v1134 = vrot.slane %v1125, 4
        %v1135 = vrot.slane %v1127, 4
        %v1136 = vrot.slane %v1129, 4
        %v1137 = vrot.slane %v1131, 4
        %v1138 = vrot.slane %v1133, 4
        %v1139 = vsel %vm420, %v1134, %v1135
        %vm1140 = vcmask 228352
        %v1141 = vsel %vm1140, %v1139, %v1127
        %v1142 = vsel %vm420, %v1135, %v1136
        %v1143 = vsel %vm1140, %v1142, %v1129
        %v1144 = vsel %vm420, %v1136, %v1137
        %v1145 = vsel %vm1140, %v1144, %v1131
        %v1146 = vsel %vm420, %v1137, %v1138
        %v1147 = vsel %vm1140, %v1146, %v1133
        %1152 = vst [vmem:[#allocation2 + $0x160] sm:$0x33] %v1141
        %1153 = vst [vmem:[#allocation2 + $0x168] sm:$0x33] %v1143
        %1154 = vst [vmem:[#allocation2 + $0x170] sm:$0x33] %v1145
        %1155 = vst.msk [vmem:[#allocation2 + $0x178] sm:$0x33] %vm438, %v1147
        %1156 = vrot.lane.b32.xlu0 %v447, 27
        %v1157 = vpop.permute.xlu0 %1156
        %1158 = vrot.lane.b32.xlu0 %v385, 27
        %v1159 = vpop.permute.xlu0 %1158
        %1160 = vrot.lane.b32.xlu0 %v455, 27
        %v1161 = vpop.permute.xlu0 %1160
        %1162 = vrot.lane.b32.xlu0 %v400, 27
        %v1163 = vpop.permute.xlu0 %1162
        %1164 = vrot.lane.b32.xlu0 %v523, 27
        %v1165 = vpop.permute.xlu0 %1164
        %v1166 = vrot.slane %v1157, 4
        %v1167 = vrot.slane %v1159, 4
        %v1168 = vrot.slane %v1161, 4
        %v1169 = vrot.slane %v1163, 4
        %v1170 = vrot.slane %v1165, 4
        %v1171 = vsel %vm420, %v1166, %v1167
        %vm1172 = vcmask 220160
        %v1173 = vsel %vm1172, %v1171, %v1159
        %v1174 = vsel %vm420, %v1167, %v1168
        %v1175 = vsel %vm1172, %v1174, %v1161
        %v1176 = vsel %vm420, %v1168, %v1169
        %v1177 = vsel %vm1172, %v1176, %v1163
        %v1178 = vsel %vm420, %v1169, %v1170
        %v1179 = vsel %vm1172, %v1178, %v1165
        %1184 = vst [vmem:[#allocation2 + $0x160] sm:$0xcc] %v1173
        %1185 = vst [vmem:[#allocation2 + $0x168] sm:$0xcc] %v1175
        %1186 = vst [vmem:[#allocation2 + $0x170] sm:$0xcc] %v1177
        %1187 = vst.msk [vmem:[#allocation2 + $0x178] sm:$0xcc] %vm485, %v1179
        %1188 = vrot.lane.b32.xlu0 %v385, 19
        %v1189 = vpop.permute.xlu0 %1188
        %1190 = vrot.lane.b32.xlu0 %v392, 19
        %v1191 = vpop.permute.xlu0 %1190
        %1192 = vrot.lane.b32.xlu0 %v400, 19
        %v1193 = vpop.permute.xlu0 %1192
        %1194 = vrot.lane.b32.xlu0 %v407, 19
        %v1195 = vpop.permute.xlu0 %1194
        %1196 = vrot.lane.b32.xlu0 %v562, 19
        %v1197 = vpop.permute.xlu0 %1196
        %v1198 = vrot.slane %v1189, 4
        %v1199 = vrot.slane %v1191, 4
        %v1200 = vrot.slane %v1193, 4
        %v1201 = vrot.slane %v1195, 4
        %v1202 = vrot.slane %v1197, 4
        %v1203 = vsel %vm420, %v1198, %v1199
        %vm1204 = vcmask 154624
        %v1205 = vsel %vm1204, %v1203, %v1191
        %v1206 = vsel %vm420, %v1199, %v1200
        %v1207 = vsel %vm1204, %v1206, %v1193
        %v1208 = vsel %vm420, %v1200, %v1201
        %v1209 = vsel %vm1204, %v1208, %v1195
        %v1210 = vsel %vm420, %v1201, %v1202
        %v1211 = vsel %vm1204, %v1210, %v1197
        %1216 = vst [vmem:[#allocation2 + $0x180] sm:$0x33] %v1205
        %1217 = vst [vmem:[#allocation2 + $0x188] sm:$0x33] %v1207
        %1218 = vst [vmem:[#allocation2 + $0x190] sm:$0x33] %v1209
        %1219 = vst.msk [vmem:[#allocation2 + $0x198] sm:$0x33] %vm438, %v1211
        %1220 = vrot.lane.b32.xlu0 %v447, 18
        %v1221 = vpop.permute.xlu0 %1220
        %1222 = vrot.lane.b32.xlu0 %v385, 18
        %v1223 = vpop.permute.xlu0 %1222
        %1224 = vrot.lane.b32.xlu0 %v455, 18
        %v1225 = vpop.permute.xlu0 %1224
        %1226 = vrot.lane.b32.xlu0 %v400, 18
        %v1227 = vpop.permute.xlu0 %1226
        %1228 = vrot.lane.b32.xlu0 %v523, 18
        %v1229 = vpop.permute.xlu0 %1228
        %v1230 = vrot.slane %v1221, 4
        %v1231 = vrot.slane %v1223, 4
        %v1232 = vrot.slane %v1225, 4
        %v1233 = vrot.slane %v1227, 4
        %v1234 = vrot.slane %v1229, 4
        %v1235 = vsel %vm420, %v1230, %v1231
        %vm1236 = vcmask 146432
        %v1237 = vsel %vm1236, %v1235, %v1223
        %v1238 = vsel %vm420, %v1231, %v1232
        %v1239 = vsel %vm1236, %v1238, %v1225
        %v1240 = vsel %vm420, %v1232, %v1233
        %v1241 = vsel %vm1236, %v1240, %v1227
        %v1242 = vsel %vm420, %v1233, %v1234
        %v1243 = vsel %vm1236, %v1242, %v1229
        %1248 = vst [vmem:[#allocation2 + $0x180] sm:$0xcc] %v1237
        %1249 = vst [vmem:[#allocation2 + $0x188] sm:$0xcc] %v1239
        %1250 = vst [vmem:[#allocation2 + $0x190] sm:$0xcc] %v1241
        %1251 = vst.msk [vmem:[#allocation2 + $0x198] sm:$0xcc] %vm485, %v1243
        %1252 = vrot.lane.b32.xlu0 %v385, 17
        %v1253 = vpop.permute.xlu0 %1252
        %1254 = vrot.lane.b32.xlu0 %v392, 17
        %v1255 = vpop.permute.xlu0 %1254
        %1256 = vrot.lane.b32.xlu0 %v400, 17
        %v1257 = vpop.permute.xlu0 %1256
        %1258 = vrot.lane.b32.xlu0 %v407, 17
        %v1259 = vpop.permute.xlu0 %1258
        %1260 = vrot.lane.b32.xlu0 %v562, 17
        %v1261 = vpop.permute.xlu0 %1260
        %v1262 = vrot.slane %v1253, 4
        %v1263 = vrot.slane %v1255, 4
        %v1264 = vrot.slane %v1257, 4
        %v1265 = vrot.slane %v1259, 4
        %v1266 = vrot.slane %v1261, 4
        %v1267 = vsel %vm420, %v1262, %v1263
        %vm1268 = vcmask 138240
        %v1269 = vsel %vm1268, %v1267, %v1255
        %v1270 = vsel %vm420, %v1263, %v1264
        %v1271 = vsel %vm1268, %v1270, %v1257
        %v1272 = vsel %vm420, %v1264, %v1265
        %v1273 = vsel %vm1268, %v1272, %v1259
        %v1274 = vsel %vm420, %v1265, %v1266
        %v1275 = vsel %vm1268, %v1274, %v1261
        %1280 = vst [vmem:[#allocation2 + $0x1a0] sm:$0x33] %v1269
        %1281 = vst [vmem:[#allocation2 + $0x1a8] sm:$0x33] %v1271
        %1282 = vst [vmem:[#allocation2 + $0x1b0] sm:$0x33] %v1273
        %1283 = vst.msk [vmem:[#allocation2 + $0x1b8] sm:$0x33] %vm438, %v1275
        %v1284 = vld [vmem:[%s2] sm:$0x3]
        %v1285 = vld [vmem:[#allocation2] sm:$0xff]
        %v1286 = vld [vmem:[#allocation2 + $0x8] sm:$0xff]
        %v1287 = vld [vmem:[#allocation2 + $0x10] sm:$0xff]
        %v1288 = vld [vmem:[#allocation2 + $0x18] sm:$0xff]
        %v1289 = vld [vmem:[#allocation2 + $0x20] sm:$0xff]
        %v1290 = vld [vmem:[#allocation2 + $0x28] sm:$0xff]
        %v1291 = vld [vmem:[#allocation2 + $0x30] sm:$0xff]
        %v1292 = vld [vmem:[#allocation2 + $0x38] sm:$0xff]
        %v1293 = vld [vmem:[#allocation2 + $0x40] sm:$0xff]
        %v1294 = vld [vmem:[#allocation2 + $0x48] sm:$0xff]
        %v1295 = vld [vmem:[#allocation2 + $0x50] sm:$0xff]
        %v1296 = vld [vmem:[#allocation2 + $0x58] sm:$0xff]
        %v1297 = vld [vmem:[#allocation2 + $0x60] sm:$0xff]
        %v1298 = vld [vmem:[#allocation2 + $0x68] sm:$0xff]
        %v1299 = vld [vmem:[#allocation2 + $0x70] sm:$0xff]
        %v1300 = vld [vmem:[#allocation2 + $0x78] sm:$0xff]
        %v1301 = vld [vmem:[#allocation2 + $0x80] sm:$0xff]
        %v1302 = vld [vmem:[#allocation2 + $0x88] sm:$0xff]
        %v1303 = vld [vmem:[#allocation2 + $0x90] sm:$0xff]
        %v1304 = vld [vmem:[#allocation2 + $0x98] sm:$0xff]
        %v1305 = vld [vmem:[#allocation2 + $0xa0] sm:$0xff]
        %v1306 = vld [vmem:[#allocation2 + $0xa8] sm:$0xff]
        %v1307 = vld [vmem:[#allocation2 + $0xb0] sm:$0xff]
        %v1308 = vld [vmem:[#allocation2 + $0xb8] sm:$0xff]
        %v1309 = vld [vmem:[#allocation2 + $0xc0] sm:$0xff]
        %v1310 = vld [vmem:[#allocation2 + $0xc8] sm:$0xff]
        %v1311 = vld [vmem:[#allocation2 + $0xd0] sm:$0xff]
        %v1312 = vld [vmem:[#allocation2 + $0xd8] sm:$0xff]
        %v1313 = vld [vmem:[#allocation2 + $0xe0] sm:$0xff]
        %v1314 = vld [vmem:[#allocation2 + $0xe8] sm:$0xff]
        %v1315 = vld [vmem:[#allocation2 + $0xf0] sm:$0xff]
        %v1316 = vld [vmem:[#allocation2 + $0xf8] sm:$0xff]
        %v1317 = vld [vmem:[#allocation2 + $0x100] sm:$0xff]
        %v1318 = vld [vmem:[#allocation2 + $0x108] sm:$0xff]
        %v1319 = vld [vmem:[#allocation2 + $0x110] sm:$0xff]
        %v1320 = vld [vmem:[#allocation2 + $0x118] sm:$0xff]
        %v1321 = vld [vmem:[#allocation2 + $0x120] sm:$0xff]
        %v1322 = vld [vmem:[#allocation2 + $0x128] sm:$0xff]
        %v1323 = vld [vmem:[#allocation2 + $0x130] sm:$0xff]
        %v1324 = vld [vmem:[#allocation2 + $0x138] sm:$0xff]
        %v1325 = vld [vmem:[#allocation2 + $0x140] sm:$0xff]
        %v1326 = vld [vmem:[#allocation2 + $0x148] sm:$0xff]
        %v1327 = vld [vmem:[#allocation2 + $0x150] sm:$0xff]
        %v1328 = vld [vmem:[#allocation2 + $0x158] sm:$0xff]
        %v1329 = vld [vmem:[#allocation2 + $0x160] sm:$0xff]
        %v1330 = vld [vmem:[#allocation2 + $0x168] sm:$0xff]
        %v1331 = vld [vmem:[#allocation2 + $0x170] sm:$0xff]
        %v1332 = vld [vmem:[#allocation2 + $0x178] sm:$0xff]
        %v1333 = vld [vmem:[#allocation2 + $0x180] sm:$0xff]
        %v1334 = vld [vmem:[#allocation2 + $0x188] sm:$0xff]
        %v1335 = vld [vmem:[#allocation2 + $0x190] sm:$0xff]
        %v1336 = vld [vmem:[#allocation2 + $0x198] sm:$0xff]
        %v1337 = vld [vmem:[#allocation2 + $0x1a0] sm:$0x33]
        %v1338 = vld [vmem:[#allocation2 + $0x1a8] sm:$0x33]
        %v1339 = vld [vmem:[#allocation2 + $0x1b0] sm:$0x33]
        %v1340 = vld [vmem:[#allocation2 + $0x1b8] sm:$0x33]
        %v1397 = vunpack.c.l.b16 %v1285
        %v1398 = vunpack.c.h.b16 %v1285
        %v1399 = vunpack.c.l.b16 %v1286
        %v1400 = vunpack.c.h.b16 %v1286
        %v1401 = vunpack.c.l.b16 %v1287
        %v1402 = vunpack.c.h.b16 %v1287
        %v1403 = vunpack.c.l.b16 %v1288
        %v1404 = vunpack.c.h.b16 %v1288
        %v1405 = vunpack.c.l.b16 %v1289
        %v1406 = vunpack.c.h.b16 %v1289
        %v1407 = vunpack.c.l.b16 %v1290
        %v1408 = vunpack.c.h.b16 %v1290
        %v1409 = vunpack.c.l.b16 %v1291
        %v1410 = vunpack.c.h.b16 %v1291
        %v1411 = vunpack.c.l.b16 %v1292
        %v1412 = vunpack.c.h.b16 %v1292
        %v1413 = vunpack.c.l.b16 %v1293
        %v1414 = vunpack.c.h.b16 %v1293
        %v1415 = vunpack.c.l.b16 %v1294
        %v1416 = vunpack.c.h.b16 %v1294
        %v1417 = vunpack.c.l.b16 %v1295
        %v1418 = vunpack.c.h.b16 %v1295
        %v1419 = vunpack.c.l.b16 %v1296
        %v1420 = vunpack.c.h.b16 %v1296
        %v1421 = vunpack.c.l.b16 %v1297
        %v1422 = vunpack.c.h.b16 %v1297
        %v1423 = vunpack.c.l.b16 %v1298
        %v1424 = vunpack.c.h.b16 %v1298
        %v1425 = vunpack.c.l.b16 %v1299
        %v1426 = vunpack.c.h.b16 %v1299
        %v1427 = vunpack.c.l.b16 %v1300
        %v1428 = vunpack.c.h.b16 %v1300
        %v1429 = vunpack.c.l.b16 %v1301
        %v1430 = vunpack.c.h.b16 %v1301
        %v1431 = vunpack.c.l.b16 %v1302
        %v1432 = vunpack.c.h.b16 %v1302
        %v1433 = vunpack.c.l.b16 %v1303
        %v1434 = vunpack.c.h.b16 %v1303
        %v1435 = vunpack.c.l.b16 %v1304
        %v1436 = vunpack.c.h.b16 %v1304
        %v1437 = vunpack.c.l.b16 %v1305
        %v1438 = vunpack.c.h.b16 %v1305
        %v1439 = vunpack.c.l.b16 %v1306
        %v1440 = vunpack.c.h.b16 %v1306
        %v1441 = vunpack.c.l.b16 %v1307
        %v1442 = vunpack.c.h.b16 %v1307
        %v1443 = vunpack.c.l.b16 %v1308
        %v1444 = vunpack.c.h.b16 %v1308
        %v1445 = vunpack.c.l.b16 %v1309
        %v1446 = vunpack.c.h.b16 %v1309
        %v1447 = vunpack.c.l.b16 %v1310
        %v1448 = vunpack.c.h.b16 %v1310
        %v1449 = vunpack.c.l.b16 %v1311
        %v1450 = vunpack.c.h.b16 %v1311
        %v1451 = vunpack.c.l.b16 %v1312
        %v1452 = vunpack.c.h.b16 %v1312
        %v1453 = vunpack.c.l.b16 %v1313
        %v1454 = vunpack.c.h.b16 %v1313
        %v1455 = vunpack.c.l.b16 %v1314
        %v1456 = vunpack.c.h.b16 %v1314
        %v1457 = vunpack.c.l.b16 %v1315
        %v1458 = vunpack.c.h.b16 %v1315
        %v1459 = vunpack.c.l.b16 %v1316
        %v1460 = vunpack.c.h.b16 %v1316
        %v1461 = vunpack.c.l.b16 %v1317
        %v1462 = vunpack.c.h.b16 %v1317
        %v1463 = vunpack.c.l.b16 %v1318
        %v1464 = vunpack.c.h.b16 %v1318
        %v1465 = vunpack.c.l.b16 %v1319
        %v1466 = vunpack.c.h.b16 %v1319
        %v1467 = vunpack.c.l.b16 %v1320
        %v1468 = vunpack.c.h.b16 %v1320
        %v1469 = vunpack.c.l.b16 %v1321
        %v1470 = vunpack.c.h.b16 %v1321
        %v1471 = vunpack.c.l.b16 %v1322
        %v1472 = vunpack.c.h.b16 %v1322
        %v1473 = vunpack.c.l.b16 %v1323
        %v1474 = vunpack.c.h.b16 %v1323
        %v1475 = vunpack.c.l.b16 %v1324
        %v1476 = vunpack.c.h.b16 %v1324
        %v1477 = vunpack.c.l.b16 %v1325
        %v1478 = vunpack.c.h.b16 %v1325
        %v1479 = vunpack.c.l.b16 %v1326
        %v1480 = vunpack.c.h.b16 %v1326
        %v1481 = vunpack.c.l.b16 %v1327
        %v1482 = vunpack.c.h.b16 %v1327
        %v1483 = vunpack.c.l.b16 %v1328
        %v1484 = vunpack.c.h.b16 %v1328
        %v1485 = vunpack.c.l.b16 %v1329
        %v1486 = vunpack.c.h.b16 %v1329
        %v1487 = vunpack.c.l.b16 %v1330
        %v1488 = vunpack.c.h.b16 %v1330
        %v1489 = vunpack.c.l.b16 %v1331
        %v1490 = vunpack.c.h.b16 %v1331
        %v1491 = vunpack.c.l.b16 %v1332
        %v1492 = vunpack.c.h.b16 %v1332
        %v1493 = vunpack.c.l.b16 %v1333
        %v1494 = vunpack.c.h.b16 %v1333
        %v1495 = vunpack.c.l.b16 %v1334
        %v1496 = vunpack.c.h.b16 %v1334
        %v1497 = vunpack.c.l.b16 %v1335
        %v1498 = vunpack.c.h.b16 %v1335
        %v1499 = vunpack.c.l.b16 %v1336
        %v1500 = vunpack.c.h.b16 %v1336
        %v1501 = vunpack.c.l.b16 %v1337
        %v1502 = vunpack.c.h.b16 %v1337
        %v1503 = vunpack.c.l.b16 %v1338
        %v1504 = vunpack.c.h.b16 %v1338
        %v1505 = vunpack.c.l.b16 %v1339
        %v1506 = vunpack.c.h.b16 %v1339
        %v1507 = vunpack.c.l.b16 %v1340
        %v1508 = vunpack.c.h.b16 %v1340
        %v1509 = vpack.c.b16 %v1405, %v1397
        %v1510 = vpack.c.b16 %v1406, %v1398
        %v1511 = vpack.c.b16 %v1407, %v1399
        %v1512 = vpack.c.b16 %v1408, %v1400
        %v1513 = vpack.c.b16 %v1409, %v1401
        %v1514 = vpack.c.b16 %v1410, %v1402
        %v1515 = vpack.c.b16 %v1411, %v1403
        %v1516 = vpack.c.b16 %v1412, %v1404
        %v1517 = vpack.c.b16 %v1421, %v1413
        %v1518 = vpack.c.b16 %v1422, %v1414
        %v1519 = vpack.c.b16 %v1423, %v1415
        %v1520 = vpack.c.b16 %v1424, %v1416
        %v1521 = vpack.c.b16 %v1425, %v1417
        %v1522 = vpack.c.b16 %v1426, %v1418
        %v1523 = vpack.c.b16 %v1427, %v1419
        %v1524 = vpack.c.b16 %v1428, %v1420
        %v1525 = vpack.c.b16 %v1437, %v1429
        %v1526 = vpack.c.b16 %v1438, %v1430
        %v1527 = vpack.c.b16 %v1439, %v1431
        %v1528 = vpack.c.b16 %v1440, %v1432
        %v1529 = vpack.c.b16 %v1441, %v1433
        %v1530 = vpack.c.b16 %v1442, %v1434
        %v1531 = vpack.c.b16 %v1443, %v1435
        %v1532 = vpack.c.b16 %v1444, %v1436
        %v1533 = vpack.c.b16 %v1453, %v1445
        %v1534 = vpack.c.b16 %v1454, %v1446
        %v1535 = vpack.c.b16 %v1455, %v1447
        %v1536 = vpack.c.b16 %v1456, %v1448
        %v1537 = vpack.c.b16 %v1457, %v1449
        %v1538 = vpack.c.b16 %v1458, %v1450
        %v1539 = vpack.c.b16 %v1459, %v1451
        %v1540 = vpack.c.b16 %v1460, %v1452
        %v1541 = vpack.c.b16 %v1469, %v1461
        %v1542 = vpack.c.b16 %v1470, %v1462
        %v1543 = vpack.c.b16 %v1471, %v1463
        %v1544 = vpack.c.b16 %v1472, %v1464
        %v1545 = vpack.c.b16 %v1473, %v1465
        %v1546 = vpack.c.b16 %v1474, %v1466
        %v1547 = vpack.c.b16 %v1475, %v1467
        %v1548 = vpack.c.b16 %v1476, %v1468
        %v1549 = vpack.c.b16 %v1485, %v1477
        %v1550 = vpack.c.b16 %v1486, %v1478
        %v1551 = vpack.c.b16 %v1487, %v1479
        %v1552 = vpack.c.b16 %v1488, %v1480
        %v1553 = vpack.c.b16 %v1489, %v1481
        %v1554 = vpack.c.b16 %v1490, %v1482
        %v1555 = vpack.c.b16 %v1491, %v1483
        %v1556 = vpack.c.b16 %v1492, %v1484
        %v1557 = vpack.c.b16 %v1501, %v1493
        %v1558 = vpack.c.b16 %v1502, %v1494
        %v1559 = vpack.c.b16 %v1503, %v1495
        %v1560 = vpack.c.b16 %v1504, %v1496
        %v1561 = vpack.c.b16 %v1505, %v1497
        %v1562 = vpack.c.b16 %v1506, %v1498
        %v1563 = vpack.c.b16 %v1507, %v1499
        %v1564 = vpack.c.b16 %v1508, %v1500
        %vm1613 = vcmask 883712
        %v1615 = vsel %vm1613, %v1284, 0
        %vm1617 = vcmask 1045504
        %v1619 = vsel %vm1617, %v1557, 0
        %v1622 = vsel %vm1617, %v1558, 0
        %v1625 = vsel %vm1617, %v1559, 0
        %v1628 = vsel %vm1617, %v1560, 0
        %v1631 = vsel %vm1617, %v1561, 0
        %v1634 = vsel %vm1617, %v1562, 0
        %v1637 = vsel %vm1617, %v1563, 0
        %v1640 = vsel %vm1617, %v1564, 0
        %1642 = vmatprep.subr.bf16.mxu0 %v1510
        %1643 = vmatpush1.bf16.msra.mxu0 %v1509
        %1644 = vmatprep.subr.bf16.mxu0 %v1518
        %1645 = vmatpush1.bf16.msra.mxu0 %v1517
        %1646 = vmatprep.subr.bf16.mxu0 %v1526
        %1647 = vmatpush1.bf16.msra.mxu0 %v1525
        %1648 = vmatprep.subr.bf16.mxu0 %v1534
        %1649 = vmatpush1.bf16.msra.mxu0 %v1533
        %1650 = vmatprep.subr.bf16.mxu0 %v1542
        %1651 = vmatpush1.bf16.msra.mxu0 %v1541
        %1652 = vmatprep.subr.bf16.mxu0 %v1550
        %1653 = vmatpush1.bf16.msra.mxu0 %v1549
        %1654 = vmatprep.subr.bf16.mxu0 %v1622
        %1655 = vmatpush1.bf16.msra.mxu0 %v1619
        %1656 = vmatprep.subr.bf16.mxu0 0
        %1657 = vmatpush1.bf16.msra.mxu0 0
        %1658 = vmatprep.subr.bf16.mxu0 0
        %1659 = vmatpush1.bf16.msra.mxu0 0
        %1660 = vmatprep.subr.bf16.mxu0 0
        %1661 = vmatpush1.bf16.msra.mxu0 0
        %1662 = vmatprep.subr.bf16.mxu0 0
        %1663 = vmatpush1.bf16.msra.mxu0 0
        %1664 = vmatprep.subr.bf16.mxu0 0
        %1665 = vmatpush1.bf16.msra.mxu0 0
        %1666 = vmatprep.subr.bf16.mxu0 0
        %1667 = vmatpush1.bf16.msra.mxu0 0
        %1668 = vmatprep.subr.bf16.mxu0 0
        %1669 = vmatpush1.bf16.msra.mxu0 0
        %1670 = vmatprep.subr.bf16.mxu0 0
        %1671 = vmatpush1.bf16.msra.mxu0 0
        %1672 = vmatprep.subr.bf16.mxu0 0
        %1673 = vmatpush1.bf16.msra.mxu0 0
        %1674 = vmatprep.mubr.bf16.mxu0 0
        %1675 = vmatmul.mubr.bf16.gmra.mrb[0].mxu0 %v1615
        %v1676 = vpop.f32.mrb[0].mxu0
        %v1677 = vadd.f32 0.0, %v1676
        %v1678 = vpop.f32.mrb[0].mxu0
        %v1679 = vadd.f32 0.0, %v1678
        %v1680 = vpop.f32.mrb[0].mxu0
        %v1681 = vpop.f32.mrb[0].mxu0
        %1682 = vdwg.mxu0
        %1683 = vmatprep.subr.bf16.mxu0 %v1512
        %1684 = vmatpush1.bf16.msra.mxu0 %v1511
        %1685 = vmatprep.subr.bf16.mxu0 %v1520
        %1686 = vmatpush1.bf16.msra.mxu0 %v1519
        %1687 = vmatprep.subr.bf16.mxu0 %v1528
        %1688 = vmatpush1.bf16.msra.mxu0 %v1527
        %1689 = vmatprep.subr.bf16.mxu0 %v1536
        %1690 = vmatpush1.bf16.msra.mxu0 %v1535
        %1691 = vmatprep.subr.bf16.mxu0 %v1544
        %1692 = vmatpush1.bf16.msra.mxu0 %v1543
        %1693 = vmatprep.subr.bf16.mxu0 %v1552
        %1694 = vmatpush1.bf16.msra.mxu0 %v1551
        %1695 = vmatprep.subr.bf16.mxu0 %v1628
        %1696 = vmatpush1.bf16.msra.mxu0 %v1625
        %1697 = vmatprep.subr.bf16.mxu0 0
        %1698 = vmatpush1.bf16.msra.mxu0 0
        %1699 = vmatprep.subr.bf16.mxu0 0
        %1700 = vmatpush1.bf16.msra.mxu0 0
        %1701 = vmatprep.subr.bf16.mxu0 0
        %1702 = vmatpush1.bf16.msra.mxu0 0
        %1703 = vmatprep.subr.bf16.mxu0 0
        %1704 = vmatpush1.bf16.msra.mxu0 0
        %1705 = vmatprep.subr.bf16.mxu0 0
        %1706 = vmatpush1.bf16.msra.mxu0 0
        %1707 = vmatprep.subr.bf16.mxu0 0
        %1708 = vmatpush1.bf16.msra.mxu0 0
        %1709 = vmatprep.subr.bf16.mxu0 0
        %1710 = vmatpush1.bf16.msra.mxu0 0
        %1711 = vmatprep.subr.bf16.mxu0 0
        %1712 = vmatpush1.bf16.msra.mxu0 0
        %1713 = vmatprep.subr.bf16.mxu0 0
        %1714 = vmatpush1.bf16.msra.mxu0 0
        %1715 = vmatprep.mubr.bf16.mxu0 0
        %1716 = vmatmul.mubr.bf16.gmra.mrb[0].mxu0 %v1615
        %v1717 = vpop.f32.mrb[0].mxu0
        %v1718 = vadd.f32 0.0, %v1717
        %v1719 = vpop.f32.mrb[0].mxu0
        %v1720 = vadd.f32 0.0, %v1719
        %v1721 = vpop.f32.mrb[0].mxu0
        %v1722 = vpop.f32.mrb[0].mxu0
        %1723 = vdwg.mxu0
        %1724 = vmatprep.subr.bf16.mxu0 %v1514
        %1725 = vmatpush1.bf16.msra.mxu0 %v1513
        %1726 = vmatprep.subr.bf16.mxu0 %v1522
        %1727 = vmatpush1.bf16.msra.mxu0 %v1521
        %1728 = vmatprep.subr.bf16.mxu0 %v1530
        %1729 = vmatpush1.bf16.msra.mxu0 %v1529
        %1730 = vmatprep.subr.bf16.mxu0 %v1538
        %1731 = vmatpush1.bf16.msra.mxu0 %v1537
        %1732 = vmatprep.subr.bf16.mxu0 %v1546
        %1733 = vmatpush1.bf16.msra.mxu0 %v1545
        %1734 = vmatprep.subr.bf16.mxu0 %v1554
        %1735 = vmatpush1.bf16.msra.mxu0 %v1553
        %1736 = vmatprep.subr.bf16.mxu0 %v1634
        %1737 = vmatpush1.bf16.msra.mxu0 %v1631
        %1738 = vmatprep.subr.bf16.mxu0 0
        %1739 = vmatpush1.bf16.msra.mxu0 0
        %1740 = vmatprep.subr.bf16.mxu0 0
        %1741 = vmatpush1.bf16.msra.mxu0 0
        %1742 = vmatprep.subr.bf16.mxu0 0
        %1743 = vmatpush1.bf16.msra.mxu0 0
        %1744 = vmatprep.subr.bf16.mxu0 0
        %1745 = vmatpush1.bf16.msra.mxu0 0
        %1746 = vmatprep.subr.bf16.mxu0 0
        %1747 = vmatpush1.bf16.msra.mxu0 0
        %1748 = vmatprep.subr.bf16.mxu0 0
        %1749 = vmatpush1.bf16.msra.mxu0 0
        %1750 = vmatprep.subr.bf16.mxu0 0
        %1751 = vmatpush1.bf16.msra.mxu0 0
        %1752 = vmatprep.subr.bf16.mxu0 0
        %1753 = vmatpush1.bf16.msra.mxu0 0
        %1754 = vmatprep.subr.bf16.mxu0 0
        %1755 = vmatpush1.bf16.msra.mxu0 0
        %1756 = vmatprep.mubr.bf16.mxu0 0
        %1757 = vmatmul.mubr.bf16.gmra.mrb[0].mxu0 %v1615
        %v1758 = vpop.f32.mrb[0].mxu0
        %v1759 = vadd.f32 0.0, %v1758
        %v1760 = vpop.f32.mrb[0].mxu0
        %v1761 = vadd.f32 0.0, %v1760
        %v1762 = vpop.f32.mrb[0].mxu0
        %v1763 = vpop.f32.mrb[0].mxu0
        %1764 = vdwg.mxu0
        %1765 = vmatprep.subr.bf16.mxu0 %v1516
        %1766 = vmatpush1.bf16.msra.mxu0 %v1515
        %1767 = vmatprep.subr.bf16.mxu0 %v1524
        %1768 = vmatpush1.bf16.msra.mxu0 %v1523
        %1769 = vmatprep.subr.bf16.mxu0 %v1532
        %1770 = vmatpush1.bf16.msra.mxu0 %v1531
        %1771 = vmatprep.subr.bf16.mxu0 %v1540
        %1772 = vmatpush1.bf16.msra.mxu0 %v1539
        %1773 = vmatprep.subr.bf16.mxu0 %v1548
        %1774 = vmatpush1.bf16.msra.mxu0 %v1547
        %1775 = vmatprep.subr.bf16.mxu0 %v1556
        %1776 = vmatpush1.bf16.msra.mxu0 %v1555
        %1777 = vmatprep.subr.bf16.mxu0 %v1640
        %1778 = vmatpush1.bf16.msra.mxu0 %v1637
        %1779 = vmatprep.subr.bf16.mxu0 0
        %1780 = vmatpush1.bf16.msra.mxu0 0
        %1781 = vmatprep.subr.bf16.mxu0 0
        %1782 = vmatpush1.bf16.msra.mxu0 0
        %1783 = vmatprep.subr.bf16.mxu0 0
        %1784 = vmatpush1.bf16.msra.mxu0 0
        %1785 = vmatprep.subr.bf16.mxu0 0
        %1786 = vmatpush1.bf16.msra.mxu0 0
        %1787 = vmatprep.subr.bf16.mxu0 0
        %1788 = vmatpush1.bf16.msra.mxu0 0
        %1789 = vmatprep.subr.bf16.mxu0 0
        %1790 = vmatpush1.bf16.msra.mxu0 0
        %1791 = vmatprep.subr.bf16.mxu0 0
        %1792 = vmatpush1.bf16.msra.mxu0 0
        %1793 = vmatprep.subr.bf16.mxu0 0
        %1794 = vmatpush1.bf16.msra.mxu0 0
        %1795 = vmatprep.subr.bf16.mxu0 0
        %1796 = vmatpush1.bf16.msra.mxu0 0
        %1797 = vmatprep.mubr.bf16.mxu0 0
        %1798 = vmatmul.mubr.bf16.gmra.mrb[0].mxu0 %v1615
        %v1799 = vpop.f32.mrb[0].mxu0
        %v1800 = vadd.f32 0.0, %v1799
        %v1801 = vpop.f32.mrb[0].mxu0
        %v1802 = vadd.f32 0.0, %v1801
        %v1803 = vpop.f32.mrb[0].mxu0
        %v1804 = vpop.f32.mrb[0].mxu0
        %1805 = vdwg.mxu0
        %v1806 = vld [vmem:[%s3] sm:$0xf]
        %v1807 = vld [vmem:[%s4] sm:$0xf]
        %v1808 = vld [vmem:[%s5] sm:$0xf]
        %v1810 = vlaneseq
        %v1811 = vshrl.u32 %v1810, 7
        %v1812 = vsub.s32 0, %v1811
        %v1813 = vrot.slane %v372, %v1812
        %v1814 = vlaneseq
        %v1815 = vshrl.u32 %v1814, 7
        %v1816 = vsub.s32 1, %v1815
        %v1817 = vrot.slane %v372, %v1816
        %v1818 = vlaneseq
        %v1819 = vshrl.u32 %v1818, 7
        %v1820 = vsub.s32 2, %v1819
        %v1821 = vrot.slane %v372, %v1820
        %v1822 = vlaneseq
        %v1823 = vshrl.u32 %v1822, 7
        %v1824 = vsub.s32 3, %v1823
        %v1825 = vrot.slane %v372, %v1824
        %v1826 = vlaneseq
        %v1827 = vshrl.u32 %v1826, 7
        %v1828 = vsub.s32 4, %v1827
        %v1829 = vrot.slane %v372, %v1828
        %v1830 = vlaneseq
        %v1831 = vshrl.u32 %v1830, 7
        %v1832 = vsub.s32 5, %v1831
        %v1833 = vrot.slane %v372, %v1832
        %v1834 = vlaneseq
        %v1835 = vshrl.u32 %v1834, 7
        %v1836 = vsub.s32 6, %v1835
        %v1837 = vrot.slane %v372, %v1836
        %v1838 = vlaneseq
        %v1839 = vshrl.u32 %v1838, 7
        %v1840 = vsub.s32 7, %v1839
        %v1841 = vrot.slane %v372, %v1840
        %v1850 = vmul.f32 %v1677, %v1813
        %v1851 = vmul.f32 %v1679, %v1817
        %v1852 = vmul.f32 %v1718, %v1821
        %v1853 = vmul.f32 %v1720, %v1825
        %v1854 = vmul.f32 %v1759, %v1829
        %v1855 = vmul.f32 %v1761, %v1833
        %v1856 = vmul.f32 %v1800, %v1837
        %v1857 = vmul.f32 %v1802, %v1841
        %vm1858 = vcmask 1043456
        %v1859 = vsel %vm1858, %v1850, 0.0
        %v1860 = vsel %vm1858, %v1851, 0.0
        %v1861 = vadd.f32 %v1859, %v1860
        %v1862 = vsel %vm1858, %v1852, 0.0
        %v1863 = vadd.f32 %v1861, %v1862
        %v1864 = vsel %vm1858, %v1853, 0.0
        %v1865 = vadd.f32 %v1863, %v1864
        %v1866 = vsel %vm1858, %v1854, 0.0
        %v1867 = vadd.f32 %v1865, %v1866
        %v1868 = vsel %vm1858, %v1855, 0.0
        %v1869 = vadd.f32 %v1867, %v1868
        %v1870 = vsel %vm1858, %v1856, 0.0
        %v1871 = vadd.f32 %v1869, %v1870
        %vm1872 = vcmask 846848
        %v1873 = vsel %vm1872, %v1857, 0.0
        %v1874 = vadd.f32 %v1871, %v1873
        %1875 = vadd.xlane.f32.xlu0 %v1874
        %v1876 = vpop.xlane.xlu0 %1875
        %v1877 = vmul.f32 %v1876, 0.001953125
        %v1878 = vadd.f32 %v1877, %v1806
        %vm1879 = vcmask 1024
        %v1880 = vsel %vm1879, %v1878, 0.0
        %v1881 = vrot.slane %v1880, 4
        %v1882 = vadd.f32 %v1880, %v1881
        %v1883 = vrot.slane %v1882, 2
        %v1884 = vadd.f32 %v1882, %v1883
        %v1885 = vrot.slane %v1884, 1
        %v1886 = vadd.f32 %v1884, %v1885
        %v1887 = vrcp.pop 2.0
        %v1888 = vmul.f32 %v1886, %v1887
        %v1890 = vrot.slane %v1878, 2
        %v1892 = vsel %vm1879, %v1890, 0.0
        %v1893 = vrot.slane %v1892, 4
        %v1894 = vadd.f32 %v1892, %v1893
        %v1895 = vrot.slane %v1894, 2
        %v1896 = vadd.f32 %v1894, %v1895
        %v1897 = vrot.slane %v1896, 1
        %v1898 = vadd.f32 %v1896, %v1897
        %v1899 = vmul.f32 %v1898, %v1887
        %v1900 = vsel %vm436, %v1888, %v1899
        %v1901 = vsub.f32 %v1806, %v1900
        %1903 = vset.pattern.permute.xlu0 0
        %1904 = vperm.xlu0 %1903, %v1901
        %v1905 = vpop.permute.xlu0 %1904
        %v1907 = vadd.f32 %v1850, %v1905
        %v1908 = vadd.f32 %v1851, %v1905
        %v1909 = vadd.f32 %v1852, %v1905
        %v1910 = vadd.f32 %v1853, %v1905
        %v1911 = vadd.f32 %v1854, %v1905
        %v1912 = vadd.f32 %v1855, %v1905
        %v1913 = vadd.f32 %v1856, %v1905
        %v1914 = vadd.f32 %v1857, %v1905
        %v1915 = vmul.f32 %v1907, %v1813
        %v1916 = vmul.f32 %v1908, %v1817
        %v1917 = vmul.f32 %v1909, %v1821
        %v1918 = vmul.f32 %v1910, %v1825
        %v1919 = vmul.f32 %v1911, %v1829
        %v1920 = vmul.f32 %v1912, %v1833
        %v1921 = vmul.f32 %v1913, %v1837
        %v1922 = vmul.f32 %v1914, %v1841
        %v1923 = vmul.f32 %v1915, %v1915
        %v1924 = vmul.f32 %v1916, %v1916
        %v1925 = vmul.f32 %v1917, %v1917
        %v1926 = vmul.f32 %v1918, %v1918
        %v1927 = vmul.f32 %v1919, %v1919
        %v1928 = vmul.f32 %v1920, %v1920
        %v1929 = vmul.f32 %v1921, %v1921
        %v1930 = vmul.f32 %v1922, %v1922
        %v1931 = vsel %vm1858, %v1923, 0.0
        %v1932 = vsel %vm1858, %v1924, 0.0
        %v1933 = vadd.f32 %v1931, %v1932
        %v1934 = vsel %vm1858, %v1925, 0.0
        %v1935 = vadd.f32 %v1933, %v1934
        %v1936 = vsel %vm1858, %v1926, 0.0
        %v1937 = vadd.f32 %v1935, %v1936
        %v1938 = vsel %vm1858, %v1927, 0.0
        %v1939 = vadd.f32 %v1937, %v1938
        %v1940 = vsel %vm1858, %v1928, 0.0
        %v1941 = vadd.f32 %v1939, %v1940
        %v1942 = vsel %vm1858, %v1929, 0.0
        %v1943 = vadd.f32 %v1941, %v1942
        %v1944 = vsel %vm1872, %v1930, 0.0
        %v1945 = vadd.f32 %v1943, %v1944
        %1946 = vadd.xlane.f32.xlu0 %v1945
        %v1947 = vpop.xlane.xlu0 %1946
        %v1948 = vmul.f32 %v1947, 0.001953125
        %v1949 = vsel %vm436, %v1948, 0.0
        %v1950 = vrot.slane %v1949, 4
        %v1951 = vadd.f32 %v1949, %v1950
        %v1952 = vrot.slane %v1951, 2
        %v1953 = vadd.f32 %v1951, %v1952
        %v1954 = vrot.slane %v1953, 1
        %v1955 = vadd.f32 %v1953, %v1954
        %v1956 = vmul.f32 %v1955, %v1887
        %v1958 = vrot.slane %v1948, 2
        %v1960 = vsel %vm436, %v1958, 0.0
        %v1961 = vrot.slane %v1960, 4
        %v1962 = vadd.f32 %v1960, %v1961
        %v1963 = vrot.slane %v1962, 2
        %v1964 = vadd.f32 %v1962, %v1963
        %v1965 = vrot.slane %v1964, 1
        %v1966 = vadd.f32 %v1964, %v1965
        %v1967 = vmul.f32 %v1966, %v1887
        %v1968 = vsel %vm436, %v1956, %v1967
        %v1969 = vadd.f32 %v1968, 1e-05
        %v1970 = vrsqrt.pop %v1969
        %v1971 = vmul.f32 %v1807, %v1970
        %1973 = vset.pattern.permute.xlu0 0
        %1974 = vperm.xlu0 %1973, %v1971
        %v1975 = vpop.permute.xlu0 %1974
        %v1977 = vmul.f32 %v1915, %v1975
        %v1978 = vmul.f32 %v1916, %v1975
        %v1979 = vmul.f32 %v1917, %v1975
        %v1980 = vmul.f32 %v1918, %v1975
        %v1981 = vmul.f32 %v1919, %v1975
        %v1982 = vmul.f32 %v1920, %v1975
        %v1983 = vmul.f32 %v1921, %v1975
        %v1984 = vmul.f32 %v1922, %v1975
        %1986 = vset.pattern.permute.xlu0 0
        %1987 = vperm.xlu0 %1986, %v1808
        %v1988 = vpop.permute.xlu0 %1987
        %v1990 = vadd.f32 %v1977, %v1988
        %v1991 = vadd.f32 %v1978, %v1988
        %v1992 = vadd.f32 %v1979, %v1988
        %v1993 = vadd.f32 %v1980, %v1988
        %v1994 = vadd.f32 %v1981, %v1988
        %v1995 = vadd.f32 %v1982, %v1988
        %v1996 = vadd.f32 %v1983, %v1988
        %v1997 = vadd.f32 %v1984, %v1988
        %v1998 = vmax.f32 %v1990, 0.0
        %v1999 = vmax.f32 %v1991, 0.0
        %v2000 = vmax.f32 %v1992, 0.0
        %v2001 = vmax.f32 %v1993, 0.0
        %v2002 = vmax.f32 %v1994, 0.0
        %v2003 = vmax.f32 %v1995, 0.0
        %v2004 = vmax.f32 %v1996, 0.0
        %v2005 = vmax.f32 %v1997, 0.0
        %v2006 = vmul.f32 %v1998, %v1813
        %v2007 = vmul.f32 %v1999, %v1817
        %v2008 = vmul.f32 %v2000, %v1821
        %v2009 = vmul.f32 %v2001, %v1825
        %v2010 = vmul.f32 %v2002, %v1829
        %v2011 = vmul.f32 %v2003, %v1833
        %v2012 = vmul.f32 %v2004, %v1837
        %v2013 = vmul.f32 %v2005, %v1841
        %2014 = vst [vmem:[#allocation4] sm:$0x3] 0
        %vm2015 = vcmask 1042240
        %vm2016 = vcmask 846850
        %vm2017 = vmor %vm2016, %vm2015
        %2018 = vst.msk [vmem:[#allocation4 + $0x10] sm:$0xf] %vm2017, 0
        %v2019 = vpack.c.bf16 %v2006, %v2006
        %v2020 = vpack.c.bf16 %v2007, %v2007
        %v2021 = vpack.c.bf16 %v2008, %v2008
        %v2022 = vpack.c.bf16 %v2009, %v2009
        %v2023 = vpack.c.bf16 %v2010, %v2010
        %v2024 = vpack.c.bf16 %v2011, %v2011
        %v2025 = vpack.c.bf16 %v2012, %v2012
        %v2026 = vpack.c.bf16 %v2013, %v2013
        %v2035 = vcombine.low %v2019, %v2020
        %v2036 = vcombine.low %v2021, %v2022
        %v2038 = vunpack.c.l.s4 1983009808
        %v2039 = vunpack.c.0.s8 %v2038
        %v2040 = vlaneseq
        %v2041 = vshrl.u32 %v2040, 7
        %v2042 = vsub.s32 %v2039, %v2041
        %v2043 = vrot.slane %v2035, %v2042
        %v2045 = vunpack.c.l.s4 1983009808
        %v2046 = vunpack.c.0.s8 %v2045
        %v2047 = vlaneseq
        %v2048 = vshrl.u32 %v2047, 7
        %v2049 = vsub.s32 %v2046, %v2048
        %v2050 = vrot.slane %v2036, %v2049
        %v2051 = vcombine.low %v2043, %v2050
        %v2052 = vcombine.low %v2023, %v2024
        %v2053 = vcombine.low %v2025, %v2026
        %v2055 = vunpack.c.l.s4 1983009808
        %v2056 = vunpack.c.0.s8 %v2055
        %v2057 = vlaneseq
        %v2058 = vshrl.u32 %v2057, 7
        %v2059 = vsub.s32 %v2056, %v2058
        %v2060 = vrot.slane %v2052, %v2059
        %v2062 = vunpack.c.l.s4 1983009808
        %v2063 = vunpack.c.0.s8 %v2062
        %v2064 = vlaneseq
        %v2065 = vshrl.u32 %v2064, 7
        %v2066 = vsub.s32 %v2063, %v2065
        %v2067 = vrot.slane %v2053, %v2066
        %v2068 = vcombine.low %v2060, %v2067
        %2071 = vst [vmem:[#allocation4 + $0x2] sm:$0xff] %v2051
        %vm2072 = vmor %vm483, %vm436
        %vm2073 = vcmask 1045508
        %vm2074 = vmor %vm2073, %vm2072
        %vm2075 = vmor %vm484, %vm2074
        %2076 = vst.msk [vmem:[#allocation4 + $0xa] sm:$0xff] %vm2075, %v2068
        %v2077 = vld [vmem:[#allocation4] sm:$0xff]
        %v2078 = vld [vmem:[#allocation4 + $0x8] sm:$0xff]
        %v2079 = vld [vmem:[#allocation4 + $0x10] sm:$0xf]
        %v2082 = vcombine.high %v2077, %v2077
        %v2084 = vunpack.c.l.s4 1983009808
        %v2085 = vunpack.c.0.s8 %v2084
        %v2086 = vlaneseq
        %v2087 = vshrl.u32 %v2086, 7
        %v2088 = vsub.s32 %v2085, %v2087
        %v2089 = vrot.slane %v2077, %v2088
        %v2091 = vunpack.c.l.s4 1983009808
        %v2092 = vunpack.c.0.s8 %v2091
        %v2093 = vlaneseq
        %v2094 = vshrl.u32 %v2093, 7
        %v2095 = vsub.s32 %v2092, %v2094
        %v2096 = vrot.slane %v2082, %v2095
        %v2097 = vcombine.high %v2078, %v2078
        %v2099 = vunpack.c.l.s4 1983009808
        %v2100 = vunpack.c.0.s8 %v2099
        %v2101 = vlaneseq
        %v2102 = vshrl.u32 %v2101, 7
        %v2103 = vsub.s32 %v2100, %v2102
        %v2104 = vrot.slane %v2078, %v2103
        %v2106 = vunpack.c.l.s4 1983009808
        %v2107 = vunpack.c.0.s8 %v2106
        %v2108 = vlaneseq
        %v2109 = vshrl.u32 %v2108, 7
        %v2110 = vsub.s32 %v2107, %v2109
        %v2111 = vrot.slane %v2097, %v2110
        %2112 = vrot.lane.b32.xlu0 %v2089, 111
        %v2113 = vpop.permute.xlu0 %2112
        %2114 = vrot.lane.b32.xlu0 %v2096, 111
        %v2115 = vpop.permute.xlu0 %2114
        %2116 = vrot.lane.b32.xlu0 %v2104, 111
        %v2117 = vpop.permute.xlu0 %2116
        %2118 = vrot.lane.b32.xlu0 %v2111, 111
        %v2119 = vpop.permute.xlu0 %2118
        %v2120 = vrot.slane %v2113, 4
        %v2121 = vrot.slane %v2115, 4
        %v2122 = vrot.slane %v2117, 4
        %v2123 = vrot.slane %v2119, 4
        %v2124 = vsel %vm420, %v2120, %v2121
        %v2125 = vsel %vm422, %v2113, %v2124
        %v2126 = vsel %vm420, %v2121, %v2122
        %v2127 = vsel %vm422, %v2115, %v2126
        %v2128 = vsel %vm420, %v2122, %v2123
        %v2129 = vsel %vm422, %v2117, %v2128
        %v2130 = vsel %vm422, %v2119, %v2123
        %2135 = vst [vmem:[#allocation3] sm:$0x33] %v2125
        %2136 = vst [vmem:[#allocation3 + $0x8] sm:$0x33] %v2127
        %2137 = vst [vmem:[#allocation3 + $0x10] sm:$0x33] %v2129
        %2138 = vst.msk [vmem:[#allocation3 + $0x18] sm:$0x33] %vm438, %v2130
        %v2139 = vcombine.low %v2077, %v2077
        %v2141 = vunpack.c.l.s4 1983009808
        %v2142 = vunpack.c.0.s8 %v2141
        %v2143 = vlaneseq
        %v2144 = vshrl.u32 %v2143, 7
        %v2145 = vsub.s32 %v2142, %v2144
        %v2146 = vrot.slane %v2139, %v2145
        %v2147 = vcombine.low %v2078, %v2078
        %v2149 = vunpack.c.l.s4 1983009808
        %v2150 = vunpack.c.0.s8 %v2149
        %v2151 = vlaneseq
        %v2152 = vshrl.u32 %v2151, 7
        %v2153 = vsub.s32 %v2150, %v2152
        %v2154 = vrot.slane %v2147, %v2153
        %2155 = vrot.lane.b32.xlu0 %v2146, 110
        %v2156 = vpop.permute.xlu0 %2155
        %2157 = vrot.lane.b32.xlu0 %v2089, 110
        %v2158 = vpop.permute.xlu0 %2157
        %2159 = vrot.lane.b32.xlu0 %v2154, 110
        %v2160 = vpop.permute.xlu0 %2159
        %2161 = vrot.lane.b32.xlu0 %v2104, 110
        %v2162 = vpop.permute.xlu0 %2161
        %v2163 = vrot.slane %v2156, 4
        %v2164 = vrot.slane %v2158, 4
        %v2165 = vrot.slane %v2160, 4
        %v2166 = vrot.slane %v2162, 4
        %v2167 = vsel %vm420, %v2163, %v2164
        %v2168 = vsel %vm469, %v2156, %v2167
        %v2169 = vsel %vm420, %v2164, %v2165
        %v2170 = vsel %vm469, %v2158, %v2169
        %v2171 = vsel %vm420, %v2165, %v2166
        %v2172 = vsel %vm469, %v2160, %v2171
        %v2173 = vsel %vm469, %v2162, %v2166
        %2178 = vst [vmem:[#allocation3] sm:$0xcc] %v2168
        %2179 = vst [vmem:[#allocation3 + $0x8] sm:$0xcc] %v2170
        %2180 = vst [vmem:[#allocation3 + $0x10] sm:$0xcc] %v2172
        %2181 = vst.msk [vmem:[#allocation3 + $0x18] sm:$0xcc] %vm485, %v2173
        %2182 = vrot.lane.b32.xlu0 %v2089, 109
        %v2183 = vpop.permute.xlu0 %2182
        %2184 = vrot.lane.b32.xlu0 %v2096, 109
        %v2185 = vpop.permute.xlu0 %2184
        %2186 = vrot.lane.b32.xlu0 %v2104, 109
        %v2187 = vpop.permute.xlu0 %2186
        %2188 = vrot.lane.b32.xlu0 %v2111, 109
        %v2189 = vpop.permute.xlu0 %2188
        %v2190 = vrot.slane %v2183, 4
        %v2191 = vrot.slane %v2185, 4
        %v2192 = vrot.slane %v2187, 4
        %v2193 = vrot.slane %v2189, 4
        %v2194 = vsel %vm420, %v2190, %v2191
        %v2195 = vsel %vm500, %v2183, %v2194
        %v2196 = vsel %vm420, %v2191, %v2192
        %v2197 = vsel %vm500, %v2185, %v2196
        %v2198 = vsel %vm420, %v2192, %v2193
        %v2199 = vsel %vm500, %v2187, %v2198
        %v2200 = vsel %vm500, %v2189, %v2193
        %2205 = vst [vmem:[#allocation3 + $0x20] sm:$0x33] %v2195
        %2206 = vst [vmem:[#allocation3 + $0x28] sm:$0x33] %v2197
        %2207 = vst [vmem:[#allocation3 + $0x30] sm:$0x33] %v2199
        %2208 = vst.msk [vmem:[#allocation3 + $0x38] sm:$0x33] %vm438, %v2200
        %v2210 = vcombine.low %v2079, %v2079
        %v2212 = vunpack.c.l.s4 1983009808
        %v2213 = vunpack.c.0.s8 %v2212
        %v2214 = vlaneseq
        %v2215 = vshrl.u32 %v2214, 7
        %v2216 = vsub.s32 %v2213, %v2215
        %v2217 = vrot.slane %v2210, %v2216
        %2218 = vrot.lane.b32.xlu0 %v2146, 101
        %v2219 = vpop.permute.xlu0 %2218
        %2220 = vrot.lane.b32.xlu0 %v2089, 101
        %v2221 = vpop.permute.xlu0 %2220
        %2222 = vrot.lane.b32.xlu0 %v2154, 101
        %v2223 = vpop.permute.xlu0 %2222
        %2224 = vrot.lane.b32.xlu0 %v2104, 101
        %v2225 = vpop.permute.xlu0 %2224
        %2226 = vrot.lane.b32.xlu0 %v2217, 101
        %v2227 = vpop.permute.xlu0 %2226
        %v2228 = vrot.slane %v2219, 4
        %v2229 = vrot.slane %v2221, 4
        %v2230 = vrot.slane %v2223, 4
        %v2231 = vrot.slane %v2225, 4
        %v2232 = vrot.slane %v2227, 4
        %v2233 = vsel %vm420, %v2228, %v2229
        %v2234 = vsel %vm540, %v2219, %v2233
        %v2235 = vsel %vm420, %v2229, %v2230
        %v2236 = vsel %vm540, %v2221, %v2235
        %v2237 = vsel %vm420, %v2230, %v2231
        %v2238 = vsel %vm540, %v2223, %v2237
        %v2239 = vsel %vm420, %v2231, %v2232
        %v2240 = vsel %vm540, %v2225, %v2239
        %2245 = vst [vmem:[#allocation3 + $0x20] sm:$0xcc] %v2234
        %2246 = vst [vmem:[#allocation3 + $0x28] sm:$0xcc] %v2236
        %2247 = vst [vmem:[#allocation3 + $0x30] sm:$0xcc] %v2238
        %2248 = vst.msk [vmem:[#allocation3 + $0x38] sm:$0xcc] %vm485, %v2240
        %v2250 = vunpack.c.l.s4 1983009808
        %v2251 = vunpack.c.0.s8 %v2250
        %v2252 = vlaneseq
        %v2253 = vshrl.u32 %v2252, 7
        %v2254 = vsub.s32 %v2251, %v2253
        %v2255 = vrot.slane %v2079, %v2254
        %2256 = vrot.lane.b32.xlu0 %v2089, 100
        %v2257 = vpop.permute.xlu0 %2256
        %2258 = vrot.lane.b32.xlu0 %v2096, 100
        %v2259 = vpop.permute.xlu0 %2258
        %2260 = vrot.lane.b32.xlu0 %v2104, 100
        %v2261 = vpop.permute.xlu0 %2260
        %2262 = vrot.lane.b32.xlu0 %v2111, 100
        %v2263 = vpop.permute.xlu0 %2262
        %2264 = vrot.lane.b32.xlu0 %v2255, 100
        %v2265 = vpop.permute.xlu0 %2264
        %v2266 = vrot.slane %v2257, 4
        %v2267 = vrot.slane %v2259, 4
        %v2268 = vrot.slane %v2261, 4
        %v2269 = vrot.slane %v2263, 4
        %v2270 = vrot.slane %v2265, 4
        %v2271 = vsel %vm420, %v2266, %v2267
        %v2272 = vsel %vm579, %v2257, %v2271
        %v2273 = vsel %vm420, %v2267, %v2268
        %v2274 = vsel %vm579, %v2259, %v2273
        %v2275 = vsel %vm420, %v2268, %v2269
        %v2276 = vsel %vm579, %v2261, %v2275
        %v2277 = vsel %vm420, %v2269, %v2270
        %v2278 = vsel %vm579, %v2263, %v2277
        %2283 = vst [vmem:[#allocation3 + $0x40] sm:$0x33] %v2272
        %2284 = vst [vmem:[#allocation3 + $0x48] sm:$0x33] %v2274
        %2285 = vst [vmem:[#allocation3 + $0x50] sm:$0x33] %v2276
        %2286 = vst.msk [vmem:[#allocation3 + $0x58] sm:$0x33] %vm438, %v2278
        %2287 = vrot.lane.b32.xlu0 %v2146, 99
        %v2288 = vpop.permute.xlu0 %2287
        %2289 = vrot.lane.b32.xlu0 %v2089, 99
        %v2290 = vpop.permute.xlu0 %2289
        %2291 = vrot.lane.b32.xlu0 %v2154, 99
        %v2292 = vpop.permute.xlu0 %2291
        %2293 = vrot.lane.b32.xlu0 %v2104, 99
        %v2294 = vpop.permute.xlu0 %2293
        %2295 = vrot.lane.b32.xlu0 %v2217, 99
        %v2296 = vpop.permute.xlu0 %2295
        %v2297 = vrot.slane %v2288, 4
        %v2298 = vrot.slane %v2290, 4
        %v2299 = vrot.slane %v2292, 4
        %v2300 = vrot.slane %v2294, 4
        %v2301 = vrot.slane %v2296, 4
        %v2302 = vsel %vm420, %v2297, %v2298
        %v2303 = vsel %vm611, %v2288, %v2302
        %v2304 = vsel %vm420, %v2298, %v2299
        %v2305 = vsel %vm611, %v2290, %v2304
        %v2306 = vsel %vm420, %v2299, %v2300
        %v2307 = vsel %vm611, %v2292, %v2306
        %v2308 = vsel %vm420, %v2300, %v2301
        %v2309 = vsel %vm611, %v2294, %v2308
        %2314 = vst [vmem:[#allocation3 + $0x40] sm:$0xcc] %v2303
        %2315 = vst [vmem:[#allocation3 + $0x48] sm:$0xcc] %v2305
        %2316 = vst [vmem:[#allocation3 + $0x50] sm:$0xcc] %v2307
        %2317 = vst.msk [vmem:[#allocation3 + $0x58] sm:$0xcc] %vm485, %v2309
        %2318 = vrot.lane.b32.xlu0 %v2089, 91
        %v2319 = vpop.permute.xlu0 %2318
        %2320 = vrot.lane.b32.xlu0 %v2096, 91
        %v2321 = vpop.permute.xlu0 %2320
        %2322 = vrot.lane.b32.xlu0 %v2104, 91
        %v2323 = vpop.permute.xlu0 %2322
        %2324 = vrot.lane.b32.xlu0 %v2111, 91
        %v2325 = vpop.permute.xlu0 %2324
        %2326 = vrot.lane.b32.xlu0 %v2255, 91
        %v2327 = vpop.permute.xlu0 %2326
        %v2328 = vrot.slane %v2319, 4
        %v2329 = vrot.slane %v2321, 4
        %v2330 = vrot.slane %v2323, 4
        %v2331 = vrot.slane %v2325, 4
        %v2332 = vrot.slane %v2327, 4
        %v2333 = vsel %vm420, %v2328, %v2329
        %v2334 = vsel %vm643, %v2319, %v2333
        %v2335 = vsel %vm420, %v2329, %v2330
        %v2336 = vsel %vm643, %v2321, %v2335
        %v2337 = vsel %vm420, %v2330, %v2331
        %v2338 = vsel %vm643, %v2323, %v2337
        %v2339 = vsel %vm420, %v2331, %v2332
        %v2340 = vsel %vm643, %v2325, %v2339
        %2345 = vst [vmem:[#allocation3 + $0x60] sm:$0x33] %v2334
        %2346 = vst [vmem:[#allocation3 + $0x68] sm:$0x33] %v2336
        %2347 = vst [vmem:[#allocation3 + $0x70] sm:$0x33] %v2338
        %2348 = vst.msk [vmem:[#allocation3 + $0x78] sm:$0x33] %vm438, %v2340
        %2349 = vrot.lane.b32.xlu0 %v2146, 90
        %v2350 = vpop.permute.xlu0 %2349
        %2351 = vrot.lane.b32.xlu0 %v2089, 90
        %v2352 = vpop.permute.xlu0 %2351
        %2353 = vrot.lane.b32.xlu0 %v2154, 90
        %v2354 = vpop.permute.xlu0 %2353
        %2355 = vrot.lane.b32.xlu0 %v2104, 90
        %v2356 = vpop.permute.xlu0 %2355
        %2357 = vrot.lane.b32.xlu0 %v2217, 90
        %v2358 = vpop.permute.xlu0 %2357
        %v2359 = vrot.slane %v2350, 4
        %v2360 = vrot.slane %v2352, 4
        %v2361 = vrot.slane %v2354, 4
        %v2362 = vrot.slane %v2356, 4
        %v2363 = vrot.slane %v2358, 4
        %v2364 = vsel %vm420, %v2359, %v2360
        %v2365 = vsel %vm675, %v2350, %v2364
        %v2366 = vsel %vm420, %v2360, %v2361
        %v2367 = vsel %vm675, %v2352, %v2366
        %v2368 = vsel %vm420, %v2361, %v2362
        %v2369 = vsel %vm675, %v2354, %v2368
        %v2370 = vsel %vm420, %v2362, %v2363
        %v2371 = vsel %vm675, %v2356, %v2370
        %2376 = vst [vmem:[#allocation3 + $0x60] sm:$0xcc] %v2365
        %2377 = vst [vmem:[#allocation3 + $0x68] sm:$0xcc] %v2367
        %2378 = vst [vmem:[#allocation3 + $0x70] sm:$0xcc] %v2369
        %2379 = vst.msk [vmem:[#allocation3 + $0x78] sm:$0xcc] %vm485, %v2371
        %2380 = vrot.lane.b32.xlu0 %v2089, 89
        %v2381 = vpop.permute.xlu0 %2380
        %2382 = vrot.lane.b32.xlu0 %v2096, 89
        %v2383 = vpop.permute.xlu0 %2382
        %2384 = vrot.lane.b32.xlu0 %v2104, 89
        %v2385 = vpop.permute.xlu0 %2384
        %2386 = vrot.lane.b32.xlu0 %v2111, 89
        %v2387 = vpop.permute.xlu0 %2386
        %2388 = vrot.lane.b32.xlu0 %v2255, 89
        %v2389 = vpop.permute.xlu0 %2388
        %v2390 = vrot.slane %v2381, 4
        %v2391 = vrot.slane %v2383, 4
        %v2392 = vrot.slane %v2385, 4
        %v2393 = vrot.slane %v2387, 4
        %v2394 = vrot.slane %v2389, 4
        %v2395 = vsel %vm420, %v2390, %v2391
        %v2396 = vsel %vm707, %v2381, %v2395
        %v2397 = vsel %vm420, %v2391, %v2392
        %v2398 = vsel %vm707, %v2383, %v2397
        %v2399 = vsel %vm420, %v2392, %v2393
        %v2400 = vsel %vm707, %v2385, %v2399
        %v2401 = vsel %vm420, %v2393, %v2394
        %v2402 = vsel %vm707, %v2387, %v2401
        %2407 = vst [vmem:[#allocation3 + $0x80] sm:$0x33] %v2396
        %2408 = vst [vmem:[#allocation3 + $0x88] sm:$0x33] %v2398
        %2409 = vst [vmem:[#allocation3 + $0x90] sm:$0x33] %v2400
        %2410 = vst.msk [vmem:[#allocation3 + $0x98] sm:$0x33] %vm438, %v2402
        %2411 = vrot.lane.b32.xlu0 %v2146, 11
        %v2412 = vpop.permute.xlu0 %2411
        %2413 = vrot.lane.b32.xlu0 %v2089, 11
        %v2414 = vpop.permute.xlu0 %2413
        %2415 = vrot.lane.b32.xlu0 %v2154, 11
        %v2416 = vpop.permute.xlu0 %2415
        %2417 = vrot.lane.b32.xlu0 %v2104, 11
        %v2418 = vpop.permute.xlu0 %2417
        %2419 = vrot.lane.b32.xlu0 %v2217, 11
        %v2420 = vpop.permute.xlu0 %2419
        %v2421 = vrot.slane %v2412, 4
        %v2422 = vrot.slane %v2414, 4
        %v2423 = vrot.slane %v2416, 4
        %v2424 = vrot.slane %v2418, 4
        %v2425 = vrot.slane %v2420, 4
        %v2426 = vsel %vm420, %v2421, %v2422
        %v2427 = vsel %vm739, %v2412, %v2426
        %v2428 = vsel %vm420, %v2422, %v2423
        %v2429 = vsel %vm739, %v2414, %v2428
        %v2430 = vsel %vm420, %v2423, %v2424
        %v2431 = vsel %vm739, %v2416, %v2430
        %v2432 = vsel %vm420, %v2424, %v2425
        %v2433 = vsel %vm739, %v2418, %v2432
        %2438 = vst [vmem:[#allocation3 + $0x80] sm:$0xcc] %v2427
        %2439 = vst [vmem:[#allocation3 + $0x88] sm:$0xcc] %v2429
        %2440 = vst [vmem:[#allocation3 + $0x90] sm:$0xcc] %v2431
        %2441 = vst.msk [vmem:[#allocation3 + $0x98] sm:$0xcc] %vm485, %v2433
        %2442 = vrot.lane.b32.xlu0 %v2089, 10
        %v2443 = vpop.permute.xlu0 %2442
        %2444 = vrot.lane.b32.xlu0 %v2096, 10
        %v2445 = vpop.permute.xlu0 %2444
        %2446 = vrot.lane.b32.xlu0 %v2104, 10
        %v2447 = vpop.permute.xlu0 %2446
        %2448 = vrot.lane.b32.xlu0 %v2111, 10
        %v2449 = vpop.permute.xlu0 %2448
        %2450 = vrot.lane.b32.xlu0 %v2255, 10
        %v2451 = vpop.permute.xlu0 %2450
        %v2452 = vrot.slane %v2443, 4
        %v2453 = vrot.slane %v2445, 4
        %v2454 = vrot.slane %v2447, 4
        %v2455 = vrot.slane %v2449, 4
        %v2456 = vrot.slane %v2451, 4
        %v2457 = vsel %vm420, %v2452, %v2453
        %v2458 = vsel %vm771, %v2443, %v2457
        %v2459 = vsel %vm420, %v2453, %v2454
        %v2460 = vsel %vm771, %v2445, %v2459
        %v2461 = vsel %vm420, %v2454, %v2455
        %v2462 = vsel %vm771, %v2447, %v2461
        %v2463 = vsel %vm420, %v2455, %v2456
        %v2464 = vsel %vm771, %v2449, %v2463
        %2469 = vst [vmem:[#allocation3 + $0xa0] sm:$0x33] %v2458
        %2470 = vst [vmem:[#allocation3 + $0xa8] sm:$0x33] %v2460
        %2471 = vst [vmem:[#allocation3 + $0xb0] sm:$0x33] %v2462
        %2472 = vst.msk [vmem:[#allocation3 + $0xb8] sm:$0x33] %vm438, %v2464
        %2473 = vrot.lane.b32.xlu0 %v2146, 9
        %v2474 = vpop.permute.xlu0 %2473
        %2475 = vrot.lane.b32.xlu0 %v2089, 9
        %v2476 = vpop.permute.xlu0 %2475
        %2477 = vrot.lane.b32.xlu0 %v2154, 9
        %v2478 = vpop.permute.xlu0 %2477
        %2479 = vrot.lane.b32.xlu0 %v2104, 9
        %v2480 = vpop.permute.xlu0 %2479
        %2481 = vrot.lane.b32.xlu0 %v2217, 9
        %v2482 = vpop.permute.xlu0 %2481
        %v2483 = vrot.slane %v2474, 4
        %v2484 = vrot.slane %v2476, 4
        %v2485 = vrot.slane %v2478, 4
        %v2486 = vrot.slane %v2480, 4
        %v2487 = vrot.slane %v2482, 4
        %v2488 = vsel %vm420, %v2483, %v2484
        %v2489 = vsel %vm803, %v2474, %v2488
        %v2490 = vsel %vm420, %v2484, %v2485
        %v2491 = vsel %vm803, %v2476, %v2490
        %v2492 = vsel %vm420, %v2485, %v2486
        %v2493 = vsel %vm803, %v2478, %v2492
        %v2494 = vsel %vm420, %v2486, %v2487
        %v2495 = vsel %vm803, %v2480, %v2494
        %2500 = vst [vmem:[#allocation3 + $0xa0] sm:$0xcc] %v2489
        %2501 = vst [vmem:[#allocation3 + $0xa8] sm:$0xcc] %v2491
        %2502 = vst [vmem:[#allocation3 + $0xb0] sm:$0xcc] %v2493
        %2503 = vst.msk [vmem:[#allocation3 + $0xb8] sm:$0xcc] %vm485, %v2495
        %2504 = vrot.lane.b32.xlu0 %v2089, 1
        %v2505 = vpop.permute.xlu0 %2504
        %2506 = vrot.lane.b32.xlu0 %v2096, 1
        %v2507 = vpop.permute.xlu0 %2506
        %2508 = vrot.lane.b32.xlu0 %v2104, 1
        %v2509 = vpop.permute.xlu0 %2508
        %2510 = vrot.lane.b32.xlu0 %v2111, 1
        %v2511 = vpop.permute.xlu0 %2510
        %2512 = vrot.lane.b32.xlu0 %v2255, 1
        %v2513 = vpop.permute.xlu0 %2512
        %v2514 = vrot.slane %v2505, 4
        %v2515 = vrot.slane %v2507, 4
        %v2516 = vrot.slane %v2509, 4
        %v2517 = vrot.slane %v2511, 4
        %v2518 = vrot.slane %v2513, 4
        %v2519 = vsel %vm420, %v2514, %v2515
        %v2520 = vsel %vm835, %v2505, %v2519
        %v2521 = vsel %vm420, %v2515, %v2516
        %v2522 = vsel %vm835, %v2507, %v2521
        %v2523 = vsel %vm420, %v2516, %v2517
        %v2524 = vsel %vm835, %v2509, %v2523
        %v2525 = vsel %vm420, %v2517, %v2518
        %v2526 = vsel %vm835, %v2511, %v2525
        %2531 = vst [vmem:[#allocation3 + $0xc0] sm:$0x33] %v2520
        %2532 = vst [vmem:[#allocation3 + $0xc8] sm:$0x33] %v2522
        %2533 = vst [vmem:[#allocation3 + $0xd0] sm:$0x33] %v2524
        %2534 = vst.msk [vmem:[#allocation3 + $0xd8] sm:$0x33] %vm438, %v2526
        %v2535 = vrot.slane %v2146, 4
        %v2536 = vrot.slane %v2089, 4
        %v2537 = vrot.slane %v2154, 4
        %v2538 = vrot.slane %v2104, 4
        %v2539 = vrot.slane %v2217, 4
        %v2540 = vsel %vm420, %v2535, %v2536
        %v2541 = vsel %vm420, %v2536, %v2537
        %v2542 = vsel %vm420, %v2537, %v2538
        %v2543 = vsel %vm420, %v2538, %v2539
        %2548 = vst [vmem:[#allocation3 + $0xc0] sm:$0xcc] %v2540
        %2549 = vst [vmem:[#allocation3 + $0xc8] sm:$0xcc] %v2541
        %2550 = vst [vmem:[#allocation3 + $0xd0] sm:$0xcc] %v2542
        %2551 = vst.msk [vmem:[#allocation3 + $0xd8] sm:$0xcc] %vm485, %v2543
        %2552 = vrot.lane.b32.xlu0 %v2089, 127
        %v2553 = vpop.permute.xlu0 %2552
        %2554 = vrot.lane.b32.xlu0 %v2096, 127
        %v2555 = vpop.permute.xlu0 %2554
        %2556 = vrot.lane.b32.xlu0 %v2104, 127
        %v2557 = vpop.permute.xlu0 %2556
        %2558 = vrot.lane.b32.xlu0 %v2111, 127
        %v2559 = vpop.permute.xlu0 %2558
        %2560 = vrot.lane.b32.xlu0 %v2255, 127
        %v2561 = vpop.permute.xlu0 %2560
        %v2562 = vrot.slane %v2553, 4
        %v2563 = vrot.slane %v2555, 4
        %v2564 = vrot.slane %v2557, 4
        %v2565 = vrot.slane %v2559, 4
        %v2566 = vrot.slane %v2561, 4
        %v2567 = vsel %vm420, %v2562, %v2563
        %v2568 = vsel %vm884, %v2567, %v2555
        %v2569 = vsel %vm420, %v2563, %v2564
        %v2570 = vsel %vm884, %v2569, %v2557
        %v2571 = vsel %vm420, %v2564, %v2565
        %v2572 = vsel %vm884, %v2571, %v2559
        %v2573 = vsel %vm420, %v2565, %v2566
        %v2574 = vsel %vm884, %v2573, %v2561
        %2579 = vst [vmem:[#allocation3 + $0xe0] sm:$0x33] %v2568
        %2580 = vst [vmem:[#allocation3 + $0xe8] sm:$0x33] %v2570
        %2581 = vst [vmem:[#allocation3 + $0xf0] sm:$0x33] %v2572
        %2582 = vst.msk [vmem:[#allocation3 + $0xf8] sm:$0x33] %vm438, %v2574
        %2583 = vrot.lane.b32.xlu0 %v2146, 119
        %v2584 = vpop.permute.xlu0 %2583
        %2585 = vrot.lane.b32.xlu0 %v2089, 119
        %v2586 = vpop.permute.xlu0 %2585
        %2587 = vrot.lane.b32.xlu0 %v2154, 119
        %v2588 = vpop.permute.xlu0 %2587
        %2589 = vrot.lane.b32.xlu0 %v2104, 119
        %v2590 = vpop.permute.xlu0 %2589
        %2591 = vrot.lane.b32.xlu0 %v2217, 119
        %v2592 = vpop.permute.xlu0 %2591
        %v2593 = vrot.slane %v2584, 4
        %v2594 = vrot.slane %v2586, 4
        %v2595 = vrot.slane %v2588, 4
        %v2596 = vrot.slane %v2590, 4
        %v2597 = vrot.slane %v2592, 4
        %v2598 = vsel %vm420, %v2593, %v2594
        %v2599 = vsel %vm916, %v2598, %v2586
        %v2600 = vsel %vm420, %v2594, %v2595
        %v2601 = vsel %vm916, %v2600, %v2588
        %v2602 = vsel %vm420, %v2595, %v2596
        %v2603 = vsel %vm916, %v2602, %v2590
        %v2604 = vsel %vm420, %v2596, %v2597
        %v2605 = vsel %vm916, %v2604, %v2592
        %2610 = vst [vmem:[#allocation3 + $0xe0] sm:$0xcc] %v2599
        %2611 = vst [vmem:[#allocation3 + $0xe8] sm:$0xcc] %v2601
        %2612 = vst [vmem:[#allocation3 + $0xf0] sm:$0xcc] %v2603
        %2613 = vst.msk [vmem:[#allocation3 + $0xf8] sm:$0xcc] %vm485, %v2605
        %2614 = vrot.lane.b32.xlu0 %v2089, 118
        %v2615 = vpop.permute.xlu0 %2614
        %2616 = vrot.lane.b32.xlu0 %v2096, 118
        %v2617 = vpop.permute.xlu0 %2616
        %2618 = vrot.lane.b32.xlu0 %v2104, 118
        %v2619 = vpop.permute.xlu0 %2618
        %2620 = vrot.lane.b32.xlu0 %v2111, 118
        %v2621 = vpop.permute.xlu0 %2620
        %2622 = vrot.lane.b32.xlu0 %v2255, 118
        %v2623 = vpop.permute.xlu0 %2622
        %v2624 = vrot.slane %v2615, 4
        %v2625 = vrot.slane %v2617, 4
        %v2626 = vrot.slane %v2619, 4
        %v2627 = vrot.slane %v2621, 4
        %v2628 = vrot.slane %v2623, 4
        %v2629 = vsel %vm420, %v2624, %v2625
        %v2630 = vsel %vm948, %v2629, %v2617
        %v2631 = vsel %vm420, %v2625, %v2626
        %v2632 = vsel %vm948, %v2631, %v2619
        %v2633 = vsel %vm420, %v2626, %v2627
        %v2634 = vsel %vm948, %v2633, %v2621
        %v2635 = vsel %vm420, %v2627, %v2628
        %v2636 = vsel %vm948, %v2635, %v2623
        %2641 = vst [vmem:[#allocation3 + $0x100] sm:$0x33] %v2630
        %2642 = vst [vmem:[#allocation3 + $0x108] sm:$0x33] %v2632
        %2643 = vst [vmem:[#allocation3 + $0x110] sm:$0x33] %v2634
        %2644 = vst.msk [vmem:[#allocation3 + $0x118] sm:$0x33] %vm438, %v2636
        %2645 = vrot.lane.b32.xlu0 %v2146, 117
        %v2646 = vpop.permute.xlu0 %2645
        %2647 = vrot.lane.b32.xlu0 %v2089, 117
        %v2648 = vpop.permute.xlu0 %2647
        %2649 = vrot.lane.b32.xlu0 %v2154, 117
        %v2650 = vpop.permute.xlu0 %2649
        %2651 = vrot.lane.b32.xlu0 %v2104, 117
        %v2652 = vpop.permute.xlu0 %2651
        %2653 = vrot.lane.b32.xlu0 %v2217, 117
        %v2654 = vpop.permute.xlu0 %2653
        %v2655 = vrot.slane %v2646, 4
        %v2656 = vrot.slane %v2648, 4
        %v2657 = vrot.slane %v2650, 4
        %v2658 = vrot.slane %v2652, 4
        %v2659 = vrot.slane %v2654, 4
        %v2660 = vsel %vm420, %v2655, %v2656
        %v2661 = vsel %vm980, %v2660, %v2648
        %v2662 = vsel %vm420, %v2656, %v2657
        %v2663 = vsel %vm980, %v2662, %v2650
        %v2664 = vsel %vm420, %v2657, %v2658
        %v2665 = vsel %vm980, %v2664, %v2652
        %v2666 = vsel %vm420, %v2658, %v2659
        %v2667 = vsel %vm980, %v2666, %v2654
        %2672 = vst [vmem:[#allocation3 + $0x100] sm:$0xcc] %v2661
        %2673 = vst [vmem:[#allocation3 + $0x108] sm:$0xcc] %v2663
        %2674 = vst [vmem:[#allocation3 + $0x110] sm:$0xcc] %v2665
        %2675 = vst.msk [vmem:[#allocation3 + $0x118] sm:$0xcc] %vm485, %v2667
        %2676 = vrot.lane.b32.xlu0 %v2089, 39
        %v2677 = vpop.permute.xlu0 %2676
        %2678 = vrot.lane.b32.xlu0 %v2096, 39
        %v2679 = vpop.permute.xlu0 %2678
        %2680 = vrot.lane.b32.xlu0 %v2104, 39
        %v2681 = vpop.permute.xlu0 %2680
        %2682 = vrot.lane.b32.xlu0 %v2111, 39
        %v2683 = vpop.permute.xlu0 %2682
        %2684 = vrot.lane.b32.xlu0 %v2255, 39
        %v2685 = vpop.permute.xlu0 %2684
        %v2686 = vrot.slane %v2677, 4
        %v2687 = vrot.slane %v2679, 4
        %v2688 = vrot.slane %v2681, 4
        %v2689 = vrot.slane %v2683, 4
        %v2690 = vrot.slane %v2685, 4
        %v2691 = vsel %vm420, %v2686, %v2687
        %v2692 = vsel %vm1012, %v2691, %v2679
        %v2693 = vsel %vm420, %v2687, %v2688
        %v2694 = vsel %vm1012, %v2693, %v2681
        %v2695 = vsel %vm420, %v2688, %v2689
        %v2696 = vsel %vm1012, %v2695, %v2683
        %v2697 = vsel %vm420, %v2689, %v2690
        %v2698 = vsel %vm1012, %v2697, %v2685
        %2703 = vst [vmem:[#allocation3 + $0x120] sm:$0x33] %v2692
        %2704 = vst [vmem:[#allocation3 + $0x128] sm:$0x33] %v2694
        %2705 = vst [vmem:[#allocation3 + $0x130] sm:$0x33] %v2696
        %2706 = vst.msk [vmem:[#allocation3 + $0x138] sm:$0x33] %vm438, %v2698
        %2707 = vrot.lane.b32.xlu0 %v2146, 38
        %v2708 = vpop.permute.xlu0 %2707
        %2709 = vrot.lane.b32.xlu0 %v2089, 38
        %v2710 = vpop.permute.xlu0 %2709
        %2711 = vrot.lane.b32.xlu0 %v2154, 38
        %v2712 = vpop.permute.xlu0 %2711
        %2713 = vrot.lane.b32.xlu0 %v2104, 38
        %v2714 = vpop.permute.xlu0 %2713
        %2715 = vrot.lane.b32.xlu0 %v2217, 38
        %v2716 = vpop.permute.xlu0 %2715
        %v2717 = vrot.slane %v2708, 4
        %v2718 = vrot.slane %v2710, 4
        %v2719 = vrot.slane %v2712, 4
        %v2720 = vrot.slane %v2714, 4
        %v2721 = vrot.slane %v2716, 4
        %v2722 = vsel %vm420, %v2717, %v2718
        %v2723 = vsel %vm1044, %v2722, %v2710
        %v2724 = vsel %vm420, %v2718, %v2719
        %v2725 = vsel %vm1044, %v2724, %v2712
        %v2726 = vsel %vm420, %v2719, %v2720
        %v2727 = vsel %vm1044, %v2726, %v2714
        %v2728 = vsel %vm420, %v2720, %v2721
        %v2729 = vsel %vm1044, %v2728, %v2716
        %2734 = vst [vmem:[#allocation3 + $0x120] sm:$0xcc] %v2723
        %2735 = vst [vmem:[#allocation3 + $0x128] sm:$0xcc] %v2725
        %2736 = vst [vmem:[#allocation3 + $0x130] sm:$0xcc] %v2727
        %2737 = vst.msk [vmem:[#allocation3 + $0x138] sm:$0xcc] %vm485, %v2729
        %2738 = vrot.lane.b32.xlu0 %v2089, 37
        %v2739 = vpop.permute.xlu0 %2738
        %2740 = vrot.lane.b32.xlu0 %v2096, 37
        %v2741 = vpop.permute.xlu0 %2740
        %2742 = vrot.lane.b32.xlu0 %v2104, 37
        %v2743 = vpop.permute.xlu0 %2742
        %2744 = vrot.lane.b32.xlu0 %v2111, 37
        %v2745 = vpop.permute.xlu0 %2744
        %2746 = vrot.lane.b32.xlu0 %v2255, 37
        %v2747 = vpop.permute.xlu0 %2746
        %v2748 = vrot.slane %v2739, 4
        %v2749 = vrot.slane %v2741, 4
        %v2750 = vrot.slane %v2743, 4
        %v2751 = vrot.slane %v2745, 4
        %v2752 = vrot.slane %v2747, 4
        %v2753 = vsel %vm420, %v2748, %v2749
        %v2754 = vsel %vm1076, %v2753, %v2741
        %v2755 = vsel %vm420, %v2749, %v2750
        %v2756 = vsel %vm1076, %v2755, %v2743
        %v2757 = vsel %vm420, %v2750, %v2751
        %v2758 = vsel %vm1076, %v2757, %v2745
        %v2759 = vsel %vm420, %v2751, %v2752
        %v2760 = vsel %vm1076, %v2759, %v2747
        %2765 = vst [vmem:[#allocation3 + $0x140] sm:$0x33] %v2754
        %2766 = vst [vmem:[#allocation3 + $0x148] sm:$0x33] %v2756
        %2767 = vst [vmem:[#allocation3 + $0x150] sm:$0x33] %v2758
        %2768 = vst.msk [vmem:[#allocation3 + $0x158] sm:$0x33] %vm438, %v2760
        %2769 = vrot.lane.b32.xlu0 %v2146, 29
        %v2770 = vpop.permute.xlu0 %2769
        %2771 = vrot.lane.b32.xlu0 %v2089, 29
        %v2772 = vpop.permute.xlu0 %2771
        %2773 = vrot.lane.b32.xlu0 %v2154, 29
        %v2774 = vpop.permute.xlu0 %2773
        %2775 = vrot.lane.b32.xlu0 %v2104, 29
        %v2776 = vpop.permute.xlu0 %2775
        %2777 = vrot.lane.b32.xlu0 %v2217, 29
        %v2778 = vpop.permute.xlu0 %2777
        %v2779 = vrot.slane %v2770, 4
        %v2780 = vrot.slane %v2772, 4
        %v2781 = vrot.slane %v2774, 4
        %v2782 = vrot.slane %v2776, 4
        %v2783 = vrot.slane %v2778, 4
        %v2784 = vsel %vm420, %v2779, %v2780
        %v2785 = vsel %vm1108, %v2784, %v2772
        %v2786 = vsel %vm420, %v2780, %v2781
        %v2787 = vsel %vm1108, %v2786, %v2774
        %v2788 = vsel %vm420, %v2781, %v2782
        %v2789 = vsel %vm1108, %v2788, %v2776
        %v2790 = vsel %vm420, %v2782, %v2783
        %v2791 = vsel %vm1108, %v2790, %v2778
        %2796 = vst [vmem:[#allocation3 + $0x140] sm:$0xcc] %v2785
        %2797 = vst [vmem:[#allocation3 + $0x148] sm:$0xcc] %v2787
        %2798 = vst [vmem:[#allocation3 + $0x150] sm:$0xcc] %v2789
        %2799 = vst.msk [vmem:[#allocation3 + $0x158] sm:$0xcc] %vm485, %v2791
        %2800 = vrot.lane.b32.xlu0 %v2089, 28
        %v2801 = vpop.permute.xlu0 %2800
        %2802 = vrot.lane.b32.xlu0 %v2096, 28
        %v2803 = vpop.permute.xlu0 %2802
        %2804 = vrot.lane.b32.xlu0 %v2104, 28
        %v2805 = vpop.permute.xlu0 %2804
        %2806 = vrot.lane.b32.xlu0 %v2111, 28
        %v2807 = vpop.permute.xlu0 %2806
        %2808 = vrot.lane.b32.xlu0 %v2255, 28
        %v2809 = vpop.permute.xlu0 %2808
        %v2810 = vrot.slane %v2801, 4
        %v2811 = vrot.slane %v2803, 4
        %v2812 = vrot.slane %v2805, 4
        %v2813 = vrot.slane %v2807, 4
        %v2814 = vrot.slane %v2809, 4
        %v2815 = vsel %vm420, %v2810, %v2811
        %v2816 = vsel %vm1140, %v2815, %v2803
        %v2817 = vsel %vm420, %v2811, %v2812
        %v2818 = vsel %vm1140, %v2817, %v2805
        %v2819 = vsel %vm420, %v2812, %v2813
        %v2820 = vsel %vm1140, %v2819, %v2807
        %v2821 = vsel %vm420, %v2813, %v2814
        %v2822 = vsel %vm1140, %v2821, %v2809
        %2827 = vst [vmem:[#allocation3 + $0x160] sm:$0x33] %v2816
        %2828 = vst [vmem:[#allocation3 + $0x168] sm:$0x33] %v2818
        %2829 = vst [vmem:[#allocation3 + $0x170] sm:$0x33] %v2820
        %2830 = vst.msk [vmem:[#allocation3 + $0x178] sm:$0x33] %vm438, %v2822
        %2831 = vrot.lane.b32.xlu0 %v2146, 27
        %v2832 = vpop.permute.xlu0 %2831
        %2833 = vrot.lane.b32.xlu0 %v2089, 27
        %v2834 = vpop.permute.xlu0 %2833
        %2835 = vrot.lane.b32.xlu0 %v2154, 27
        %v2836 = vpop.permute.xlu0 %2835
        %2837 = vrot.lane.b32.xlu0 %v2104, 27
        %v2838 = vpop.permute.xlu0 %2837
        %2839 = vrot.lane.b32.xlu0 %v2217, 27
        %v2840 = vpop.permute.xlu0 %2839
        %v2841 = vrot.slane %v2832, 4
        %v2842 = vrot.slane %v2834, 4
        %v2843 = vrot.slane %v2836, 4
        %v2844 = vrot.slane %v2838, 4
        %v2845 = vrot.slane %v2840, 4
        %v2846 = vsel %vm420, %v2841, %v2842
        %v2847 = vsel %vm1172, %v2846, %v2834
        %v2848 = vsel %vm420, %v2842, %v2843
        %v2849 = vsel %vm1172, %v2848, %v2836
        %v2850 = vsel %vm420, %v2843, %v2844
        %v2851 = vsel %vm1172, %v2850, %v2838
        %v2852 = vsel %vm420, %v2844, %v2845
        %v2853 = vsel %vm1172, %v2852, %v2840
        %2858 = vst [vmem:[#allocation3 + $0x160] sm:$0xcc] %v2847
        %2859 = vst [vmem:[#allocation3 + $0x168] sm:$0xcc] %v2849
        %2860 = vst [vmem:[#allocation3 + $0x170] sm:$0xcc] %v2851
        %2861 = vst.msk [vmem:[#allocation3 + $0x178] sm:$0xcc] %vm485, %v2853
        %2862 = vrot.lane.b32.xlu0 %v2089, 19
        %v2863 = vpop.permute.xlu0 %2862
        %2864 = vrot.lane.b32.xlu0 %v2096, 19
        %v2865 = vpop.permute.xlu0 %2864
        %2866 = vrot.lane.b32.xlu0 %v2104, 19
        %v2867 = vpop.permute.xlu0 %2866
        %2868 = vrot.lane.b32.xlu0 %v2111, 19
        %v2869 = vpop.permute.xlu0 %2868
        %2870 = vrot.lane.b32.xlu0 %v2255, 19
        %v2871 = vpop.permute.xlu0 %2870
        %v2872 = vrot.slane %v2863, 4
        %v2873 = vrot.slane %v2865, 4
        %v2874 = vrot.slane %v2867, 4
        %v2875 = vrot.slane %v2869, 4
        %v2876 = vrot.slane %v2871, 4
        %v2877 = vsel %vm420, %v2872, %v2873
        %v2878 = vsel %vm1204, %v2877, %v2865
        %v2879 = vsel %vm420, %v2873, %v2874
        %v2880 = vsel %vm1204, %v2879, %v2867
        %v2881 = vsel %vm420, %v2874, %v2875
        %v2882 = vsel %vm1204, %v2881, %v2869
        %v2883 = vsel %vm420, %v2875, %v2876
        %v2884 = vsel %vm1204, %v2883, %v2871
        %2889 = vst [vmem:[#allocation3 + $0x180] sm:$0x33] %v2878
        %2890 = vst [vmem:[#allocation3 + $0x188] sm:$0x33] %v2880
        %2891 = vst [vmem:[#allocation3 + $0x190] sm:$0x33] %v2882
        %2892 = vst.msk [vmem:[#allocation3 + $0x198] sm:$0x33] %vm438, %v2884
        %2893 = vrot.lane.b32.xlu0 %v2146, 18
        %v2894 = vpop.permute.xlu0 %2893
        %2895 = vrot.lane.b32.xlu0 %v2089, 18
        %v2896 = vpop.permute.xlu0 %2895
        %2897 = vrot.lane.b32.xlu0 %v2154, 18
        %v2898 = vpop.permute.xlu0 %2897
        %2899 = vrot.lane.b32.xlu0 %v2104, 18
        %v2900 = vpop.permute.xlu0 %2899
        %2901 = vrot.lane.b32.xlu0 %v2217, 18
        %v2902 = vpop.permute.xlu0 %2901
        %v2903 = vrot.slane %v2894, 4
        %v2904 = vrot.slane %v2896, 4
        %v2905 = vrot.slane %v2898, 4
        %v2906 = vrot.slane %v2900, 4
        %v2907 = vrot.slane %v2902, 4
        %v2908 = vsel %vm420, %v2903, %v2904
        %v2909 = vsel %vm1236, %v2908, %v2896
        %v2910 = vsel %vm420, %v2904, %v2905
        %v2911 = vsel %vm1236, %v2910, %v2898
        %v2912 = vsel %vm420, %v2905, %v2906
        %v2913 = vsel %vm1236, %v2912, %v2900
        %v2914 = vsel %vm420, %v2906, %v2907
        %v2915 = vsel %vm1236, %v2914, %v2902
        %2920 = vst [vmem:[#allocation3 + $0x180] sm:$0xcc] %v2909
        %2921 = vst [vmem:[#allocation3 + $0x188] sm:$0xcc] %v2911
        %2922 = vst [vmem:[#allocation3 + $0x190] sm:$0xcc] %v2913
        %2923 = vst.msk [vmem:[#allocation3 + $0x198] sm:$0xcc] %vm485, %v2915
        %2924 = vrot.lane.b32.xlu0 %v2089, 17
        %v2925 = vpop.permute.xlu0 %2924
        %2926 = vrot.lane.b32.xlu0 %v2096, 17
        %v2927 = vpop.permute.xlu0 %2926
        %2928 = vrot.lane.b32.xlu0 %v2104, 17
        %v2929 = vpop.permute.xlu0 %2928
        %2930 = vrot.lane.b32.xlu0 %v2111, 17
        %v2931 = vpop.permute.xlu0 %2930
        %2932 = vrot.lane.b32.xlu0 %v2255, 17
        %v2933 = vpop.permute.xlu0 %2932
        %v2934 = vrot.slane %v2925, 4
        %v2935 = vrot.slane %v2927, 4
        %v2936 = vrot.slane %v2929, 4
        %v2937 = vrot.slane %v2931, 4
        %v2938 = vrot.slane %v2933, 4
        %v2939 = vsel %vm420, %v2934, %v2935
        %v2940 = vsel %vm1268, %v2939, %v2927
        %v2941 = vsel %vm420, %v2935, %v2936
        %v2942 = vsel %vm1268, %v2941, %v2929
        %v2943 = vsel %vm420, %v2936, %v2937
        %v2944 = vsel %vm1268, %v2943, %v2931
        %v2945 = vsel %vm420, %v2937, %v2938
        %v2946 = vsel %vm1268, %v2945, %v2933
        %2951 = vst [vmem:[#allocation3 + $0x1a0] sm:$0x33] %v2940
        %2952 = vst [vmem:[#allocation3 + $0x1a8] sm:$0x33] %v2942
        %2953 = vst [vmem:[#allocation3 + $0x1b0] sm:$0x33] %v2944
        %2954 = vst.msk [vmem:[#allocation3 + $0x1b8] sm:$0x33] %vm438, %v2946
        %v2955 = vld [vmem:[%s6] sm:$0xf]
        %v2956 = vld [vmem:[#allocation3] sm:$0xff]
        %v2957 = vld [vmem:[#allocation3 + $0x8] sm:$0xff]
        %v2958 = vld [vmem:[#allocation3 + $0x10] sm:$0xff]
        %v2959 = vld [vmem:[#allocation3 + $0x18] sm:$0xff]
        %v2960 = vld [vmem:[#allocation3 + $0x20] sm:$0xff]
        %v2961 = vld [vmem:[#allocation3 + $0x28] sm:$0xff]
        %v2962 = vld [vmem:[#allocation3 + $0x30] sm:$0xff]
        %v2963 = vld [vmem:[#allocation3 + $0x38] sm:$0xff]
        %v2964 = vld [vmem:[#allocation3 + $0x40] sm:$0xff]
        %v2965 = vld [vmem:[#allocation3 + $0x48] sm:$0xff]
        %v2966 = vld [vmem:[#allocation3 + $0x50] sm:$0xff]
        %v2967 = vld [vmem:[#allocation3 + $0x58] sm:$0xff]
        %v2968 = vld [vmem:[#allocation3 + $0x60] sm:$0xff]
        %v2969 = vld [vmem:[#allocation3 + $0x68] sm:$0xff]
        %v2970 = vld [vmem:[#allocation3 + $0x70] sm:$0xff]
        %v2971 = vld [vmem:[#allocation3 + $0x78] sm:$0xff]
        %v2972 = vld [vmem:[#allocation3 + $0x80] sm:$0xff]
        %v2973 = vld [vmem:[#allocation3 + $0x88] sm:$0xff]
        %v2974 = vld [vmem:[#allocation3 + $0x90] sm:$0xff]
        %v2975 = vld [vmem:[#allocation3 + $0x98] sm:$0xff]
        %v2976 = vld [vmem:[#allocation3 + $0xa0] sm:$0xff]
        %v2977 = vld [vmem:[#allocation3 + $0xa8] sm:$0xff]
        %v2978 = vld [vmem:[#allocation3 + $0xb0] sm:$0xff]
        %v2979 = vld [vmem:[#allocation3 + $0xb8] sm:$0xff]
        %v2980 = vld [vmem:[#allocation3 + $0xc0] sm:$0xff]
        %v2981 = vld [vmem:[#allocation3 + $0xc8] sm:$0xff]
        %v2982 = vld [vmem:[#allocation3 + $0xd0] sm:$0xff]
        %v2983 = vld [vmem:[#allocation3 + $0xd8] sm:$0xff]
        %v2984 = vld [vmem:[#allocation3 + $0xe0] sm:$0xff]
        %v2985 = vld [vmem:[#allocation3 + $0xe8] sm:$0xff]
        %v2986 = vld [vmem:[#allocation3 + $0xf0] sm:$0xff]
        %v2987 = vld [vmem:[#allocation3 + $0xf8] sm:$0xff]
        %v2988 = vld [vmem:[#allocation3 + $0x100] sm:$0xff]
        %v2989 = vld [vmem:[#allocation3 + $0x108] sm:$0xff]
        %v2990 = vld [vmem:[#allocation3 + $0x110] sm:$0xff]
        %v2991 = vld [vmem:[#allocation3 + $0x118] sm:$0xff]
        %v2992 = vld [vmem:[#allocation3 + $0x120] sm:$0xff]
        %v2993 = vld [vmem:[#allocation3 + $0x128] sm:$0xff]
        %v2994 = vld [vmem:[#allocation3 + $0x130] sm:$0xff]
        %v2995 = vld [vmem:[#allocation3 + $0x138] sm:$0xff]
        %v2996 = vld [vmem:[#allocation3 + $0x140] sm:$0xff]
        %v2997 = vld [vmem:[#allocation3 + $0x148] sm:$0xff]
        %v2998 = vld [vmem:[#allocation3 + $0x150] sm:$0xff]
        %v2999 = vld [vmem:[#allocation3 + $0x158] sm:$0xff]
        %v3000 = vld [vmem:[#allocation3 + $0x160] sm:$0xff]
        %v3001 = vld [vmem:[#allocation3 + $0x168] sm:$0xff]
        %v3002 = vld [vmem:[#allocation3 + $0x170] sm:$0xff]
        %v3003 = vld [vmem:[#allocation3 + $0x178] sm:$0xff]
        %v3004 = vld [vmem:[#allocation3 + $0x180] sm:$0xff]
        %v3005 = vld [vmem:[#allocation3 + $0x188] sm:$0xff]
        %v3006 = vld [vmem:[#allocation3 + $0x190] sm:$0xff]
        %v3007 = vld [vmem:[#allocation3 + $0x198] sm:$0xff]
        %v3008 = vld [vmem:[#allocation3 + $0x1a0] sm:$0x33]
        %v3009 = vld [vmem:[#allocation3 + $0x1a8] sm:$0x33]
        %v3010 = vld [vmem:[#allocation3 + $0x1b0] sm:$0x33]
        %v3011 = vld [vmem:[#allocation3 + $0x1b8] sm:$0x33]
        %v3068 = vunpack.c.l.b16 %v2956
        %v3069 = vunpack.c.h.b16 %v2956
        %v3070 = vunpack.c.l.b16 %v2957
        %v3071 = vunpack.c.h.b16 %v2957
        %v3072 = vunpack.c.l.b16 %v2958
        %v3073 = vunpack.c.h.b16 %v2958
        %v3074 = vunpack.c.l.b16 %v2959
        %v3075 = vunpack.c.h.b16 %v2959
        %v3076 = vunpack.c.l.b16 %v2960
        %v3077 = vunpack.c.h.b16 %v2960
        %v3078 = vunpack.c.l.b16 %v2961
        %v3079 = vunpack.c.h.b16 %v2961
        %v3080 = vunpack.c.l.b16 %v2962
        %v3081 = vunpack.c.h.b16 %v2962
        %v3082 = vunpack.c.l.b16 %v2963
        %v3083 = vunpack.c.h.b16 %v2963
        %v3084 = vunpack.c.l.b16 %v2964
        %v3085 = vunpack.c.h.b16 %v2964
        %v3086 = vunpack.c.l.b16 %v2965
        %v3087 = vunpack.c.h.b16 %v2965
        %v3088 = vunpack.c.l.b16 %v2966
        %v3089 = vunpack.c.h.b16 %v2966
        %v3090 = vunpack.c.l.b16 %v2967
        %v3091 = vunpack.c.h.b16 %v2967
        %v3092 = vunpack.c.l.b16 %v2968
        %v3093 = vunpack.c.h.b16 %v2968
        %v3094 = vunpack.c.l.b16 %v2969
        %v3095 = vunpack.c.h.b16 %v2969
        %v3096 = vunpack.c.l.b16 %v2970
        %v3097 = vunpack.c.h.b16 %v2970
        %v3098 = vunpack.c.l.b16 %v2971
        %v3099 = vunpack.c.h.b16 %v2971
        %v3100 = vunpack.c.l.b16 %v2972
        %v3101 = vunpack.c.h.b16 %v2972
        %v3102 = vunpack.c.l.b16 %v2973
        %v3103 = vunpack.c.h.b16 %v2973
        %v3104 = vunpack.c.l.b16 %v2974
        %v3105 = vunpack.c.h.b16 %v2974
        %v3106 = vunpack.c.l.b16 %v2975
        %v3107 = vunpack.c.h.b16 %v2975
        %v3108 = vunpack.c.l.b16 %v2976
        %v3109 = vunpack.c.h.b16 %v2976
        %v3110 = vunpack.c.l.b16 %v2977
        %v3111 = vunpack.c.h.b16 %v2977
        %v3112 = vunpack.c.l.b16 %v2978
        %v3113 = vunpack.c.h.b16 %v2978
        %v3114 = vunpack.c.l.b16 %v2979
        %v3115 = vunpack.c.h.b16 %v2979
        %v3116 = vunpack.c.l.b16 %v2980
        %v3117 = vunpack.c.h.b16 %v2980
        %v3118 = vunpack.c.l.b16 %v2981
        %v3119 = vunpack.c.h.b16 %v2981
        %v3120 = vunpack.c.l.b16 %v2982
        %v3121 = vunpack.c.h.b16 %v2982
        %v3122 = vunpack.c.l.b16 %v2983
        %v3123 = vunpack.c.h.b16 %v2983
        %v3124 = vunpack.c.l.b16 %v2984
        %v3125 = vunpack.c.h.b16 %v2984
        %v3126 = vunpack.c.l.b16 %v2985
        %v3127 = vunpack.c.h.b16 %v2985
        %v3128 = vunpack.c.l.b16 %v2986
        %v3129 = vunpack.c.h.b16 %v2986
        %v3130 = vunpack.c.l.b16 %v2987
        %v3131 = vunpack.c.h.b16 %v2987
        %v3132 = vunpack.c.l.b16 %v2988
        %v3133 = vunpack.c.h.b16 %v2988
        %v3134 = vunpack.c.l.b16 %v2989
        %v3135 = vunpack.c.h.b16 %v2989
        %v3136 = vunpack.c.l.b16 %v2990
        %v3137 = vunpack.c.h.b16 %v2990
        %v3138 = vunpack.c.l.b16 %v2991
        %v3139 = vunpack.c.h.b16 %v2991
        %v3140 = vunpack.c.l.b16 %v2992
        %v3141 = vunpack.c.h.b16 %v2992
        %v3142 = vunpack.c.l.b16 %v2993
        %v3143 = vunpack.c.h.b16 %v2993
        %v3144 = vunpack.c.l.b16 %v2994
        %v3145 = vunpack.c.h.b16 %v2994
        %v3146 = vunpack.c.l.b16 %v2995
        %v3147 = vunpack.c.h.b16 %v2995
        %v3148 = vunpack.c.l.b16 %v2996
        %v3149 = vunpack.c.h.b16 %v2996
        %v3150 = vunpack.c.l.b16 %v2997
        %v3151 = vunpack.c.h.b16 %v2997
        %v3152 = vunpack.c.l.b16 %v2998
        %v3153 = vunpack.c.h.b16 %v2998
        %v3154 = vunpack.c.l.b16 %v2999
        %v3155 = vunpack.c.h.b16 %v2999
        %v3156 = vunpack.c.l.b16 %v3000
        %v3157 = vunpack.c.h.b16 %v3000
        %v3158 = vunpack.c.l.b16 %v3001
        %v3159 = vunpack.c.h.b16 %v3001
        %v3160 = vunpack.c.l.b16 %v3002
        %v3161 = vunpack.c.h.b16 %v3002
        %v3162 = vunpack.c.l.b16 %v3003
        %v3163 = vunpack.c.h.b16 %v3003
        %v3164 = vunpack.c.l.b16 %v3004
        %v3165 = vunpack.c.h.b16 %v3004
        %v3166 = vunpack.c.l.b16 %v3005
        %v3167 = vunpack.c.h.b16 %v3005
        %v3168 = vunpack.c.l.b16 %v3006
        %v3169 = vunpack.c.h.b16 %v3006
        %v3170 = vunpack.c.l.b16 %v3007
        %v3171 = vunpack.c.h.b16 %v3007
        %v3172 = vunpack.c.l.b16 %v3008
        %v3173 = vunpack.c.h.b16 %v3008
        %v3174 = vunpack.c.l.b16 %v3009
        %v3175 = vunpack.c.h.b16 %v3009
        %v3176 = vunpack.c.l.b16 %v3010
        %v3177 = vunpack.c.h.b16 %v3010
        %v3178 = vunpack.c.l.b16 %v3011
        %v3179 = vunpack.c.h.b16 %v3011
        %v3180 = vpack.c.b16 %v3076, %v3068
        %v3181 = vpack.c.b16 %v3077, %v3069
        %v3182 = vpack.c.b16 %v3078, %v3070
        %v3183 = vpack.c.b16 %v3079, %v3071
        %v3184 = vpack.c.b16 %v3080, %v3072
        %v3185 = vpack.c.b16 %v3081, %v3073
        %v3186 = vpack.c.b16 %v3082, %v3074
        %v3187 = vpack.c.b16 %v3083, %v3075
        %v3188 = vpack.c.b16 %v3092, %v3084
        %v3189 = vpack.c.b16 %v3093, %v3085
        %v3190 = vpack.c.b16 %v3094, %v3086
        %v3191 = vpack.c.b16 %v3095, %v3087
        %v3192 = vpack.c.b16 %v3096, %v3088
        %v3193 = vpack.c.b16 %v3097, %v3089
        %v3194 = vpack.c.b16 %v3098, %v3090
        %v3195 = vpack.c.b16 %v3099, %v3091
        %v3196 = vpack.c.b16 %v3108, %v3100
        %v3197 = vpack.c.b16 %v3109, %v3101
        %v3198 = vpack.c.b16 %v3110, %v3102
        %v3199 = vpack.c.b16 %v3111, %v3103
        %v3200 = vpack.c.b16 %v3112, %v3104
        %v3201 = vpack.c.b16 %v3113, %v3105
        %v3202 = vpack.c.b16 %v3114, %v3106
        %v3203 = vpack.c.b16 %v3115, %v3107
        %v3204 = vpack.c.b16 %v3124, %v3116
        %v3205 = vpack.c.b16 %v3125, %v3117
        %v3206 = vpack.c.b16 %v3126, %v3118
        %v3207 = vpack.c.b16 %v3127, %v3119
        %v3208 = vpack.c.b16 %v3128, %v3120
        %v3209 = vpack.c.b16 %v3129, %v3121
        %v3210 = vpack.c.b16 %v3130, %v3122
        %v3211 = vpack.c.b16 %v3131, %v3123
        %v3212 = vpack.c.b16 %v3140, %v3132
        %v3213 = vpack.c.b16 %v3141, %v3133
        %v3214 = vpack.c.b16 %v3142, %v3134
        %v3215 = vpack.c.b16 %v3143, %v3135
        %v3216 = vpack.c.b16 %v3144, %v3136
        %v3217 = vpack.c.b16 %v3145, %v3137
        %v3218 = vpack.c.b16 %v3146, %v3138
        %v3219 = vpack.c.b16 %v3147, %v3139
        %v3220 = vpack.c.b16 %v3156, %v3148
        %v3221 = vpack.c.b16 %v3157, %v3149
        %v3222 = vpack.c.b16 %v3158, %v3150
        %v3223 = vpack.c.b16 %v3159, %v3151
        %v3224 = vpack.c.b16 %v3160, %v3152
        %v3225 = vpack.c.b16 %v3161, %v3153
        %v3226 = vpack.c.b16 %v3162, %v3154
        %v3227 = vpack.c.b16 %v3163, %v3155
        %v3228 = vpack.c.b16 %v3172, %v3164
        %v3229 = vpack.c.b16 %v3173, %v3165
        %v3230 = vpack.c.b16 %v3174, %v3166
        %v3231 = vpack.c.b16 %v3175, %v3167
        %v3232 = vpack.c.b16 %v3176, %v3168
        %v3233 = vpack.c.b16 %v3177, %v3169
        %v3234 = vpack.c.b16 %v3178, %v3170
        %v3235 = vpack.c.b16 %v3179, %v3171
        %v3285 = vsel %vm1613, %v2955, 0
        %v3288 = vsel %vm1617, %v3228, 0
        %v3291 = vsel %vm1617, %v3229, 0
        %v3294 = vsel %vm1617, %v3230, 0
        %v3297 = vsel %vm1617, %v3231, 0
        %v3300 = vsel %vm1617, %v3232, 0
        %v3303 = vsel %vm1617, %v3233, 0
        %v3306 = vsel %vm1617, %v3234, 0
        %v3309 = vsel %vm1617, %v3235, 0
        %3311 = vmatprep.subr.bf16.mxu0 %v3181
        %3312 = vmatpush1.bf16.msra.mxu0 %v3180
        %3313 = vmatprep.subr.bf16.mxu0 %v3189
        %3314 = vmatpush1.bf16.msra.mxu0 %v3188
        %3315 = vmatprep.subr.bf16.mxu0 %v3197
        %3316 = vmatpush1.bf16.msra.mxu0 %v3196
        %3317 = vmatprep.subr.bf16.mxu0 %v3205
        %3318 = vmatpush1.bf16.msra.mxu0 %v3204
        %3319 = vmatprep.subr.bf16.mxu0 %v3213
        %3320 = vmatpush1.bf16.msra.mxu0 %v3212
        %3321 = vmatprep.subr.bf16.mxu0 %v3221
        %3322 = vmatpush1.bf16.msra.mxu0 %v3220
        %3323 = vmatprep.subr.bf16.mxu0 %v3291
        %3324 = vmatpush1.bf16.msra.mxu0 %v3288
        %3325 = vmatprep.subr.bf16.mxu0 0
        %3326 = vmatpush1.bf16.msra.mxu0 0
        %3327 = vmatprep.subr.bf16.mxu0 0
        %3328 = vmatpush1.bf16.msra.mxu0 0
        %3329 = vmatprep.subr.bf16.mxu0 0
        %3330 = vmatpush1.bf16.msra.mxu0 0
        %3331 = vmatprep.subr.bf16.mxu0 0
        %3332 = vmatpush1.bf16.msra.mxu0 0
        %3333 = vmatprep.subr.bf16.mxu0 0
        %3334 = vmatpush1.bf16.msra.mxu0 0
        %3335 = vmatprep.subr.bf16.mxu0 0
        %3336 = vmatpush1.bf16.msra.mxu0 0
        %3337 = vmatprep.subr.bf16.mxu0 0
        %3338 = vmatpush1.bf16.msra.mxu0 0
        %3339 = vmatprep.subr.bf16.mxu0 0
        %3340 = vmatpush1.bf16.msra.mxu0 0
        %3341 = vmatprep.subr.bf16.mxu0 0
        %3342 = vmatpush1.bf16.msra.mxu0 0
        %3343 = vmatprep.mubr.bf16.mxu0 0
        %3344 = vmatmul.mubr.bf16.gmra.mrb[0].mxu0 %v3285
        %v3345 = vpop.f32.mrb[0].mxu0
        %v3346 = vadd.f32 0.0, %v3345
        %v3347 = vpop.f32.mrb[0].mxu0
        %v3348 = vadd.f32 0.0, %v3347
        %v3349 = vpop.f32.mrb[0].mxu0
        %v3350 = vpop.f32.mrb[0].mxu0
        %3351 = vdwg.mxu0
        %3352 = vmatprep.subr.bf16.mxu0 %v3183
        %3353 = vmatpush1.bf16.msra.mxu0 %v3182
        %3354 = vmatprep.subr.bf16.mxu0 %v3191
        %3355 = vmatpush1.bf16.msra.mxu0 %v3190
        %3356 = vmatprep.subr.bf16.mxu0 %v3199
        %3357 = vmatpush1.bf16.msra.mxu0 %v3198
        %3358 = vmatprep.subr.bf16.mxu0 %v3207
        %3359 = vmatpush1.bf16.msra.mxu0 %v3206
        %3360 = vmatprep.subr.bf16.mxu0 %v3215
        %3361 = vmatpush1.bf16.msra.mxu0 %v3214
        %3362 = vmatprep.subr.bf16.mxu0 %v3223
        %3363 = vmatpush1.bf16.msra.mxu0 %v3222
        %3364 = vmatprep.subr.bf16.mxu0 %v3297
        %3365 = vmatpush1.bf16.msra.mxu0 %v3294
        %3366 = vmatprep.subr.bf16.mxu0 0
        %3367 = vmatpush1.bf16.msra.mxu0 0
        %3368 = vmatprep.subr.bf16.mxu0 0
        %3369 = vmatpush1.bf16.msra.mxu0 0
        %3370 = vmatprep.subr.bf16.mxu0 0
        %3371 = vmatpush1.bf16.msra.mxu0 0
        %3372 = vmatprep.subr.bf16.mxu0 0
        %3373 = vmatpush1.bf16.msra.mxu0 0
        %3374 = vmatprep.subr.bf16.mxu0 0
        %3375 = vmatpush1.bf16.msra.mxu0 0
        %3376 = vmatprep.subr.bf16.mxu0 0
        %3377 = vmatpush1.bf16.msra.mxu0 0
        %3378 = vmatprep.subr.bf16.mxu0 0
        %3379 = vmatpush1.bf16.msra.mxu0 0
        %3380 = vmatprep.subr.bf16.mxu0 0
        %3381 = vmatpush1.bf16.msra.mxu0 0
        %3382 = vmatprep.subr.bf16.mxu0 0
        %3383 = vmatpush1.bf16.msra.mxu0 0
        %3384 = vmatprep.mubr.bf16.mxu0 0
        %3385 = vmatmul.mubr.bf16.gmra.mrb[0].mxu0 %v3285
        %v3386 = vpop.f32.mrb[0].mxu0
        %v3387 = vadd.f32 0.0, %v3386
        %v3388 = vpop.f32.mrb[0].mxu0
        %v3389 = vadd.f32 0.0, %v3388
        %v3390 = vpop.f32.mrb[0].mxu0
        %v3391 = vpop.f32.mrb[0].mxu0
        %3392 = vdwg.mxu0
        %3393 = vmatprep.subr.bf16.mxu0 %v3185
        %3394 = vmatpush1.bf16.msra.mxu0 %v3184
        %3395 = vmatprep.subr.bf16.mxu0 %v3193
        %3396 = vmatpush1.bf16.msra.mxu0 %v3192
        %3397 = vmatprep.subr.bf16.mxu0 %v3201
        %3398 = vmatpush1.bf16.msra.mxu0 %v3200
        %3399 = vmatprep.subr.bf16.mxu0 %v3209
        %3400 = vmatpush1.bf16.msra.mxu0 %v3208
        %3401 = vmatprep.subr.bf16.mxu0 %v3217
        %3402 = vmatpush1.bf16.msra.mxu0 %v3216
        %3403 = vmatprep.subr.bf16.mxu0 %v3225
        %3404 = vmatpush1.bf16.msra.mxu0 %v3224
        %3405 = vmatprep.subr.bf16.mxu0 %v3303
        %3406 = vmatpush1.bf16.msra.mxu0 %v3300
        %3407 = vmatprep.subr.bf16.mxu0 0
        %3408 = vmatpush1.bf16.msra.mxu0 0
        %3409 = vmatprep.subr.bf16.mxu0 0
        %3410 = vmatpush1.bf16.msra.mxu0 0
        %3411 = vmatprep.subr.bf16.mxu0 0
        %3412 = vmatpush1.bf16.msra.mxu0 0
        %3413 = vmatprep.subr.bf16.mxu0 0
        %3414 = vmatpush1.bf16.msra.mxu0 0
        %3415 = vmatprep.subr.bf16.mxu0 0
        %3416 = vmatpush1.bf16.msra.mxu0 0
        %3417 = vmatprep.subr.bf16.mxu0 0
        %3418 = vmatpush1.bf16.msra.mxu0 0
        %3419 = vmatprep.subr.bf16.mxu0 0
        %3420 = vmatpush1.bf16.msra.mxu0 0
        %3421 = vmatprep.subr.bf16.mxu0 0
        %3422 = vmatpush1.bf16.msra.mxu0 0
        %3423 = vmatprep.subr.bf16.mxu0 0
        %3424 = vmatpush1.bf16.msra.mxu0 0
        %3425 = vmatprep.mubr.bf16.mxu0 0
        %3426 = vmatmul.mubr.bf16.gmra.mrb[0].mxu0 %v3285
        %v3427 = vpop.f32.mrb[0].mxu0
        %v3428 = vadd.f32 0.0, %v3427
        %v3429 = vpop.f32.mrb[0].mxu0
        %v3430 = vadd.f32 0.0, %v3429
        %v3431 = vpop.f32.mrb[0].mxu0
        %v3432 = vpop.f32.mrb[0].mxu0
        %3433 = vdwg.mxu0
        %3434 = vmatprep.subr.bf16.mxu0 %v3187
        %3435 = vmatpush1.bf16.msra.mxu0 %v3186
        %3436 = vmatprep.subr.bf16.mxu0 %v3195
        %3437 = vmatpush1.bf16.msra.mxu0 %v3194
        %3438 = vmatprep.subr.bf16.mxu0 %v3203
        %3439 = vmatpush1.bf16.msra.mxu0 %v3202
        %3440 = vmatprep.subr.bf16.mxu0 %v3211
        %3441 = vmatpush1.bf16.msra.mxu0 %v3210
        %3442 = vmatprep.subr.bf16.mxu0 %v3219
        %3443 = vmatpush1.bf16.msra.mxu0 %v3218
        %3444 = vmatprep.subr.bf16.mxu0 %v3227
        %3445 = vmatpush1.bf16.msra.mxu0 %v3226
        %3446 = vmatprep.subr.bf16.mxu0 %v3309
        %3447 = vmatpush1.bf16.msra.mxu0 %v3306
        %3448 = vmatprep.subr.bf16.mxu0 0
        %3449 = vmatpush1.bf16.msra.mxu0 0
        %3450 = vmatprep.subr.bf16.mxu0 0
        %3451 = vmatpush1.bf16.msra.mxu0 0
        %3452 = vmatprep.subr.bf16.mxu0 0
        %3453 = vmatpush1.bf16.msra.mxu0 0
        %3454 = vmatprep.subr.bf16.mxu0 0
        %3455 = vmatpush1.bf16.msra.mxu0 0
        %3456 = vmatprep.subr.bf16.mxu0 0
        %3457 = vmatpush1.bf16.msra.mxu0 0
        %3458 = vmatprep.subr.bf16.mxu0 0
        %3459 = vmatpush1.bf16.msra.mxu0 0
        %3460 = vmatprep.subr.bf16.mxu0 0
        %3461 = vmatpush1.bf16.msra.mxu0 0
        %3462 = vmatprep.subr.bf16.mxu0 0
        %3463 = vmatpush1.bf16.msra.mxu0 0
        %3464 = vmatprep.subr.bf16.mxu0 0
        %3465 = vmatpush1.bf16.msra.mxu0 0
        %3466 = vmatprep.mubr.bf16.mxu0 0
        %3467 = vmatmul.mubr.bf16.gmra.mrb[0].mxu0 %v3285
        %v3468 = vpop.f32.mrb[0].mxu0
        %v3469 = vadd.f32 0.0, %v3468
        %v3470 = vpop.f32.mrb[0].mxu0
        %v3471 = vadd.f32 0.0, %v3470
        %v3472 = vpop.f32.mrb[0].mxu0
        %v3473 = vpop.f32.mrb[0].mxu0
        %3474 = vdwg.mxu0
        %v3475 = vld [vmem:[%s7] sm:$0xff]
        %v3476 = vld [vmem:[%s8] sm:$0xff]
        %v3477 = vld [vmem:[%s9] sm:$0xff]
        %v3478 = vmul.f32 %v3346, %v1813
        %v3479 = vmul.f32 %v3348, %v1817
        %v3480 = vmul.f32 %v3387, %v1821
        %v3481 = vmul.f32 %v3389, %v1825
        %v3482 = vmul.f32 %v3428, %v1829
        %v3483 = vmul.f32 %v3430, %v1833
        %v3484 = vmul.f32 %v3469, %v1837
        %v3485 = vmul.f32 %v3471, %v1841
        %v3486 = vadd.f32 %v3478, %v3479
        %v3487 = vadd.f32 %v3486, %v3480
        %v3488 = vadd.f32 %v3487, %v3481
        %v3489 = vadd.f32 %v3488, %v3482
        %v3490 = vadd.f32 %v3489, %v3483
        %v3491 = vadd.f32 %v3490, %v3484
        %vm3492 = vcmask 850944
        %v3493 = vsel %vm3492, %v3485, 0.0
        %v3494 = vadd.f32 %v3491, %v3493
        %3495 = vadd.xlane.f32.xlu0 %v3494
        %v3496 = vpop.xlane.xlu0 %3495
        %v3497 = vmul.f32 %v3496, 0.001953125
        %v3498 = vadd.f32 %v3497, %v3475
        %vm3499 = vcmask 3072
        %v3500 = vsel %vm3499, %v3498, 0.0
        %v3501 = vrot.slane %v3500, 4
        %v3502 = vadd.f32 %v3500, %v3501
        %v3503 = vrot.slane %v3502, 2
        %v3504 = vadd.f32 %v3502, %v3503
        %v3505 = vrot.slane %v3504, 1
        %v3506 = vadd.f32 %v3504, %v3505
        %v3507 = vrcp.pop 4.0
        %v3508 = vmul.f32 %v3506, %v3507
        %v3510 = vrot.slane %v3498, 4
        %v3512 = vsel %vm3499, %v3510, 0.0
        %v3513 = vrot.slane %v3512, 4
        %v3514 = vadd.f32 %v3512, %v3513
        %v3515 = vrot.slane %v3514, 2
        %v3516 = vadd.f32 %v3514, %v3515
        %v3517 = vrot.slane %v3516, 1
        %v3518 = vadd.f32 %v3516, %v3517
        %v3519 = vmul.f32 %v3518, %v3507
        %v3520 = vsel %vm1858, %v3508, %v3519
        %v3521 = vsub.f32 %v3475, %v3520
        %3523 = vset.pattern.permute.xlu0 0
        %3524 = vperm.xlu0 %3523, %v3521
        %v3525 = vpop.permute.xlu0 %3524
        %v3527 = vadd.f32 %v3478, %v3525
        %v3528 = vadd.f32 %v3479, %v3525
        %v3529 = vadd.f32 %v3480, %v3525
        %v3530 = vadd.f32 %v3481, %v3525
        %v3531 = vadd.f32 %v3482, %v3525
        %v3532 = vadd.f32 %v3483, %v3525
        %v3533 = vadd.f32 %v3484, %v3525
        %v3534 = vadd.f32 %v3485, %v3525
        %v3535 = vmul.f32 %v3527, %v1813
        %v3536 = vmul.f32 %v3528, %v1817
        %v3537 = vmul.f32 %v3529, %v1821
        %v3538 = vmul.f32 %v3530, %v1825
        %v3539 = vmul.f32 %v3531, %v1829
        %v3540 = vmul.f32 %v3532, %v1833
        %v3541 = vmul.f32 %v3533, %v1837
        %v3542 = vmul.f32 %v3534, %v1841
        %v3543 = vmul.f32 %v3535, %v3535
        %v3544 = vmul.f32 %v3536, %v3536
        %v3545 = vmul.f32 %v3537, %v3537
        %v3546 = vmul.f32 %v3538, %v3538
        %v3547 = vmul.f32 %v3539, %v3539
        %v3548 = vmul.f32 %v3540, %v3540
        %v3549 = vmul.f32 %v3541, %v3541
        %v3550 = vmul.f32 %v3542, %v3542
        %v3551 = vadd.f32 %v3543, %v3544
        %v3552 = vadd.f32 %v3551, %v3545
        %v3553 = vadd.f32 %v3552, %v3546
        %v3554 = vadd.f32 %v3553, %v3547
        %v3555 = vadd.f32 %v3554, %v3548
        %v3556 = vadd.f32 %v3555, %v3549
        %v3557 = vsel %vm3492, %v3550, 0.0
        %v3558 = vadd.f32 %v3556, %v3557
        %3559 = vadd.xlane.f32.xlu0 %v3558
        %v3560 = vpop.xlane.xlu0 %3559
        %v3561 = vmul.f32 %v3560, 0.001953125
        %v3562 = vsel %vm1858, %v3561, 0.0
        %v3563 = vrot.slane %v3562, 4
        %v3564 = vadd.f32 %v3562, %v3563
        %v3565 = vrot.slane %v3564, 2
        %v3566 = vadd.f32 %v3564, %v3565
        %v3567 = vrot.slane %v3566, 1
        %v3568 = vadd.f32 %v3566, %v3567
        %v3569 = vmul.f32 %v3568, %v3507
        %v3571 = vrot.slane %v3561, 4
        %v3573 = vsel %vm1858, %v3571, 0.0
        %v3574 = vrot.slane %v3573, 4
        %v3575 = vadd.f32 %v3573, %v3574
        %v3576 = vrot.slane %v3575, 2
        %v3577 = vadd.f32 %v3575, %v3576
        %v3578 = vrot.slane %v3577, 1
        %v3579 = vadd.f32 %v3577, %v3578
        %v3580 = vmul.f32 %v3579, %v3507
        %v3581 = vsel %vm1858, %v3569, %v3580
        %v3582 = vadd.f32 %v3581, 1e-05
        %v3583 = vrsqrt.pop %v3582
        %v3584 = vmul.f32 %v3476, %v3583
        %3586 = vset.pattern.permute.xlu0 0
        %3587 = vperm.xlu0 %3586, %v3584
        %v3588 = vpop.permute.xlu0 %3587
        %v3590 = vmul.f32 %v3535, %v3588
        %v3591 = vmul.f32 %v3536, %v3588
        %v3592 = vmul.f32 %v3537, %v3588
        %v3593 = vmul.f32 %v3538, %v3588
        %v3594 = vmul.f32 %v3539, %v3588
        %v3595 = vmul.f32 %v3540, %v3588
        %v3596 = vmul.f32 %v3541, %v3588
        %v3597 = vmul.f32 %v3542, %v3588
        %3599 = vset.pattern.permute.xlu0 0
        %3600 = vperm.xlu0 %3599, %v3477
        %v3601 = vpop.permute.xlu0 %3600
        %v3603 = vadd.f32 %v3590, %v3601
        %v3604 = vadd.f32 %v3591, %v3601
        %v3605 = vadd.f32 %v3592, %v3601
        %v3606 = vadd.f32 %v3593, %v3601
        %v3607 = vadd.f32 %v3594, %v3601
        %v3608 = vadd.f32 %v3595, %v3601
        %v3609 = vadd.f32 %v3596, %v3601
        %v3610 = vadd.f32 %v3597, %v3601
        %v3611 = vmax.f32 %v3603, 0.0
        %v3612 = vmax.f32 %v3604, 0.0
        %v3613 = vmax.f32 %v3605, 0.0
        %v3614 = vmax.f32 %v3606, 0.0
        %v3615 = vmax.f32 %v3607, 0.0
        %v3616 = vmax.f32 %v3608, 0.0
        %v3617 = vmax.f32 %v3609, 0.0
        %v3618 = vmax.f32 %v3610, 0.0
        %v3619 = vmul.f32 %v3611, %v1813
        %v3620 = vmul.f32 %v3612, %v1817
        %v3621 = vmul.f32 %v3613, %v1821
        %v3622 = vmul.f32 %v3614, %v1825
        %v3623 = vmul.f32 %v3615, %v1829
        %v3624 = vmul.f32 %v3616, %v1833
        %v3625 = vmul.f32 %v3617, %v1837
        %v3626 = vmul.f32 %v3618, %v1841
        %3627 = vst [vmem:[%s365] sm:$0xff] %v3619
        %3628 = vst [vmem:[%s365 + $0x8] sm:$0xff] %v3620
        %3629 = vst [vmem:[%s365 + $0x10] sm:$0xff] %v3621
        %3630 = vst [vmem:[%s365 + $0x18] sm:$0xff] %v3622
        %3631 = vst [vmem:[%s365 + $0x20] sm:$0xff] %v3623
        %3632 = vst [vmem:[%s365 + $0x28] sm:$0xff] %v3624
        %3633 = vst [vmem:[%s365 + $0x30] sm:$0xff] %v3625
        %3634 = vst.msk [vmem:[%s365 + $0x38] sm:$0xff] %vm3492, %v3626
        %s3635 = sand.u32 %s248, 1
        %s3636 = scalar_lea.sflag [#allocation7], %s3635
        %s3637 = sand.u32 %s248, 1
        %s3638 = smul.addr %s3637, 64
        %s3639 = scalar_lea.vmem [#allocation8], %s3638
        // Predicated region
        $region65: #{tpu_custom_call.1} parent=59 // pred_check
          %p3640 = pneg %p258
        $region66: #{tpu_custom_call.1} parent=59 // pred_check_branch
          %3642 = sbr.rel (%p3640) target = $region68
        $region67: #{tpu_custom_call.1} parent=59 // pred_region
          %s3644 = ssub.s32 1024, 1024
          %3645 = vsyncadd %s3636, %s3644
          %s3646 = smul.addr %s25, 8
          %s3647 = smul.addr %s3646, 128
          %s3648 = scalar_lea.hbm %s10, %s3647
          %s3650 = sshll.u32 %s3639, 4
          %s3651 = int_to_ptr.vmem [resolvable:$true] %s3650
          %3653 = dma.vmem_to_hbm [thread:$0]  %s3651, 1024, %s3648, %s3636
        $region68: #{tpu_custom_call.1} parent=59 // pred_fallthru
          _
      $region60: #{tpu_custom_call.1} parent=5 // pred_fallthru
        _
      %p3654 = scmp.le.s32.totalorder 2, %s20
      // Predicated region
      $region69: #{tpu_custom_call.1} parent=5 // pred_check
        %p3655 = pneg %p3654
      $region70: #{tpu_custom_call.1} parent=5 // pred_check_branch
        %3657 = sbr.rel (%p3655) target = $region72
      $region71: #{tpu_custom_call.1} parent=5 // pred_region
        %s3658 = ssub.s32 %s20, 2
        // Predicated region
        $region73: #{tpu_custom_call.1} parent=71 // pred_check
          %p3659 = pneg %p264
        $region74: #{tpu_custom_call.1} parent=71 // pred_check_branch
          %3661 = sbr.rel (%p3659) target = $region76
        $region75: #{tpu_custom_call.1} parent=71 // pred_region
          %s3662 = sand.u32 %s249, 1
          %s3663 = scalar_lea.sflag [#allocation7], %s3662
          %s3664 = sand.u32 %s249, 1
          %s3665 = smul.addr %s3664, 64
          %s3666 = scalar_lea.vmem [#allocation8], %s3665
          %3667 = dma.done %s3663, 1024
        $region76: #{tpu_custom_call.1} parent=71 // pred_fallthru
          _
      $region72: #{tpu_custom_call.1} parent=5 // pred_fallthru
        _
    $region6: #{tpu_custom_call.1} parent=1 // loop_footer
      %s24 = sadd.s32 1, %s20
    $region7: #{tpu_custom_call.1} parent=1 // loop_footer_branch
      %19 = sbr.rel target = $region3
    $region8: #{tpu_custom_call.1} parent=1 // loop_exit
      _
    %3668 = vsyncpa [#allocation6], 1
    %s3669 = scalar_lea.sflag [#allocation6], 1
    %3670 = vsyncpa %s3669, 1
    %3671 = vsyncpa [#allocation7], 1
    %s3672 = scalar_lea.sflag [#allocation7], 1
    %3673 = vsyncpa %s3672, 1

</llo_original>
